<compile_context>
chip_gen: v7x
topology: tpu7x:2x2x1
jax: 0.10.0
libtpu: 0.0.40
codegen_flags: <defaults>
</compile_context>

<pallas_src>
import functools
import math

import jax
import jax.numpy as jnp
import numpy as np
from jax.experimental import pallas as pl
from jax.experimental.pallas import tpu as pltpu


# ----------------------------------------------------------------------------
# In-kernel helper: one MultiheadAttention block, batched over b_tile elements.
# ----------------------------------------------------------------------------
def _attention_block(x_q, x_kv, wq_ref, wkv_ref, bq_ref, bkv_ref, wo_ref, bo_ref,
                     *, b_tile, s_q, s_k, num_heads):
    """x_q: (b_tile*s_q, D) bf16 (rows batch-major, seq-minor), x_kv: (b_tile*s_k, D) bf16.

    wq_ref:  (D, D)  bf16  Q in_proj weight^T, pre-scaled by 1/sqrt(Dh)
    wkv_ref: (D, 2D) bf16  K|V in_proj weight^T
    bq_ref:  (1, D)  f32   (pre-scaled);  bkv_ref: (1, 2D) f32
    wo_ref:  (D, D)  bf16  out_proj.weight^T;  bo_ref: (1, D) f32
    returns: (b_tile*s_q, D) f32
    """
    D = wq_ref.shape[0]
    H = num_heads
    Dh = D // H
    n = H * b_tile                     # batch dim of the batched matmuls

    # Projections: rows = b_tile*s, contraction = D  -> MXU-sized matmuls,
    # f32 accumulation.  K and V share a single (D, 2D) matmul.
    q = jnp.dot(x_q, wq_ref[...], preferred_element_type=jnp.float32) + bq_ref[...]
    kv = jnp.dot(x_kv, wkv_ref[...], preferred_element_type=jnp.float32) + bkv_ref[...]

    # Head split: pure reshapes + a rank-3 (1,0,2) transpose (minor dim Dh kept),
    # giving leading-batch (n, s, Dh) operands with n = h*b_tile + b.
    def split_heads(x, s):
        return (x.reshape(b_tile * s, H, Dh)
                  .transpose(1, 0, 2)            # (H, b_tile*s, Dh)
                  .reshape(n, s, Dh)             # pure reshape: n = (h, b)
                  .astype(jnp.bfloat16))

    qh = split_heads(q, s_q)
    kh = split_heads(kv[:, :D], s_k)
    vh = split_heads(kv[:, D:], s_k)

    # Scores + softmax in f32 (1/sqrt(Dh) already folded into the Q projection).
    s = jnp.einsum('nqd,nkd->nqk', qh, kh,
                   preferred_element_type=jnp.float32)            # (n, s_q, s_k)
    s = s - jnp.max(s, axis=-1, keepdims=True)
    p = jnp.exp(s)
    p = p * pl.reciprocal(jnp.sum(p, axis=-1, keepdims=True), approx=False)

    # Context, head merge (pure reshape + one (1,0,2) transpose), out projection.
    ctx = jnp.einsum('nqk,nkd->nqd', p.astype(jnp.bfloat16), vh,
                     preferred_element_type=jnp.float32)          # (n, s_q, Dh)
    attn = (ctx.reshape(H, b_tile * s_q, Dh)
               .transpose(1, 0, 2)                                # (b_tile*s_q, H, Dh)
               .reshape(b_tile * s_q, D)
               .astype(jnp.bfloat16))
    return jnp.dot(attn, wo_ref[...], preferred_element_type=jnp.float32) + bo_ref[...]


# ----------------------------------------------------------------------------
# Fused DUMA kernel: both cross-attention blocks for one batch tile.
# ----------------------------------------------------------------------------
def _duma_kernel(qa_ref, p_ref,
                 wq_a, wkv_a, bq_a, bkv_a, wo_a, bo_a,
                 wq_b, wkv_b, bq_b, bkv_b, wo_b, bo_b,
                 o_qa_ref, o_p_ref, *, num_heads):
    b_t, s_qa, D = qa_ref.shape
    s_p = p_ref.shape[1]

    # f32 activations come straight from HBM; cast to bf16 in-kernel (cheap VPU
    # work hidden under the matmuls) and fold the batch tile into the row dim.
    qa = qa_ref[...].reshape(b_t * s_qa, D).astype(jnp.bfloat16)
    p = p_ref[...].reshape(b_t * s_p, D).astype(jnp.bfloat16)

    # enc_output_qa = attn_qa(query=p, key=qa, value=qa)   -> (b_t, s_p, D)
    out_qa = _attention_block(p, qa, wq_a, wkv_a, bq_a, bkv_a, wo_a, bo_a,
                              b_tile=b_t, s_q=s_p, s_k=s_qa, num_heads=num_heads)
    o_qa_ref[...] = out_qa.reshape(b_t, s_p, D).astype(o_qa_ref.dtype)

    # enc_output_p = attn_p(query=qa, key=p, value=p)      -> (b_t, s_qa, D)
    out_p = _attention_block(qa, p, wq_b, wkv_b, bq_b, bkv_b, wo_b, bo_b,
                             b_tile=b_t, s_q=s_qa, s_k=s_p, num_heads=num_heads)
    o_p_ref[...] = out_p.reshape(b_t, s_qa, D).astype(o_p_ref.dtype)


# ----------------------------------------------------------------------------
# Host-side helpers.
# ----------------------------------------------------------------------------
def _prep_params(wqkv, bqkv, wo, bo, num_heads):
    """PyTorch-layout MHA params -> kernel layout.

    Pre-transposed (kernel does x @ W), Q projection pre-scaled by 1/sqrt(Dh),
    bf16 matmul operands, f32 biases.  Called ONCE at layer init.
    """
    D = wo.shape[0]
    Dh = D // num_heads
    scale = 1.0 / math.sqrt(Dh)
    w_in_t = jnp.transpose(jnp.asarray(wqkv, jnp.float32))          # (D, 3D)
    wq_t = (w_in_t[:, :D] * scale).astype(jnp.bfloat16)             # (D, D)
    wkv_t = w_in_t[:, D:].astype(jnp.bfloat16)                      # (D, 2D)
    b_in = jnp.asarray(bqkv, jnp.float32)
    bq = (b_in[:D] * scale).reshape(1, D)
    bkv = b_in[D:].reshape(1, 2 * D)
    wo_t = jnp.transpose(jnp.asarray(wo, jnp.float32)).astype(jnp.bfloat16)
    bo2 = jnp.asarray(bo, jnp.float32).reshape(1, D)
    return (wq_t, wkv_t, bq, bkv, wo_t, bo2)


def _pick_batch_tile(B, s_qa, s_p, d, h, max_tile=8, vmem_budget=48 << 20):
    """Largest divisor of B (<= max_tile) whose rough per-step VMEM fits budget."""
    best = 1
    for bt in range(1, min(B, max_tile) + 1):
        if B % bt:
            continue
        est = (2 * 2 * bt * (s_qa + s_p) * d * 4     # f32 activations in+out, double-buffered
               + 3 * bt * (s_qa + s_p) * d * 4       # f32 q/kv projection intermediates
               + 2 * bt * h * s_qa * s_p * 4         # f32 score/prob tensors (both blocks)
               + 2 * 4 * d * d * 2 * 2)              # bf16 weights (2 blocks), double-buffered
        if est <= vmem_budget:
            best = bt
    return best


@functools.partial(jax.jit, static_argnames=("num_heads",))
def duma_forward(qa_seq, p_seq, prep_qa, prep_p, *, num_heads):
    """qa_seq: (B, Sqa, D) f32, p_seq: (B, Sp, D) f32 -> (enc_output_qa, enc_output_p)."""
    B, Sqa, D = qa_seq.shape
    Sp = p_seq.shape[1]
    b_t = _pick_batch_tile(B, Sqa, Sp, D, num_heads)

    const = lambda b: (0, 0)
    # NOTE: the weight index_maps are constant, so Pallas only fetches them once;
    # on v7x (64 MiB VMEM) their double buffers could additionally be dropped via
    # pipeline_mode=pl.Buffered(1) (omitted here - irrelevant at these weight sizes).
    weight_specs = [
        pl.BlockSpec((D, D), const),          # wq^T (pre-scaled)
        pl.BlockSpec((D, 2 * D), const),      # wkv^T
        pl.BlockSpec((1, D), const),          # bq (pre-scaled)
        pl.BlockSpec((1, 2 * D), const),      # bkv
        pl.BlockSpec((D, D), const),          # wo^T
        pl.BlockSpec((1, D), const),          # bo
    ]

    grid_spec = pltpu.PrefetchScalarGridSpec(
        num_scalar_prefetch=0,
        grid=(B // b_t,),
        in_specs=[
            pl.BlockSpec((b_t, Sqa, D), lambda b: (b, 0, 0)),   # qa_seq tile
            pl.BlockSpec((b_t, Sp, D), lambda b: (b, 0, 0)),    # p_seq tile
            *weight_specs,                                      # attn_qa params
            *weight_specs,                                      # attn_p params
        ],
        out_specs=[
            pl.BlockSpec((b_t, Sp, D), lambda b: (b, 0, 0)),    # enc_output_qa
            pl.BlockSpec((b_t, Sqa, D), lambda b: (b, 0, 0)),   # enc_output_p
        ],
    )

    # Long sequences would need a flash-style KV-tile grid axis with an
    # online-softmax accumulator to keep the (n, Sq, Sk) scores out of VMEM.
    enc_qa, enc_p = pl.pallas_call(
        functools.partial(_duma_kernel, num_heads=num_heads),
        out_shape=(jax.ShapeDtypeStruct((B, Sp, D), qa_seq.dtype),
                   jax.ShapeDtypeStruct((B, Sqa, D), qa_seq.dtype)),
        grid_spec=grid_spec,
        compiler_params=pltpu.CompilerParams(
            dimension_semantics=("parallel",)),
    )(qa_seq, p_seq, *prep_qa, *prep_p)
    return enc_qa, enc_p


# ----------------------------------------------------------------------------
# DUMA layer: two cross-attention blocks with independent parameters.
# ----------------------------------------------------------------------------
class DUMALayerPallas:
    def __init__(self, d_model_size, num_heads, key):
        self.d = d_model_size
        self.h = num_heads
        ks = jax.random.split(key, 8)
        lim_in = math.sqrt(6.0 / (d_model_size + 3 * d_model_size))
        lim_out = math.sqrt(6.0 / (2 * d_model_size))

        def u(k, shape, lim):
            return jax.random.uniform(k, shape, jnp.float32, -lim, lim)

        # PyTorch layout: in_proj_weight (3D, D), in_proj_bias (3D,),
        #                 out_proj.weight (D, D), out_proj.bias (D,)
        self.params_qa = (
            u(ks[0], (3 * d_model_size, d_model_size), lim_in),
            u(ks[1], (3 * d_model_size,), 0.02),
            u(ks[2], (d_model_size, d_model_size), lim_out),
            u(ks[3], (d_model_size,), 0.02),
        )
        self.params_p = (
            u(ks[4], (3 * d_model_size, d_model_size), lim_in),
            u(ks[5], (3 * d_model_size,), 0.02),
            u(ks[6], (d_model_size, d_model_size), lim_out),
            u(ks[7], (d_model_size,), 0.02),
        )
        # Kernel-layout params prepared ONCE (transpose, scale fold, bf16 cast)
        # so no per-call weight transpose/cast XLA ops are emitted.
        self.prep_qa = _prep_params(*self.params_qa, num_heads)
        self.prep_p = _prep_params(*self.params_p, num_heads)

    def __call__(self, qa_seq, p_seq, qa_mask=None, p_mask=None):
        # Masks are accepted for API parity but (as in the PyTorch forward) unused.
        return duma_forward(qa_seq, p_seq, self.prep_qa, self.prep_p,
                            num_heads=self.h)


# ----------------------------------------------------------------------------
# Pure numpy reference (mirrors torch.nn.MultiheadAttention, dropout=0), f32.
# ----------------------------------------------------------------------------
def mha_ref_np(query, key_value, wqkv, bqkv, wo, bo, num_heads):
    q = np.asarray(query, np.float32)
    kv = np.asarray(key_value, np.float32)
    wqkv = np.asarray(wqkv, np.float32)
    bqkv = np.asarray(bqkv, np.float32)
    wo = np.asarray(wo, np.float32)
    bo = np.asarray(bo, np.float32)

    B, Sq, D = q.shape
    Sk = kv.shape[1]
    H = num_heads
    Dh = D // H
    wq, wk, wv = wqkv[:D], wqkv[D:2 * D], wqkv[2 * D:]
    bq, bk, bv = bqkv[:D], bqkv[D:2 * D], bqkv[2 * D:]

    Q = q @ wq.T + bq
    K = kv @ wk.T + bk
    V = kv @ wv.T + bv
    Qh = Q.reshape(B, Sq, H, Dh).transpose(0, 2, 1, 3)
    Kh = K.reshape(B, Sk, H, Dh).transpose(0, 2, 1, 3)
    Vh = V.reshape(B, Sk, H, Dh).transpose(0, 2, 1, 3)

    s = np.einsum('bhqd,bhkd->bhqk', Qh, Kh) / math.sqrt(Dh)
    s = s - s.max(axis=-1, keepdims=True)
    p = np.exp(s)
    p = p / p.sum(axis=-1, keepdims=True)
    o = np.einsum('bhqk,bhkd->bhqd', p, Vh)
    o = o.transpose(0, 2, 1, 3).reshape(B, Sq, D)
    return o @ wo.T + bo


if __name__ == "__main__":
    B, S_QA, S_P, D, H = 2, 8, 16, 32, 4

    root = jax.random.PRNGKey(0)
    k_qa, k_p, k_params = jax.random.split(root, 3)
    qa_seq = jax.random.normal(k_qa, (B, S_QA, D), jnp.float32)
    p_seq = jax.random.normal(k_p, (B, S_P, D), jnp.float32)

    layer = DUMALayerPallas(D, H, k_params)

    enc_qa, enc_p = layer(qa_seq, p_seq)
    enc_qa = jax.block_until_ready(enc_qa)
    enc_p = jax.block_until_ready(enc_p)

    assert enc_qa.shape == (B, S_P, D)
    assert enc_p.shape == (B, S_QA, D)

    # Verify against an f32 numpy reference of torch.nn.MultiheadAttention math.
    # Tolerance is relaxed because the kernel intentionally runs its matmuls with
    # bf16 operands (f32 accumulation, exact f32 softmax).
    ref_qa = mha_ref_np(p_seq, qa_seq, *layer.params_qa, H)
    ref_p = mha_ref_np(qa_seq, p_seq, *layer.params_p, H)
    np.testing.assert_allclose(np.asarray(enc_qa), ref_qa, rtol=5e-2, atol=5e-2)
    np.testing.assert_allclose(np.asarray(enc_p), ref_p, rtol=5e-2, atol=5e-2)

    print("KERNEL_OK")
</pallas_src>

<mosaic_0001>
module attributes {stable_mosaic.version = 11 : i64} {
  func.func @_duma_kernel(%arg0: i32, %arg1: memref<2x8x32xf32, #tpu.memory_space<vmem>>, %arg2: memref<2x16x32xf32, #tpu.memory_space<vmem>>, %arg3: memref<32x32xbf16, #tpu.memory_space<vmem>>, %arg4: memref<32x64xbf16, #tpu.memory_space<vmem>>, %arg5: memref<1x32xf32, #tpu.memory_space<vmem>>, %arg6: memref<1x64xf32, #tpu.memory_space<vmem>>, %arg7: memref<32x32xbf16, #tpu.memory_space<vmem>>, %arg8: memref<1x32xf32, #tpu.memory_space<vmem>>, %arg9: memref<32x32xbf16, #tpu.memory_space<vmem>>, %arg10: memref<32x64xbf16, #tpu.memory_space<vmem>>, %arg11: memref<1x32xf32, #tpu.memory_space<vmem>>, %arg12: memref<1x64xf32, #tpu.memory_space<vmem>>, %arg13: memref<32x32xbf16, #tpu.memory_space<vmem>>, %arg14: memref<1x32xf32, #tpu.memory_space<vmem>>, %arg15: memref<2x16x32xf32, #tpu.memory_space<vmem>>, %arg16: memref<2x8x32xf32, #tpu.memory_space<vmem>>) attributes {dimension_semantics = [#tpu.dimension_semantics<parallel>], iteration_bounds = array<i64: 1>, scalar_prefetch = 0 : i64, scratch_operands = 0 : i64, tpu.core_type = #tpu.core_type<tc>, window_params = [{transform_indices = @transform_0, window_bounds = array<i64: 2, 8, 32>}, {transform_indices = @transform_1, window_bounds = array<i64: 2, 16, 32>}, {pipeline_mode = #tpu.pipeline_mode<synchronous>, transform_indices = @transform_2, window_bounds = array<i64: 32, 32>}, {pipeline_mode = #tpu.pipeline_mode<synchronous>, transform_indices = @transform_3, window_bounds = array<i64: 32, 64>}, {pipeline_mode = #tpu.pipeline_mode<synchronous>, transform_indices = @transform_4, window_bounds = array<i64: 1, 32>}, {pipeline_mode = #tpu.pipeline_mode<synchronous>, transform_indices = @transform_5, window_bounds = array<i64: 1, 64>}, {pipeline_mode = #tpu.pipeline_mode<synchronous>, transform_indices = @transform_6, window_bounds = array<i64: 32, 32>}, {pipeline_mode = #tpu.pipeline_mode<synchronous>, transform_indices = @transform_7, window_bounds = array<i64: 1, 32>}, {pipeline_mode = #tpu.pipeline_mode<synchronous>, transform_indices = @transform_8, window_bounds = array<i64: 32, 32>}, {pipeline_mode = #tpu.pipeline_mode<synchronous>, transform_indices = @transform_9, window_bounds = array<i64: 32, 64>}, {pipeline_mode = #tpu.pipeline_mode<synchronous>, transform_indices = @transform_10, window_bounds = array<i64: 1, 32>}, {pipeline_mode = #tpu.pipeline_mode<synchronous>, transform_indices = @transform_11, window_bounds = array<i64: 1, 64>}, {pipeline_mode = #tpu.pipeline_mode<synchronous>, transform_indices = @transform_12, window_bounds = array<i64: 32, 32>}, {pipeline_mode = #tpu.pipeline_mode<synchronous>, transform_indices = @transform_13, window_bounds = array<i64: 1, 32>}, {transform_indices = @transform_14, window_bounds = array<i64: 2, 16, 32>}, {transform_indices = @transform_15, window_bounds = array<i64: 2, 8, 32>}]} {
    %c0 = arith.constant 0 : index
    %c0_0 = arith.constant 0 : index
    %c0_1 = arith.constant 0 : index
    %0 = vector.load %arg1[%c0, %c0_0, %c0_1] : memref<2x8x32xf32, #tpu.memory_space<vmem>>, vector<2x8x32xf32>
    %1 = vector.shape_cast %0 : vector<2x8x32xf32> to vector<16x32xf32>
    %2 = arith.truncf %1 : vector<16x32xf32> to vector<16x32xbf16>
    %c0_2 = arith.constant 0 : index
    %c0_3 = arith.constant 0 : index
    %c0_4 = arith.constant 0 : index
    %3 = vector.load %arg2[%c0_2, %c0_3, %c0_4] : memref<2x16x32xf32, #tpu.memory_space<vmem>>, vector<2x16x32xf32>
    %4 = vector.shape_cast %3 : vector<2x16x32xf32> to vector<32x32xf32>
    %5 = arith.truncf %4 : vector<32x32xf32> to vector<32x32xbf16>
    %c0_5 = arith.constant 0 : index
    %c0_6 = arith.constant 0 : index
    %6 = vector.load %arg3[%c0_5, %c0_6] : memref<32x32xbf16, #tpu.memory_space<vmem>>, vector<32x32xbf16>
    %cst = arith.constant dense<0.000000e+00> : vector<32x32xf32>
    %7 = tpu.matmul %5, %6, %cst {dimension_numbers = #tpu.dot_dimension_numbers<[1], [0], [0], [1], [0, 0, 1, 1], [], []>} : vector<32x32xbf16>, vector<32x32xbf16>, vector<32x32xf32> -> vector<32x32xf32>
    %c0_7 = arith.constant 0 : index
    %c0_8 = arith.constant 0 : index
    %8 = vector.load %arg5[%c0_7, %c0_8] : memref<1x32xf32, #tpu.memory_space<vmem>>, vector<1x32xf32>
    %9 = vector.broadcast %8 : vector<1x32xf32> to vector<32x32xf32>
    %10 = arith.addf %7, %9 : vector<32x32xf32>
    %c0_9 = arith.constant 0 : index
    %c0_10 = arith.constant 0 : index
    %11 = vector.load %arg4[%c0_9, %c0_10] : memref<32x64xbf16, #tpu.memory_space<vmem>>, vector<32x64xbf16>
    %cst_11 = arith.constant dense<0.000000e+00> : vector<16x64xf32>
    %12 = tpu.matmul %2, %11, %cst_11 {dimension_numbers = #tpu.dot_dimension_numbers<[1], [0], [0], [1], [0, 0, 1, 1], [], []>} : vector<16x32xbf16>, vector<32x64xbf16>, vector<16x64xf32> -> vector<16x64xf32>
    %c0_12 = arith.constant 0 : index
    %c0_13 = arith.constant 0 : index
    %13 = vector.load %arg6[%c0_12, %c0_13] : memref<1x64xf32, #tpu.memory_space<vmem>>, vector<1x64xf32>
    %14 = vector.broadcast %13 : vector<1x64xf32> to vector<16x64xf32>
    %15 = arith.addf %12, %14 : vector<16x64xf32>
    %16 = vector.shape_cast %10 : vector<32x32xf32> to vector<32x4x8xf32>
    %17 = tpu.transpose %16, [1, 0, 2] : vector<32x4x8xf32> -> vector<4x32x8xf32>
    %18 = vector.shape_cast %17 : vector<4x32x8xf32> to vector<8x16x8xf32>
    %19 = arith.truncf %18 : vector<8x16x8xf32> to vector<8x16x8xbf16>
    %20 = vector.extract_strided_slice %15 {offsets = [0, 0], sizes = [16, 32], strides = [1, 1]} : vector<16x64xf32> to vector<16x32xf32>
    %21 = vector.shape_cast %20 : vector<16x32xf32> to vector<16x4x8xf32>
    %22 = tpu.transpose %21, [1, 0, 2] : vector<16x4x8xf32> -> vector<4x16x8xf32>
    %23 = vector.shape_cast %22 : vector<4x16x8xf32> to vector<8x8x8xf32>
    %24 = arith.truncf %23 : vector<8x8x8xf32> to vector<8x8x8xbf16>
    %25 = vector.extract_strided_slice %15 {offsets = [0, 32], sizes = [16, 32], strides = [1, 1]} : vector<16x64xf32> to vector<16x32xf32>
    %26 = vector.shape_cast %25 : vector<16x32xf32> to vector<16x4x8xf32>
    %27 = tpu.transpose %26, [1, 0, 2] : vector<16x4x8xf32> -> vector<4x16x8xf32>
    %28 = vector.shape_cast %27 : vector<4x16x8xf32> to vector<8x8x8xf32>
    %29 = arith.truncf %28 : vector<8x8x8xf32> to vector<8x8x8xbf16>
    "tpu.trace_start"() <{level = 10 : i32, message = "nqd,nkd->nqk"}> : () -> ()
    %cst_14 = arith.constant dense<0.000000e+00> : vector<8x16x8xf32>
    %30 = tpu.matmul %19, %24, %cst_14 {dimension_numbers = #tpu.dot_dimension_numbers<[2], [2], [1], [1], [0, 0, 0, 1, 1, 1], [0], [0]>} : vector<8x16x8xbf16>, vector<8x8x8xbf16>, vector<8x16x8xf32> -> vector<8x16x8xf32>
    "tpu.trace_stop"() : () -> ()
    %cst_15 = arith.constant dense<0xFF800000> : vector<8x16xf32>
    %31 = vector.multi_reduction <maximumf>, %30, %cst_15 [2] : vector<8x16x8xf32> to vector<8x16xf32>
    %32 = vector.shape_cast %31 : vector<8x16xf32> to vector<8x16x1xf32>
    %33 = vector.broadcast %32 : vector<8x16x1xf32> to vector<8x16x8xf32>
    %34 = arith.subf %30, %33 : vector<8x16x8xf32>
    %35 = math.exp %34 : vector<8x16x8xf32>
    %cst_16 = arith.constant dense<0.000000e+00> : vector<8x16xf32>
    %36 = vector.multi_reduction <add>, %35, %cst_16 [2] : vector<8x16x8xf32> to vector<8x16xf32>
    %37 = vector.shape_cast %36 : vector<8x16xf32> to vector<8x16x1xf32>
    %38 = tpu.reciprocal %37 : vector<8x16x1xf32> -> vector<8x16x1xf32>
    %39 = vector.broadcast %38 : vector<8x16x1xf32> to vector<8x16x8xf32>
    %40 = arith.mulf %35, %39 : vector<8x16x8xf32>
    %41 = arith.truncf %40 : vector<8x16x8xf32> to vector<8x16x8xbf16>
    "tpu.trace_start"() <{level = 10 : i32, message = "nqk,nkd->nqd"}> : () -> ()
    %cst_17 = arith.constant dense<0.000000e+00> : vector<8x16x8xf32>
    %42 = tpu.matmul %41, %29, %cst_17 {dimension_numbers = #tpu.dot_dimension_numbers<[2], [1], [1], [2], [0, 0, 0, 1, 1, 2], [0], [0]>} : vector<8x16x8xbf16>, vector<8x8x8xbf16>, vector<8x16x8xf32> -> vector<8x16x8xf32>
    "tpu.trace_stop"() : () -> ()
    %43 = vector.shape_cast %42 : vector<8x16x8xf32> to vector<4x32x8xf32>
    %44 = tpu.transpose %43, [1, 0, 2] : vector<4x32x8xf32> -> vector<32x4x8xf32>
    %45 = vector.shape_cast %44 : vector<32x4x8xf32> to vector<32x32xf32>
    %46 = arith.truncf %45 : vector<32x32xf32> to vector<32x32xbf16>
    %c0_18 = arith.constant 0 : index
    %c0_19 = arith.constant 0 : index
    %47 = vector.load %arg7[%c0_18, %c0_19] : memref<32x32xbf16, #tpu.memory_space<vmem>>, vector<32x32xbf16>
    %cst_20 = arith.constant dense<0.000000e+00> : vector<32x32xf32>
    %48 = tpu.matmul %46, %47, %cst_20 {dimension_numbers = #tpu.dot_dimension_numbers<[1], [0], [0], [1], [0, 0, 1, 1], [], []>} : vector<32x32xbf16>, vector<32x32xbf16>, vector<32x32xf32> -> vector<32x32xf32>
    %c0_21 = arith.constant 0 : index
    %c0_22 = arith.constant 0 : index
    %49 = vector.load %arg8[%c0_21, %c0_22] : memref<1x32xf32, #tpu.memory_space<vmem>>, vector<1x32xf32>
    %50 = vector.broadcast %49 : vector<1x32xf32> to vector<32x32xf32>
    %51 = arith.addf %48, %50 : vector<32x32xf32>
    %52 = vector.shape_cast %51 : vector<32x32xf32> to vector<2x16x32xf32>
    %c0_23 = arith.constant 0 : index
    %c0_24 = arith.constant 0 : index
    %c0_25 = arith.constant 0 : index
    %53 = vector.load %arg15[%c0_23, %c0_24, %c0_25] : memref<2x16x32xf32, #tpu.memory_space<vmem>>, vector<2x16x32xf32>
    tpu.vector_store %arg15[%c0_23, %c0_24, %c0_25], %52 {strides = array<i32>} : memref<2x16x32xf32, #tpu.memory_space<vmem>>, vector<2x16x32xf32>,
    %c0_26 = arith.constant 0 : index
    %c0_27 = arith.constant 0 : index
    %54 = vector.load %arg9[%c0_26, %c0_27] : memref<32x32xbf16, #tpu.memory_space<vmem>>, vector<32x32xbf16>
    %cst_28 = arith.constant dense<0.000000e+00> : vector<16x32xf32>
    %55 = tpu.matmul %2, %54, %cst_28 {dimension_numbers = #tpu.dot_dimension_numbers<[1], [0], [0], [1], [0, 0, 1, 1], [], []>} : vector<16x32xbf16>, vector<32x32xbf16>, vector<16x32xf32> -> vector<16x32xf32>
    %c0_29 = arith.constant 0 : index
    %c0_30 = arith.constant 0 : index
    %56 = vector.load %arg11[%c0_29, %c0_30] : memref<1x32xf32, #tpu.memory_space<vmem>>, vector<1x32xf32>
    %57 = vector.broadcast %56 : vector<1x32xf32> to vector<16x32xf32>
    %58 = arith.addf %55, %57 : vector<16x32xf32>
    %c0_31 = arith.constant 0 : index
    %c0_32 = arith.constant 0 : index
    %59 = vector.load %arg10[%c0_31, %c0_32] : memref<32x64xbf16, #tpu.memory_space<vmem>>, vector<32x64xbf16>
    %cst_33 = arith.constant dense<0.000000e+00> : vector<32x64xf32>
    %60 = tpu.matmul %5, %59, %cst_33 {dimension_numbers = #tpu.dot_dimension_numbers<[1], [0], [0], [1], [0, 0, 1, 1], [], []>} : vector<32x32xbf16>, vector<32x64xbf16>, vector<32x64xf32> -> vector<32x64xf32>
    %c0_34 = arith.constant 0 : index
    %c0_35 = arith.constant 0 : index
    %61 = vector.load %arg12[%c0_34, %c0_35] : memref<1x64xf32, #tpu.memory_space<vmem>>, vector<1x64xf32>
    %62 = vector.broadcast %61 : vector<1x64xf32> to vector<32x64xf32>
    %63 = arith.addf %60, %62 : vector<32x64xf32>
    %64 = vector.shape_cast %58 : vector<16x32xf32> to vector<16x4x8xf32>
    %65 = tpu.transpose %64, [1, 0, 2] : vector<16x4x8xf32> -> vector<4x16x8xf32>
    %66 = vector.shape_cast %65 : vector<4x16x8xf32> to vector<8x8x8xf32>
    %67 = arith.truncf %66 : vector<8x8x8xf32> to vector<8x8x8xbf16>
    %68 = vector.extract_strided_slice %63 {offsets = [0, 0], sizes = [32, 32], strides = [1, 1]} : vector<32x64xf32> to vector<32x32xf32>
    %69 = vector.shape_cast %68 : vector<32x32xf32> to vector<32x4x8xf32>
    %70 = tpu.transpose %69, [1, 0, 2] : vector<32x4x8xf32> -> vector<4x32x8xf32>
    %71 = vector.shape_cast %70 : vector<4x32x8xf32> to vector<8x16x8xf32>
    %72 = arith.truncf %71 : vector<8x16x8xf32> to vector<8x16x8xbf16>
    %73 = vector.extract_strided_slice %63 {offsets = [0, 32], sizes = [32, 32], strides = [1, 1]} : vector<32x64xf32> to vector<32x32xf32>
    %74 = vector.shape_cast %73 : vector<32x32xf32> to vector<32x4x8xf32>
    %75 = tpu.transpose %74, [1, 0, 2] : vector<32x4x8xf32> -> vector<4x32x8xf32>
    %76 = vector.shape_cast %75 : vector<4x32x8xf32> to vector<8x16x8xf32>
    %77 = arith.truncf %76 : vector<8x16x8xf32> to vector<8x16x8xbf16>
    "tpu.trace_start"() <{level = 10 : i32, message = "nqd,nkd->nqk"}> : () -> ()
    %cst_36 = arith.constant dense<0.000000e+00> : vector<8x8x16xf32>
    %78 = tpu.matmul %67, %72, %cst_36 {dimension_numbers = #tpu.dot_dimension_numbers<[2], [2], [1], [1], [0, 0, 0, 1, 1, 1], [0], [0]>} : vector<8x8x8xbf16>, vector<8x16x8xbf16>, vector<8x8x16xf32> -> vector<8x8x16xf32>
    "tpu.trace_stop"() : () -> ()
    %cst_37 = arith.constant dense<0xFF800000> : vector<8x8xf32>
    %79 = vector.multi_reduction <maximumf>, %78, %cst_37 [2] : vector<8x8x16xf32> to vector<8x8xf32>
    %80 = vector.shape_cast %79 : vector<8x8xf32> to vector<8x8x1xf32>
    %81 = vector.broadcast %80 : vector<8x8x1xf32> to vector<8x8x16xf32>
    %82 = arith.subf %78, %81 : vector<8x8x16xf32>
    %83 = math.exp %82 : vector<8x8x16xf32>
    %cst_38 = arith.constant dense<0.000000e+00> : vector<8x8xf32>
    %84 = vector.multi_reduction <add>, %83, %cst_38 [2] : vector<8x8x16xf32> to vector<8x8xf32>
    %85 = vector.shape_cast %84 : vector<8x8xf32> to vector<8x8x1xf32>
    %86 = tpu.reciprocal %85 : vector<8x8x1xf32> -> vector<8x8x1xf32>
    %87 = vector.broadcast %86 : vector<8x8x1xf32> to vector<8x8x16xf32>
    %88 = arith.mulf %83, %87 : vector<8x8x16xf32>
    %89 = arith.truncf %88 : vector<8x8x16xf32> to vector<8x8x16xbf16>
    "tpu.trace_start"() <{level = 10 : i32, message = "nqk,nkd->nqd"}> : () -> ()
    %cst_39 = arith.constant dense<0.000000e+00> : vector<8x8x8xf32>
    %90 = tpu.matmul %89, %77, %cst_39 {dimension_numbers = #tpu.dot_dimension_numbers<[2], [1], [1], [2], [0, 0, 0, 1, 1, 2], [0], [0]>} : vector<8x8x16xbf16>, vector<8x16x8xbf16>, vector<8x8x8xf32> -> vector<8x8x8xf32>
    "tpu.trace_stop"() : () -> ()
    %91 = vector.shape_cast %90 : vector<8x8x8xf32> to vector<4x16x8xf32>
    %92 = tpu.transpose %91, [1, 0, 2] : vector<4x16x8xf32> -> vector<16x4x8xf32>
    %93 = vector.shape_cast %92 : vector<16x4x8xf32> to vector<16x32xf32>
    %94 = arith.truncf %93 : vector<16x32xf32> to vector<16x32xbf16>
    %c0_40 = arith.constant 0 : index
    %c0_41 = arith.constant 0 : index
    %95 = vector.load %arg13[%c0_40, %c0_41] : memref<32x32xbf16, #tpu.memory_space<vmem>>, vector<32x32xbf16>
    %cst_42 = arith.constant dense<0.000000e+00> : vector<16x32xf32>
    %96 = tpu.matmul %94, %95, %cst_42 {dimension_numbers = #tpu.dot_dimension_numbers<[1], [0], [0], [1], [0, 0, 1, 1], [], []>} : vector<16x32xbf16>, vector<32x32xbf16>, vector<16x32xf32> -> vector<16x32xf32>
    %c0_43 = arith.constant 0 : index
    %c0_44 = arith.constant 0 : index
    %97 = vector.load %arg14[%c0_43, %c0_44] : memref<1x32xf32, #tpu.memory_space<vmem>>, vector<1x32xf32>
    %98 = vector.broadcast %97 : vector<1x32xf32> to vector<16x32xf32>
    %99 = arith.addf %96, %98 : vector<16x32xf32>
    %100 = vector.shape_cast %99 : vector<16x32xf32> to vector<2x8x32xf32>
    %c0_45 = arith.constant 0 : index
    %c0_46 = arith.constant 0 : index
    %c0_47 = arith.constant 0 : index
    %101 = vector.load %arg16[%c0_45, %c0_46, %c0_47] : memref<2x8x32xf32, #tpu.memory_space<vmem>>, vector<2x8x32xf32>
    tpu.vector_store %arg16[%c0_45, %c0_46, %c0_47], %100 {strides = array<i32>} : memref<2x8x32xf32, #tpu.memory_space<vmem>>, vector<2x8x32xf32>,
    return
  }
  func.func @transform_0(%arg0: i32) -> (i32, i32, i32) {
    %c0_i32 = arith.constant 0 : i32
    %c0_i32_0 = arith.constant 0 : i32
    %c0_i32_1 = arith.constant 0 : i32
    return %arg0, %c0_i32, %c0_i32_0 : i32, i32, i32
  }
  func.func @transform_1(%arg0: i32) -> (i32, i32, i32) {
    %c0_i32 = arith.constant 0 : i32
    %c0_i32_0 = arith.constant 0 : i32
    %c0_i32_1 = arith.constant 0 : i32
    return %arg0, %c0_i32, %c0_i32_0 : i32, i32, i32
  }
  func.func @transform_2(%arg0: i32) -> (i32, i32) {
    %c0_i32 = arith.constant 0 : i32
    %c0_i32_0 = arith.constant 0 : i32
    %c0_i32_1 = arith.constant 0 : i32
    return %c0_i32, %c0_i32_0 : i32, i32
  }
  func.func @transform_3(%arg0: i32) -> (i32, i32) {
    %c0_i32 = arith.constant 0 : i32
    %c0_i32_0 = arith.constant 0 : i32
    %c0_i32_1 = arith.constant 0 : i32
    return %c0_i32, %c0_i32_0 : i32, i32
  }
  func.func @transform_4(%arg0: i32) -> (i32, i32) {
    %c0_i32 = arith.constant 0 : i32
    %c0_i32_0 = arith.constant 0 : i32
    %c0_i32_1 = arith.constant 0 : i32
    return %c0_i32, %c0_i32_0 : i32, i32
  }
  func.func @transform_5(%arg0: i32) -> (i32, i32) {
    %c0_i32 = arith.constant 0 : i32
    %c0_i32_0 = arith.constant 0 : i32
    %c0_i32_1 = arith.constant 0 : i32
    return %c0_i32, %c0_i32_0 : i32, i32
  }
  func.func @transform_6(%arg0: i32) -> (i32, i32) {
    %c0_i32 = arith.constant 0 : i32
    %c0_i32_0 = arith.constant 0 : i32
    %c0_i32_1 = arith.constant 0 : i32
    return %c0_i32, %c0_i32_0 : i32, i32
  }
  func.func @transform_7(%arg0: i32) -> (i32, i32) {
    %c0_i32 = arith.constant 0 : i32
    %c0_i32_0 = arith.constant 0 : i32
    %c0_i32_1 = arith.constant 0 : i32
    return %c0_i32, %c0_i32_0 : i32, i32
  }
  func.func @transform_8(%arg0: i32) -> (i32, i32) {
    %c0_i32 = arith.constant 0 : i32
    %c0_i32_0 = arith.constant 0 : i32
    %c0_i32_1 = arith.constant 0 : i32
    return %c0_i32, %c0_i32_0 : i32, i32
  }
  func.func @transform_9(%arg0: i32) -> (i32, i32) {
    %c0_i32 = arith.constant 0 : i32
    %c0_i32_0 = arith.constant 0 : i32
    %c0_i32_1 = arith.constant 0 : i32
    return %c0_i32, %c0_i32_0 : i32, i32
  }
  func.func @transform_10(%arg0: i32) -> (i32, i32) {
    %c0_i32 = arith.constant 0 : i32
    %c0_i32_0 = arith.constant 0 : i32
    %c0_i32_1 = arith.constant 0 : i32
    return %c0_i32, %c0_i32_0 : i32, i32
  }
  func.func @transform_11(%arg0: i32) -> (i32, i32) {
    %c0_i32 = arith.constant 0 : i32
    %c0_i32_0 = arith.constant 0 : i32
    %c0_i32_1 = arith.constant 0 : i32
    return %c0_i32, %c0_i32_0 : i32, i32
  }
  func.func @transform_12(%arg0: i32) -> (i32, i32) {
    %c0_i32 = arith.constant 0 : i32
    %c0_i32_0 = arith.constant 0 : i32
    %c0_i32_1 = arith.constant 0 : i32
    return %c0_i32, %c0_i32_0 : i32, i32
  }
  func.func @transform_13(%arg0: i32) -> (i32, i32) {
    %c0_i32 = arith.constant 0 : i32
    %c0_i32_0 = arith.constant 0 : i32
    %c0_i32_1 = arith.constant 0 : i32
    return %c0_i32, %c0_i32_0 : i32, i32
  }
  func.func @transform_14(%arg0: i32) -> (i32, i32, i32) {
    %c0_i32 = arith.constant 0 : i32
    %c0_i32_0 = arith.constant 0 : i32
    %c0_i32_1 = arith.constant 0 : i32
    return %arg0, %c0_i32, %c0_i32_0 : i32, i32, i32
  }
  func.func @transform_15(%arg0: i32) -> (i32, i32, i32) {
    %c0_i32 = arith.constant 0 : i32
    %c0_i32_0 = arith.constant 0 : i32
    %c0_i32_1 = arith.constant 0 : i32
    return %arg0, %c0_i32, %c0_i32_0 : i32, i32, i32
  }
}

</mosaic_0001>

<llo_original>
// kernel: duma_forward.1
$region0: #{duma_forward.1}
  #allocation0 [shape = 'u32[]', space=smem, size = 0x4, offset = 0x4, fixed_abs, tag = 'smem constant byte address 0x4 - core index']
  #allocation1 [shape = 'u32[144,128]{1,0:T(1,128)}', space=vmem, size = 0x12000, scoped, tag = 'internal scratch']
  %s0 = inlined_call_operand.hbm [shape: f32[2,8,32], index: 0, kind: input, shape index: {}]
  %s1 = inlined_call_operand.hbm [shape: f32[2,16,32], index: 1, kind: input, shape index: {}]
  %s2 = inlined_call_operand.hbm [shape: bf16[32,32], index: 2, kind: input, shape index: {}]
  %s3 = inlined_call_operand.hbm [shape: bf16[32,64], index: 3, kind: input, shape index: {}]
  %s4 = inlined_call_operand.vmem [shape: f32[1,32], index: 4, kind: input, shape index: {}]
  %s5 = inlined_call_operand.vmem [shape: f32[1,64], index: 5, kind: input, shape index: {}]
  %s6 = inlined_call_operand.vmem [shape: bf16[32,32], index: 6, kind: input, shape index: {}]
  %s7 = inlined_call_operand.hbm [shape: f32[1,32], index: 7, kind: input, shape index: {}]
  %s8 = inlined_call_operand.hbm [shape: bf16[32,32], index: 8, kind: input, shape index: {}]
  %s9 = inlined_call_operand.vmem [shape: bf16[32,64], index: 9, kind: input, shape index: {}]
  %s10 = inlined_call_operand.vmem [shape: f32[1,32], index: 10, kind: input, shape index: {}]
  %s11 = inlined_call_operand.vmem [shape: f32[1,64], index: 11, kind: input, shape index: {}]
  %s12 = inlined_call_operand.hbm [shape: bf16[32,32], index: 12, kind: input, shape index: {}]
  %s13 = inlined_call_operand.vmem [shape: f32[1,32], index: 13, kind: input, shape index: {}]
  %s14 = inlined_call_operand.hbm [shape: f32[2,16,32], index: 14, kind: output, shape index: {0}]
  %s15 = inlined_call_operand.hbm [shape: f32[2,8,32], index: 15, kind: output, shape index: {1}]
  %16 = xla_tuple %s14, %s15
  %s17 = sld [smem:[#allocation0]]
  $region102: #{duma_forward.1} parent=0
    _
  %s19 = ssub.s32 1, %s17
  %s20 = scalar_select 0, %s19, %s17
  $region1: #{duma_forward.1} parent=0
    #allocation2 [shape = 'u8[8192]{0}', space=vmem, size = 0x2000, scoped, tag = 'input window, operand 0, single buffered']
    #allocation3 [shape = 's32[1]{0}', space=sflag, size = 0x4, scoped, tag = 'scoped memory for duma_forward.1']
    #allocation4 [shape = 's32[1]{0}', space=sflag, size = 0x4, scoped, tag = 'scoped memory for duma_forward.1']
    #allocation5 [shape = 'u8[16384]{0}', space=vmem, size = 0x4000, scoped, tag = 'input window, operand 1, single buffered']
    #allocation6 [shape = 's32[1]{0}', space=sflag, size = 0x4, scoped, tag = 'scoped memory for duma_forward.1']
    #allocation7 [shape = 'u8[8192]{0}', space=vmem, size = 0x2000, scoped, tag = 'input window, operand 2, single buffered']
    #allocation8 [shape = 'u8[8192]{0}', space=vmem, size = 0x2000, scoped, tag = 'input window, operand 3, single buffered']
    #allocation9 [shape = 's32[1]{0}', space=sflag, size = 0x4, scoped, tag = 'scoped memory for duma_forward.1']
    #allocation10 [shape = 'u8[512]{0}', space=vmem, size = 0x400, scoped, tag = 'input window, operand 7, single buffered']
    #allocation11 [shape = 'u8[8192]{0}', space=vmem, size = 0x2000, scoped, tag = 'input window, operand 8, single buffered']
    #allocation12 [shape = 's32[1]{0}', space=sflag, size = 0x4, scoped, tag = 'scoped memory for duma_forward.1']
    #allocation13 [shape = 'u8[8192]{0}', space=vmem, size = 0x2000, scoped, tag = 'input window, operand 12, single buffered']
    #allocation14 [shape = 'u8[16384]{0}', space=vmem, size = 0x4000, scoped, tag = 'output window, operand 0, single buffered']
    #allocation15 [shape = 'u8[8192]{0}', space=vmem, size = 0x2000, scoped, tag = 'output window, operand 1, single buffered']
    #allocation16 [shape = 's32[1]{0}', space=sflag, size = 0x4, scoped, tag = 'scoped memory for duma_forward.1']
    %21 = vsyncpa [#allocation3], 0
    %22 = vsyncpa [#allocation6], 0
    %23 = vsyncpa [#allocation9], 0
    %24 = vsyncpa [#allocation12], 0
    %25 = vsyncpa [#allocation4], 0
    %26 = vsyncpa [#allocation16], 0
    // Predicated region
    $region2: #{duma_forward.1} parent=1 // pred_check
      _
    $region3: #{duma_forward.1} parent=1 // pred_check_branch
      %28 = sbr.rel (0) target = $region5
    $region4: #{duma_forward.1} parent=1 // pred_region
      %s30 = ssub.s32 256, 256
      %31 = vsyncadd [#allocation3], %s30
      %s32 = sshll.u32 [#allocation2], 4
      %s33 = int_to_ptr.vmem [resolvable:$true] %s32
      %38 = dma.hbm_to_vmem [thread:$0]  %s0, 256, %s33, [#allocation3], 128, 128, 8
    $region5: #{duma_forward.1} parent=1 // pred_fallthru
      _
    // Predicated region
    $region6: #{duma_forward.1} parent=1 // pred_check
      _
    $region7: #{duma_forward.1} parent=1 // pred_check_branch
      %40 = sbr.rel (0) target = $region9
    $region8: #{duma_forward.1} parent=1 // pred_region
      %s42 = ssub.s32 512, 512
      %43 = vsyncadd [#allocation6], %s42
      %s44 = sshll.u32 [#allocation5], 4
      %s45 = int_to_ptr.vmem [resolvable:$true] %s44
      %50 = dma.hbm_to_vmem [thread:$0]  %s1, 512, %s45, [#allocation6], 128, 128, 8
    $region9: #{duma_forward.1} parent=1 // pred_fallthru
      _
    // Predicated region
    $region10: #{duma_forward.1} parent=1 // pred_check
      _
    $region11: #{duma_forward.1} parent=1 // pred_check_branch
      %52 = sbr.rel (0) target = $region13
    $region12: #{duma_forward.1} parent=1 // pred_region
      %s54 = ssub.s32 256, 256
      %55 = vsyncadd [#allocation6], %s54
      %s56 = sshll.u32 [#allocation7], 4
      %s57 = int_to_ptr.vmem [resolvable:$true] %s56
      %62 = dma.hbm_to_vmem [thread:$0]  %s2, 256, %s57, [#allocation6], 64, 64, 4
    $region13: #{duma_forward.1} parent=1 // pred_fallthru
      _
    // Predicated region
    $region14: #{duma_forward.1} parent=1 // pred_check
      _
    $region15: #{duma_forward.1} parent=1 // pred_check_branch
      %64 = sbr.rel (0) target = $region17
    $region16: #{duma_forward.1} parent=1 // pred_region
      %s66 = ssub.s32 256, 256
      %67 = vsyncadd [#allocation9], %s66
      %s68 = sshll.u32 [#allocation8], 4
      %s69 = int_to_ptr.vmem [resolvable:$true] %s68
      %74 = dma.hbm_to_vmem [thread:$0]  %s3, 256, %s69, [#allocation9], 64, 64, 4
    $region17: #{duma_forward.1} parent=1 // pred_fallthru
      _
    // Predicated region
    $region18: #{duma_forward.1} parent=1 // pred_check
      _
    $region19: #{duma_forward.1} parent=1 // pred_check_branch
      %76 = sbr.rel (0) target = $region21
    $region20: #{duma_forward.1} parent=1 // pred_region
      _
    $region21: #{duma_forward.1} parent=1 // pred_fallthru
      _
    // Predicated region
    $region22: #{duma_forward.1} parent=1 // pred_check
      _
    $region23: #{duma_forward.1} parent=1 // pred_check_branch
      %78 = sbr.rel (0) target = $region25
    $region24: #{duma_forward.1} parent=1 // pred_region
      _
    $region25: #{duma_forward.1} parent=1 // pred_fallthru
      _
    // Predicated region
    $region26: #{duma_forward.1} parent=1 // pred_check
      _
    $region27: #{duma_forward.1} parent=1 // pred_check_branch
      %80 = sbr.rel (0) target = $region29
    $region28: #{duma_forward.1} parent=1 // pred_region
      _
    $region29: #{duma_forward.1} parent=1 // pred_fallthru
      _
    // Predicated region
    $region30: #{duma_forward.1} parent=1 // pred_check
      _
    $region31: #{duma_forward.1} parent=1 // pred_check_branch
      %82 = sbr.rel (0) target = $region33
    $region32: #{duma_forward.1} parent=1 // pred_region
      %s84 = ssub.s32 16, 16
      %85 = vsyncadd [#allocation9], %s84
      %s87 = sshll.u32 [#allocation10], 4
      %s88 = int_to_ptr.vmem [resolvable:$true] %s87
      %90 = dma.hbm_to_vmem [thread:$0]  %s7, 16, %s88, [#allocation9]
    $region33: #{duma_forward.1} parent=1 // pred_fallthru
      _
    // Predicated region
    $region34: #{duma_forward.1} parent=1 // pred_check
      _
    $region35: #{duma_forward.1} parent=1 // pred_check_branch
      %92 = sbr.rel (0) target = $region37
    $region36: #{duma_forward.1} parent=1 // pred_region
      %s94 = ssub.s32 256, 256
      %95 = vsyncadd [#allocation12], %s94
      %s96 = sshll.u32 [#allocation11], 4
      %s97 = int_to_ptr.vmem [resolvable:$true] %s96
      %102 = dma.hbm_to_vmem [thread:$0]  %s8, 256, %s97, [#allocation12], 64, 64, 4
    $region37: #{duma_forward.1} parent=1 // pred_fallthru
      _
    // Predicated region
    $region38: #{duma_forward.1} parent=1 // pred_check
      _
    $region39: #{duma_forward.1} parent=1 // pred_check_branch
      %104 = sbr.rel (0) target = $region41
    $region40: #{duma_forward.1} parent=1 // pred_region
      _
    $region41: #{duma_forward.1} parent=1 // pred_fallthru
      _
    // Predicated region
    $region42: #{duma_forward.1} parent=1 // pred_check
      _
    $region43: #{duma_forward.1} parent=1 // pred_check_branch
      %106 = sbr.rel (0) target = $region45
    $region44: #{duma_forward.1} parent=1 // pred_region
      _
    $region45: #{duma_forward.1} parent=1 // pred_fallthru
      _
    // Predicated region
    $region46: #{duma_forward.1} parent=1 // pred_check
      _
    $region47: #{duma_forward.1} parent=1 // pred_check_branch
      %108 = sbr.rel (0) target = $region49
    $region48: #{duma_forward.1} parent=1 // pred_region
      _
    $region49: #{duma_forward.1} parent=1 // pred_fallthru
      _
    // Predicated region
    $region50: #{duma_forward.1} parent=1 // pred_check
      _
    $region51: #{duma_forward.1} parent=1 // pred_check_branch
      %110 = sbr.rel (0) target = $region53
    $region52: #{duma_forward.1} parent=1 // pred_region
      %s112 = ssub.s32 256, 256
      %113 = vsyncadd [#allocation12], %s112
      %s114 = sshll.u32 [#allocation13], 4
      %s115 = int_to_ptr.vmem [resolvable:$true] %s114
      %120 = dma.hbm_to_vmem [thread:$0]  %s12, 256, %s115, [#allocation12], 64, 64, 4
    $region53: #{duma_forward.1} parent=1 // pred_fallthru
      _
    // Predicated region
    $region54: #{duma_forward.1} parent=1 // pred_check
      _
    $region55: #{duma_forward.1} parent=1 // pred_check_branch
      %122 = sbr.rel (0) target = $region57
    $region56: #{duma_forward.1} parent=1 // pred_region
      _
    $region57: #{duma_forward.1} parent=1 // pred_fallthru
      _
    // Predicated region
    $region58: #{duma_forward.1} parent=1 // pred_check
      _
    $region59: #{duma_forward.1} parent=1 // pred_check_branch
      %124 = sbr.rel (0) target = $region61
    $region60: #{duma_forward.1} parent=1 // pred_region
      %125 = dma.done [#allocation3], 256
    $region61: #{duma_forward.1} parent=1 // pred_fallthru
      _
    // Predicated region
    $region62: #{duma_forward.1} parent=1 // pred_check
      _
    $region63: #{duma_forward.1} parent=1 // pred_check_branch
      %127 = sbr.rel (0) target = $region65
    $region64: #{duma_forward.1} parent=1 // pred_region
      %128 = dma.done [#allocation6], 512
    $region65: #{duma_forward.1} parent=1 // pred_fallthru
      _
    // Predicated region
    $region66: #{duma_forward.1} parent=1 // pred_check
      _
    $region67: #{duma_forward.1} parent=1 // pred_check_branch
      %130 = sbr.rel (0) target = $region69
    $region68: #{duma_forward.1} parent=1 // pred_region
      %131 = dma.done [#allocation6], 256
    $region69: #{duma_forward.1} parent=1 // pred_fallthru
      _
    // Predicated region
    $region70: #{duma_forward.1} parent=1 // pred_check
      _
    $region71: #{duma_forward.1} parent=1 // pred_check_branch
      %133 = sbr.rel (0) target = $region73
    $region72: #{duma_forward.1} parent=1 // pred_region
      %134 = dma.done [#allocation9], 256
    $region73: #{duma_forward.1} parent=1 // pred_fallthru
      _
    // Predicated region
    $region74: #{duma_forward.1} parent=1 // pred_check
      _
    $region75: #{duma_forward.1} parent=1 // pred_check_branch
      %136 = sbr.rel (0) target = $region77
    $region76: #{duma_forward.1} parent=1 // pred_region
      %137 = dma.done [#allocation9], 16
    $region77: #{duma_forward.1} parent=1 // pred_fallthru
      _
    // Predicated region
    $region78: #{duma_forward.1} parent=1 // pred_check
      _
    $region79: #{duma_forward.1} parent=1 // pred_check_branch
      %139 = sbr.rel (0) target = $region81
    $region80: #{duma_forward.1} parent=1 // pred_region
      %140 = dma.done [#allocation12], 256
    $region81: #{duma_forward.1} parent=1 // pred_fallthru
      _
    // Predicated region
    $region82: #{duma_forward.1} parent=1 // pred_check
      _
    $region83: #{duma_forward.1} parent=1 // pred_check_branch
      %142 = sbr.rel (0) target = $region85
    $region84: #{duma_forward.1} parent=1 // pred_region
      %143 = dma.done [#allocation12], 256
    $region85: #{duma_forward.1} parent=1 // pred_fallthru
      _
    %v145 = vld [vmem:[#allocation2] sm:$0xff]
    %v146 = vld [vmem:[#allocation2 + $0x8] sm:$0xff]
    %v147 = vpack.c.bf16 %v146, %v145
    %v148 = vld [vmem:[#allocation5] sm:$0xff]
    %v149 = vld [vmem:[#allocation5 + $0x8] sm:$0xff]
    %v150 = vld [vmem:[#allocation5 + $0x10] sm:$0xff]
    %v151 = vld [vmem:[#allocation5 + $0x18] sm:$0xff]
    %v152 = vpack.c.bf16 %v149, %v148
    %v153 = vpack.c.bf16 %v151, %v150
    %v154 = vld [vmem:[#allocation7] sm:$0xf]
    %v155 = vld [vmem:[#allocation7 + $0x4] sm:$0xf]
    %v156 = vld [vmem:[#allocation7 + $0x8] sm:$0xf]
    %v157 = vld [vmem:[#allocation7 + $0xc] sm:$0xf]
    %v158 = vld [vmem:[%s4] sm:$0x1]
    %v160 = vlaneseq
    %v161 = vshrl.u32 %v160, 7
    %v162 = vsub.s32 0, %v161
    %v163 = vrot.slane %v158, %v162
    %v169 = vunpack.c.l.b16 %v154
    %v170 = vunpack.c.l.b16 %v155
    %v171 = vunpack.c.l.b16 %v156
    %v172 = vunpack.c.l.b16 %v157
    %v173 = vpack.c.b16 %v170, %v169
    %v174 = vpack.c.b16 %v172, %v171
    %vm177 = vcmask 261120
    %v179 = vsel %vm177, %v152, 0
    %v182 = vsel %vm177, %v153, 0
    %184 = vmatprep.subr.bf16.mxu0 0
    %185 = vmatpush1.bf16.msra.mxu0 %v173
    %186 = vmatprep.subr.bf16.mxu0 0
    %187 = vmatpush1.bf16.msra.mxu0 %v174
    %188 = vmatprep.subr.bf16.mxu0 0
    %189 = vmatpush1.bf16.msra.mxu0 0
    %190 = vmatprep.subr.bf16.mxu0 0
    %191 = vmatpush1.bf16.msra.mxu0 0
    %192 = vmatprep.subr.bf16.mxu0 0
    %193 = vmatpush1.bf16.msra.mxu0 0
    %194 = vmatprep.subr.bf16.mxu0 0
    %195 = vmatpush1.bf16.msra.mxu0 0
    %196 = vmatprep.subr.bf16.mxu0 0
    %197 = vmatpush1.bf16.msra.mxu0 0
    %198 = vmatprep.subr.bf16.mxu0 0
    %199 = vmatpush1.bf16.msra.mxu0 0
    %200 = vmatprep.subr.bf16.mxu0 0
    %201 = vmatpush1.bf16.msra.mxu0 0
    %202 = vmatprep.subr.bf16.mxu0 0
    %203 = vmatpush1.bf16.msra.mxu0 0
    %204 = vmatprep.subr.bf16.mxu0 0
    %205 = vmatpush1.bf16.msra.mxu0 0
    %206 = vmatprep.subr.bf16.mxu0 0
    %207 = vmatpush1.bf16.msra.mxu0 0
    %208 = vmatprep.subr.bf16.mxu0 0
    %209 = vmatpush1.bf16.msra.mxu0 0
    %210 = vmatprep.subr.bf16.mxu0 0
    %211 = vmatpush1.bf16.msra.mxu0 0
    %212 = vmatprep.subr.bf16.mxu0 0
    %213 = vmatpush1.bf16.msra.mxu0 0
    %214 = vmatprep.subr.bf16.mxu0 0
    %215 = vmatpush1.bf16.msra.mxu0 0
    %216 = vmatprep.mubr.bf16.mxu0 0
    %217 = vmatmul.mubr.bf16.gmra.mrb[0].mxu0 %v179
    %v218 = vpop.f32.mrb[0].mxu0
    %v219 = vadd.f32 %v163, %v218
    %v220 = vpop.f32.mrb[0].mxu0
    %v221 = vpop.f32.mrb[0].mxu0
    %v222 = vadd.f32 %v163, %v221
    %v223 = vpop.f32.mrb[0].mxu0
    %224 = vmatprep.mubr.bf16.mxu0 0
    %225 = vmatmul.mubr.bf16.gmra.mrb[0].mxu0 %v182
    %v226 = vpop.f32.mrb[0].mxu0
    %v227 = vadd.f32 %v163, %v226
    %v228 = vpop.f32.mrb[0].mxu0
    %v229 = vpop.f32.mrb[0].mxu0
    %v230 = vadd.f32 %v163, %v229
    %v231 = vpop.f32.mrb[0].mxu0
    %232 = vdwg.mxu0
    %v233 = vld [vmem:[#allocation8] sm:$0xf]
    %v234 = vld [vmem:[#allocation8 + $0x4] sm:$0xf]
    %v235 = vld [vmem:[#allocation8 + $0x8] sm:$0xf]
    %v236 = vld [vmem:[#allocation8 + $0xc] sm:$0xf]
    %v237 = vld [vmem:[%s5] sm:$0x1]
    %v239 = vlaneseq
    %v240 = vshrl.u32 %v239, 7
    %v241 = vsub.s32 0, %v240
    %v242 = vrot.slane %v237, %v241
    %v248 = vunpack.c.l.b16 %v233
    %v249 = vunpack.c.l.b16 %v234
    %v250 = vunpack.c.l.b16 %v235
    %v251 = vunpack.c.l.b16 %v236
    %v252 = vpack.c.b16 %v249, %v248
    %v253 = vpack.c.b16 %v251, %v250
    %v257 = vsel %vm177, %v147, 0
    %259 = vmatprep.subr.bf16.mxu0 0
    %260 = vmatpush1.bf16.msra.mxu0 %v252
    %261 = vmatprep.subr.bf16.mxu0 0
    %262 = vmatpush1.bf16.msra.mxu0 %v253
    %263 = vmatprep.subr.bf16.mxu0 0
    %264 = vmatpush1.bf16.msra.mxu0 0
    %265 = vmatprep.subr.bf16.mxu0 0
    %266 = vmatpush1.bf16.msra.mxu0 0
    %267 = vmatprep.subr.bf16.mxu0 0
    %268 = vmatpush1.bf16.msra.mxu0 0
    %269 = vmatprep.subr.bf16.mxu0 0
    %270 = vmatpush1.bf16.msra.mxu0 0
    %271 = vmatprep.subr.bf16.mxu0 0
    %272 = vmatpush1.bf16.msra.mxu0 0
    %273 = vmatprep.subr.bf16.mxu0 0
    %274 = vmatpush1.bf16.msra.mxu0 0
    %275 = vmatprep.subr.bf16.mxu0 0
    %276 = vmatpush1.bf16.msra.mxu0 0
    %277 = vmatprep.subr.bf16.mxu0 0
    %278 = vmatpush1.bf16.msra.mxu0 0
    %279 = vmatprep.subr.bf16.mxu0 0
    %280 = vmatpush1.bf16.msra.mxu0 0
    %281 = vmatprep.subr.bf16.mxu0 0
    %282 = vmatpush1.bf16.msra.mxu0 0
    %283 = vmatprep.subr.bf16.mxu0 0
    %284 = vmatpush1.bf16.msra.mxu0 0
    %285 = vmatprep.subr.bf16.mxu0 0
    %286 = vmatpush1.bf16.msra.mxu0 0
    %287 = vmatprep.subr.bf16.mxu0 0
    %288 = vmatpush1.bf16.msra.mxu0 0
    %289 = vmatprep.subr.bf16.mxu0 0
    %290 = vmatpush1.bf16.msra.mxu0 0
    %291 = vmatprep.mubr.bf16.mxu0 0
    %292 = vmatmul.mubr.bf16.gmra.mrb[0].mxu0 %v257
    %v293 = vpop.f32.mrb[0].mxu0
    %v294 = vadd.f32 %v242, %v293
    %v295 = vpop.f32.mrb[0].mxu0
    %v296 = vpop.f32.mrb[0].mxu0
    %v297 = vadd.f32 %v242, %v296
    %v298 = vpop.f32.mrb[0].mxu0
    %299 = vdwg.mxu0
    %304 = vrot.lane.b32.xlu0 %v219, 120
    %v305 = vpop.permute.xlu0 %304
    %306 = vrot.lane.b32.xlu0 %v222, 120
    %v307 = vpop.permute.xlu0 %306
    %308 = vrot.lane.b32.xlu0 %v227, 120
    %v309 = vpop.permute.xlu0 %308
    %310 = vrot.lane.b32.xlu0 %v230, 120
    %v311 = vpop.permute.xlu0 %310
    %316 = vrot.lane.b32.xlu0 %v219, 112
    %v317 = vpop.permute.xlu0 %316
    %318 = vrot.lane.b32.xlu0 %v222, 112
    %v319 = vpop.permute.xlu0 %318
    %320 = vrot.lane.b32.xlu0 %v227, 112
    %v321 = vpop.permute.xlu0 %320
    %322 = vrot.lane.b32.xlu0 %v230, 112
    %v323 = vpop.permute.xlu0 %322
    %328 = vrot.lane.b32.xlu0 %v219, 104
    %v329 = vpop.permute.xlu0 %328
    %330 = vrot.lane.b32.xlu0 %v222, 104
    %v331 = vpop.permute.xlu0 %330
    %332 = vrot.lane.b32.xlu0 %v227, 104
    %v333 = vpop.permute.xlu0 %332
    %334 = vrot.lane.b32.xlu0 %v230, 104
    %v335 = vpop.permute.xlu0 %334
    %v340 = vcombine.low %v219, %v317
    %v341 = vcombine.high %v219, %v317
    %v343 = vunpack.c.l.s4 1983009808
    %v344 = vunpack.c.0.s8 %v343
    %v345 = vlaneseq
    %v346 = vshrl.u32 %v345, 7
    %v347 = vsub.s32 %v344, %v346
    %v348 = vrot.slane %v340, %v347
    %v350 = vunpack.c.l.s4 1983009808
    %v351 = vunpack.c.0.s8 %v350
    %v352 = vlaneseq
    %v353 = vshrl.u32 %v352, 7
    %v354 = vsub.s32 %v351, %v353
    %v355 = vrot.slane %v341, %v354
    %v356 = vcombine.low %v305, %v329
    %v357 = vcombine.high %v305, %v329
    %v359 = vunpack.c.l.s4 1983009808
    %v360 = vunpack.c.0.s8 %v359
    %v361 = vlaneseq
    %v362 = vshrl.u32 %v361, 7
    %v363 = vsub.s32 %v360, %v362
    %v364 = vrot.slane %v356, %v363
    %v366 = vunpack.c.l.s4 1983009808
    %v367 = vunpack.c.0.s8 %v366
    %v368 = vlaneseq
    %v369 = vshrl.u32 %v368, 7
    %v370 = vsub.s32 %v367, %v369
    %v371 = vrot.slane %v357, %v370
    %v372 = vcombine.low %v348, %v364
    %v373 = vcombine.high %v348, %v364
    %v375 = vunpack.c.l.s4 1934713408
    %v376 = vunpack.c.0.s8 %v375
    %v377 = vlaneseq
    %v378 = vshrl.u32 %v377, 7
    %v379 = vsub.s32 %v376, %v378
    %v380 = vrot.slane %v372, %v379
    %v382 = vunpack.c.l.s4 1934713408
    %v383 = vunpack.c.0.s8 %v382
    %v384 = vlaneseq
    %v385 = vshrl.u32 %v384, 7
    %v386 = vsub.s32 %v383, %v385
    %v387 = vrot.slane %v373, %v386
    %v388 = vcombine.low %v355, %v371
    %v389 = vcombine.high %v355, %v371
    %v391 = vunpack.c.l.s4 1934713408
    %v392 = vunpack.c.0.s8 %v391
    %v393 = vlaneseq
    %v394 = vshrl.u32 %v393, 7
    %v395 = vsub.s32 %v392, %v394
    %v396 = vrot.slane %v388, %v395
    %v398 = vunpack.c.l.s4 1934713408
    %v399 = vunpack.c.0.s8 %v398
    %v400 = vlaneseq
    %v401 = vshrl.u32 %v400, 7
    %v402 = vsub.s32 %v399, %v401
    %v403 = vrot.slane %v389, %v402
    %v404 = vcombine.high %v380, 0.0
    %v405 = vcombine.high %v387, 0.0
    %v406 = vcombine.high %v396, 0.0
    %v407 = vcombine.high %v403, 0.0
    %v408 = vcombine.low %v222, %v319
    %v409 = vcombine.high %v222, %v319
    %v411 = vunpack.c.l.s4 1983009808
    %v412 = vunpack.c.0.s8 %v411
    %v413 = vlaneseq
    %v414 = vshrl.u32 %v413, 7
    %v415 = vsub.s32 %v412, %v414
    %v416 = vrot.slane %v408, %v415
    %v418 = vunpack.c.l.s4 1983009808
    %v419 = vunpack.c.0.s8 %v418
    %v420 = vlaneseq
    %v421 = vshrl.u32 %v420, 7
    %v422 = vsub.s32 %v419, %v421
    %v423 = vrot.slane %v409, %v422
    %v424 = vcombine.low %v307, %v331
    %v425 = vcombine.high %v307, %v331
    %v427 = vunpack.c.l.s4 1983009808
    %v428 = vunpack.c.0.s8 %v427
    %v429 = vlaneseq
    %v430 = vshrl.u32 %v429, 7
    %v431 = vsub.s32 %v428, %v430
    %v432 = vrot.slane %v424, %v431
    %v434 = vunpack.c.l.s4 1983009808
    %v435 = vunpack.c.0.s8 %v434
    %v436 = vlaneseq
    %v437 = vshrl.u32 %v436, 7
    %v438 = vsub.s32 %v435, %v437
    %v439 = vrot.slane %v425, %v438
    %v440 = vcombine.low %v416, %v432
    %v441 = vcombine.high %v416, %v432
    %v443 = vunpack.c.l.s4 1934713408
    %v444 = vunpack.c.0.s8 %v443
    %v445 = vlaneseq
    %v446 = vshrl.u32 %v445, 7
    %v447 = vsub.s32 %v444, %v446
    %v448 = vrot.slane %v440, %v447
    %v450 = vunpack.c.l.s4 1934713408
    %v451 = vunpack.c.0.s8 %v450
    %v452 = vlaneseq
    %v453 = vshrl.u32 %v452, 7
    %v454 = vsub.s32 %v451, %v453
    %v455 = vrot.slane %v441, %v454
    %v456 = vcombine.low %v423, %v439
    %v457 = vcombine.high %v423, %v439
    %v459 = vunpack.c.l.s4 1934713408
    %v460 = vunpack.c.0.s8 %v459
    %v461 = vlaneseq
    %v462 = vshrl.u32 %v461, 7
    %v463 = vsub.s32 %v460, %v462
    %v464 = vrot.slane %v456, %v463
    %v466 = vunpack.c.l.s4 1934713408
    %v467 = vunpack.c.0.s8 %v466
    %v468 = vlaneseq
    %v469 = vshrl.u32 %v468, 7
    %v470 = vsub.s32 %v467, %v469
    %v471 = vrot.slane %v457, %v470
    %v472 = vcombine.high %v448, 0.0
    %v473 = vcombine.high %v455, 0.0
    %v474 = vcombine.high %v464, 0.0
    %v475 = vcombine.high %v471, 0.0
    %v476 = vcombine.low %v227, %v321
    %v477 = vcombine.high %v227, %v321
    %v479 = vunpack.c.l.s4 1983009808
    %v480 = vunpack.c.0.s8 %v479
    %v481 = vlaneseq
    %v482 = vshrl.u32 %v481, 7
    %v483 = vsub.s32 %v480, %v482
    %v484 = vrot.slane %v476, %v483
    %v486 = vunpack.c.l.s4 1983009808
    %v487 = vunpack.c.0.s8 %v486
    %v488 = vlaneseq
    %v489 = vshrl.u32 %v488, 7
    %v490 = vsub.s32 %v487, %v489
    %v491 = vrot.slane %v477, %v490
    %v492 = vcombine.low %v309, %v333
    %v493 = vcombine.high %v309, %v333
    %v495 = vunpack.c.l.s4 1983009808
    %v496 = vunpack.c.0.s8 %v495
    %v497 = vlaneseq
    %v498 = vshrl.u32 %v497, 7
    %v499 = vsub.s32 %v496, %v498
    %v500 = vrot.slane %v492, %v499
    %v502 = vunpack.c.l.s4 1983009808
    %v503 = vunpack.c.0.s8 %v502
    %v504 = vlaneseq
    %v505 = vshrl.u32 %v504, 7
    %v506 = vsub.s32 %v503, %v505
    %v507 = vrot.slane %v493, %v506
    %v508 = vcombine.low %v484, %v500
    %v509 = vcombine.high %v484, %v500
    %v511 = vunpack.c.l.s4 1934713408
    %v512 = vunpack.c.0.s8 %v511
    %v513 = vlaneseq
    %v514 = vshrl.u32 %v513, 7
    %v515 = vsub.s32 %v512, %v514
    %v516 = vrot.slane %v508, %v515
    %v518 = vunpack.c.l.s4 1934713408
    %v519 = vunpack.c.0.s8 %v518
    %v520 = vlaneseq
    %v521 = vshrl.u32 %v520, 7
    %v522 = vsub.s32 %v519, %v521
    %v523 = vrot.slane %v509, %v522
    %v524 = vcombine.low %v491, %v507
    %v525 = vcombine.high %v491, %v507
    %v527 = vunpack.c.l.s4 1934713408
    %v528 = vunpack.c.0.s8 %v527
    %v529 = vlaneseq
    %v530 = vshrl.u32 %v529, 7
    %v531 = vsub.s32 %v528, %v530
    %v532 = vrot.slane %v524, %v531
    %v534 = vunpack.c.l.s4 1934713408
    %v535 = vunpack.c.0.s8 %v534
    %v536 = vlaneseq
    %v537 = vshrl.u32 %v536, 7
    %v538 = vsub.s32 %v535, %v537
    %v539 = vrot.slane %v525, %v538
    %v540 = vcombine.high %v516, 0.0
    %v541 = vcombine.high %v523, 0.0
    %v542 = vcombine.high %v532, 0.0
    %v543 = vcombine.high %v539, 0.0
    %v544 = vcombine.low %v230, %v323
    %v545 = vcombine.high %v230, %v323
    %v547 = vunpack.c.l.s4 1983009808
    %v548 = vunpack.c.0.s8 %v547
    %v549 = vlaneseq
    %v550 = vshrl.u32 %v549, 7
    %v551 = vsub.s32 %v548, %v550
    %v552 = vrot.slane %v544, %v551
    %v554 = vunpack.c.l.s4 1983009808
    %v555 = vunpack.c.0.s8 %v554
    %v556 = vlaneseq
    %v557 = vshrl.u32 %v556, 7
    %v558 = vsub.s32 %v555, %v557
    %v559 = vrot.slane %v545, %v558
    %v560 = vcombine.low %v311, %v335
    %v561 = vcombine.high %v311, %v335
    %v563 = vunpack.c.l.s4 1983009808
    %v564 = vunpack.c.0.s8 %v563
    %v565 = vlaneseq
    %v566 = vshrl.u32 %v565, 7
    %v567 = vsub.s32 %v564, %v566
    %v568 = vrot.slane %v560, %v567
    %v570 = vunpack.c.l.s4 1983009808
    %v571 = vunpack.c.0.s8 %v570
    %v572 = vlaneseq
    %v573 = vshrl.u32 %v572, 7
    %v574 = vsub.s32 %v571, %v573
    %v575 = vrot.slane %v561, %v574
    %v576 = vcombine.low %v552, %v568
    %v577 = vcombine.high %v552, %v568
    %v579 = vunpack.c.l.s4 1934713408
    %v580 = vunpack.c.0.s8 %v579
    %v581 = vlaneseq
    %v582 = vshrl.u32 %v581, 7
    %v583 = vsub.s32 %v580, %v582
    %v584 = vrot.slane %v576, %v583
    %v586 = vunpack.c.l.s4 1934713408
    %v587 = vunpack.c.0.s8 %v586
    %v588 = vlaneseq
    %v589 = vshrl.u32 %v588, 7
    %v590 = vsub.s32 %v587, %v589
    %v591 = vrot.slane %v577, %v590
    %v592 = vcombine.low %v559, %v575
    %v593 = vcombine.high %v559, %v575
    %v595 = vunpack.c.l.s4 1934713408
    %v596 = vunpack.c.0.s8 %v595
    %v597 = vlaneseq
    %v598 = vshrl.u32 %v597, 7
    %v599 = vsub.s32 %v596, %v598
    %v600 = vrot.slane %v592, %v599
    %v602 = vunpack.c.l.s4 1934713408
    %v603 = vunpack.c.0.s8 %v602
    %v604 = vlaneseq
    %v605 = vshrl.u32 %v604, 7
    %v606 = vsub.s32 %v603, %v605
    %v607 = vrot.slane %v593, %v606
    %v608 = vcombine.high %v584, 0.0
    %v609 = vcombine.high %v591, 0.0
    %v610 = vcombine.high %v600, 0.0
    %v611 = vcombine.high %v607, 0.0
    %v612 = vcombine.low %v380, %v387
    %v614 = vunpack.c.l.s4 1983009808
    %v615 = vunpack.c.0.s8 %v614
    %v616 = vlaneseq
    %v617 = vshrl.u32 %v616, 7
    %v618 = vsub.s32 %v615, %v617
    %v619 = vrot.slane %v612, %v618
    %v620 = vcombine.low %v404, %v405
    %v622 = vunpack.c.l.s4 1983009808
    %v623 = vunpack.c.0.s8 %v622
    %v624 = vlaneseq
    %v625 = vshrl.u32 %v624, 7
    %v626 = vsub.s32 %v623, %v625
    %v627 = vrot.slane %v620, %v626
    %v628 = vcombine.low %v396, %v403
    %v630 = vunpack.c.l.s4 1983009808
    %v631 = vunpack.c.0.s8 %v630
    %v632 = vlaneseq
    %v633 = vshrl.u32 %v632, 7
    %v634 = vsub.s32 %v631, %v633
    %v635 = vrot.slane %v628, %v634
    %v636 = vcombine.low %v406, %v407
    %v638 = vunpack.c.l.s4 1983009808
    %v639 = vunpack.c.0.s8 %v638
    %v640 = vlaneseq
    %v641 = vshrl.u32 %v640, 7
    %v642 = vsub.s32 %v639, %v641
    %v643 = vrot.slane %v636, %v642
    %v644 = vcombine.low %v619, %v627
    %v645 = vcombine.high %v619, %v627
    %v647 = vunpack.c.l.s4 1934713408
    %v648 = vunpack.c.0.s8 %v647
    %v649 = vlaneseq
    %v650 = vshrl.u32 %v649, 7
    %v651 = vsub.s32 %v648, %v650
    %v652 = vrot.slane %v644, %v651
    %v654 = vunpack.c.l.s4 1934713408
    %v655 = vunpack.c.0.s8 %v654
    %v656 = vlaneseq
    %v657 = vshrl.u32 %v656, 7
    %v658 = vsub.s32 %v655, %v657
    %v659 = vrot.slane %v645, %v658
    %v660 = vcombine.low %v635, %v643
    %v661 = vcombine.high %v635, %v643
    %v663 = vunpack.c.l.s4 1934713408
    %v664 = vunpack.c.0.s8 %v663
    %v665 = vlaneseq
    %v666 = vshrl.u32 %v665, 7
    %v667 = vsub.s32 %v664, %v666
    %v668 = vrot.slane %v660, %v667
    %v670 = vunpack.c.l.s4 1934713408
    %v671 = vunpack.c.0.s8 %v670
    %v672 = vlaneseq
    %v673 = vshrl.u32 %v672, 7
    %v674 = vsub.s32 %v671, %v673
    %v675 = vrot.slane %v661, %v674
    %v676 = vcombine.low %v652, %v668
    %v677 = vcombine.high %v652, %v668
    %v678 = vcombine.low %v659, %v675
    %v679 = vcombine.high %v659, %v675
    %v680 = vcombine.low %v448, %v455
    %v682 = vunpack.c.l.s4 1983009808
    %v683 = vunpack.c.0.s8 %v682
    %v684 = vlaneseq
    %v685 = vshrl.u32 %v684, 7
    %v686 = vsub.s32 %v683, %v685
    %v687 = vrot.slane %v680, %v686
    %v688 = vcombine.low %v472, %v473
    %v690 = vunpack.c.l.s4 1983009808
    %v691 = vunpack.c.0.s8 %v690
    %v692 = vlaneseq
    %v693 = vshrl.u32 %v692, 7
    %v694 = vsub.s32 %v691, %v693
    %v695 = vrot.slane %v688, %v694
    %v696 = vcombine.low %v464, %v471
    %v698 = vunpack.c.l.s4 1983009808
    %v699 = vunpack.c.0.s8 %v698
    %v700 = vlaneseq
    %v701 = vshrl.u32 %v700, 7
    %v702 = vsub.s32 %v699, %v701
    %v703 = vrot.slane %v696, %v702
    %v704 = vcombine.low %v474, %v475
    %v706 = vunpack.c.l.s4 1983009808
    %v707 = vunpack.c.0.s8 %v706
    %v708 = vlaneseq
    %v709 = vshrl.u32 %v708, 7
    %v710 = vsub.s32 %v707, %v709
    %v711 = vrot.slane %v704, %v710
    %v712 = vcombine.low %v687, %v695
    %v713 = vcombine.high %v687, %v695
    %v715 = vunpack.c.l.s4 1934713408
    %v716 = vunpack.c.0.s8 %v715
    %v717 = vlaneseq
    %v718 = vshrl.u32 %v717, 7
    %v719 = vsub.s32 %v716, %v718
    %v720 = vrot.slane %v712, %v719
    %v722 = vunpack.c.l.s4 1934713408
    %v723 = vunpack.c.0.s8 %v722
    %v724 = vlaneseq
    %v725 = vshrl.u32 %v724, 7
    %v726 = vsub.s32 %v723, %v725
    %v727 = vrot.slane %v713, %v726
    %v728 = vcombine.low %v703, %v711
    %v729 = vcombine.high %v703, %v711
    %v731 = vunpack.c.l.s4 1934713408
    %v732 = vunpack.c.0.s8 %v731
    %v733 = vlaneseq
    %v734 = vshrl.u32 %v733, 7
    %v735 = vsub.s32 %v732, %v734
    %v736 = vrot.slane %v728, %v735
    %v738 = vunpack.c.l.s4 1934713408
    %v739 = vunpack.c.0.s8 %v738
    %v740 = vlaneseq
    %v741 = vshrl.u32 %v740, 7
    %v742 = vsub.s32 %v739, %v741
    %v743 = vrot.slane %v729, %v742
    %v744 = vcombine.low %v720, %v736
    %v745 = vcombine.high %v720, %v736
    %v746 = vcombine.low %v727, %v743
    %v747 = vcombine.high %v727, %v743
    %v748 = vcombine.low %v516, %v523
    %v750 = vunpack.c.l.s4 1983009808
    %v751 = vunpack.c.0.s8 %v750
    %v752 = vlaneseq
    %v753 = vshrl.u32 %v752, 7
    %v754 = vsub.s32 %v751, %v753
    %v755 = vrot.slane %v748, %v754
    %v756 = vcombine.low %v540, %v541
    %v758 = vunpack.c.l.s4 1983009808
    %v759 = vunpack.c.0.s8 %v758
    %v760 = vlaneseq
    %v761 = vshrl.u32 %v760, 7
    %v762 = vsub.s32 %v759, %v761
    %v763 = vrot.slane %v756, %v762
    %v764 = vcombine.low %v532, %v539
    %v766 = vunpack.c.l.s4 1983009808
    %v767 = vunpack.c.0.s8 %v766
    %v768 = vlaneseq
    %v769 = vshrl.u32 %v768, 7
    %v770 = vsub.s32 %v767, %v769
    %v771 = vrot.slane %v764, %v770
    %v772 = vcombine.low %v542, %v543
    %v774 = vunpack.c.l.s4 1983009808
    %v775 = vunpack.c.0.s8 %v774
    %v776 = vlaneseq
    %v777 = vshrl.u32 %v776, 7
    %v778 = vsub.s32 %v775, %v777
    %v779 = vrot.slane %v772, %v778
    %v780 = vcombine.low %v755, %v763
    %v781 = vcombine.high %v755, %v763
    %v783 = vunpack.c.l.s4 1934713408
    %v784 = vunpack.c.0.s8 %v783
    %v785 = vlaneseq
    %v786 = vshrl.u32 %v785, 7
    %v787 = vsub.s32 %v784, %v786
    %v788 = vrot.slane %v780, %v787
    %v790 = vunpack.c.l.s4 1934713408
    %v791 = vunpack.c.0.s8 %v790
    %v792 = vlaneseq
    %v793 = vshrl.u32 %v792, 7
    %v794 = vsub.s32 %v791, %v793
    %v795 = vrot.slane %v781, %v794
    %v796 = vcombine.low %v771, %v779
    %v797 = vcombine.high %v771, %v779
    %v799 = vunpack.c.l.s4 1934713408
    %v800 = vunpack.c.0.s8 %v799
    %v801 = vlaneseq
    %v802 = vshrl.u32 %v801, 7
    %v803 = vsub.s32 %v800, %v802
    %v804 = vrot.slane %v796, %v803
    %v806 = vunpack.c.l.s4 1934713408
    %v807 = vunpack.c.0.s8 %v806
    %v808 = vlaneseq
    %v809 = vshrl.u32 %v808, 7
    %v810 = vsub.s32 %v807, %v809
    %v811 = vrot.slane %v797, %v810
    %v812 = vcombine.low %v788, %v804
    %v813 = vcombine.high %v788, %v804
    %v814 = vcombine.low %v795, %v811
    %v815 = vcombine.high %v795, %v811
    %v816 = vcombine.low %v584, %v591
    %v818 = vunpack.c.l.s4 1983009808
    %v819 = vunpack.c.0.s8 %v818
    %v820 = vlaneseq
    %v821 = vshrl.u32 %v820, 7
    %v822 = vsub.s32 %v819, %v821
    %v823 = vrot.slane %v816, %v822
    %v824 = vcombine.low %v608, %v609
    %v826 = vunpack.c.l.s4 1983009808
    %v827 = vunpack.c.0.s8 %v826
    %v828 = vlaneseq
    %v829 = vshrl.u32 %v828, 7
    %v830 = vsub.s32 %v827, %v829
    %v831 = vrot.slane %v824, %v830
    %v832 = vcombine.low %v600, %v607
    %v834 = vunpack.c.l.s4 1983009808
    %v835 = vunpack.c.0.s8 %v834
    %v836 = vlaneseq
    %v837 = vshrl.u32 %v836, 7
    %v838 = vsub.s32 %v835, %v837
    %v839 = vrot.slane %v832, %v838
    %v840 = vcombine.low %v610, %v611
    %v842 = vunpack.c.l.s4 1983009808
    %v843 = vunpack.c.0.s8 %v842
    %v844 = vlaneseq
    %v845 = vshrl.u32 %v844, 7
    %v846 = vsub.s32 %v843, %v845
    %v847 = vrot.slane %v840, %v846
    %v848 = vcombine.low %v823, %v831
    %v849 = vcombine.high %v823, %v831
    %v851 = vunpack.c.l.s4 1934713408
    %v852 = vunpack.c.0.s8 %v851
    %v853 = vlaneseq
    %v854 = vshrl.u32 %v853, 7
    %v855 = vsub.s32 %v852, %v854
    %v856 = vrot.slane %v848, %v855
    %v858 = vunpack.c.l.s4 1934713408
    %v859 = vunpack.c.0.s8 %v858
    %v860 = vlaneseq
    %v861 = vshrl.u32 %v860, 7
    %v862 = vsub.s32 %v859, %v861
    %v863 = vrot.slane %v849, %v862
    %v864 = vcombine.low %v839, %v847
    %v865 = vcombine.high %v839, %v847
    %v867 = vunpack.c.l.s4 1934713408
    %v868 = vunpack.c.0.s8 %v867
    %v869 = vlaneseq
    %v870 = vshrl.u32 %v869, 7
    %v871 = vsub.s32 %v868, %v870
    %v872 = vrot.slane %v864, %v871
    %v874 = vunpack.c.l.s4 1934713408
    %v875 = vunpack.c.0.s8 %v874
    %v876 = vlaneseq
    %v877 = vshrl.u32 %v876, 7
    %v878 = vsub.s32 %v875, %v877
    %v879 = vrot.slane %v865, %v878
    %v880 = vcombine.low %v856, %v872
    %v881 = vcombine.high %v856, %v872
    %v882 = vcombine.low %v863, %v879
    %v883 = vcombine.high %v863, %v879
    %v884 = vpack.c.bf16 %v744, %v676
    %v885 = vpack.c.bf16 %v880, %v812
    %v886 = vpack.c.bf16 %v745, %v677
    %v887 = vpack.c.bf16 %v881, %v813
    %v888 = vpack.c.bf16 %v746, %v678
    %v889 = vpack.c.bf16 %v882, %v814
    %v890 = vpack.c.bf16 %v747, %v679
    %v891 = vpack.c.bf16 %v883, %v815
    %894 = vrot.lane.b32.xlu0 %v294, 120
    %v895 = vpop.permute.xlu0 %894
    %896 = vrot.lane.b32.xlu0 %v297, 120
    %v897 = vpop.permute.xlu0 %896
    %900 = vrot.lane.b32.xlu0 %v294, 112
    %v901 = vpop.permute.xlu0 %900
    %902 = vrot.lane.b32.xlu0 %v297, 112
    %v903 = vpop.permute.xlu0 %902
    %906 = vrot.lane.b32.xlu0 %v294, 104
    %v907 = vpop.permute.xlu0 %906
    %908 = vrot.lane.b32.xlu0 %v297, 104
    %v909 = vpop.permute.xlu0 %908
    %v912 = vcombine.low %v294, %v901
    %v913 = vcombine.high %v294, %v901
    %v915 = vunpack.c.l.s4 1983009808
    %v916 = vunpack.c.0.s8 %v915
    %v917 = vlaneseq
    %v918 = vshrl.u32 %v917, 7
    %v919 = vsub.s32 %v916, %v918
    %v920 = vrot.slane %v912, %v919
    %v922 = vunpack.c.l.s4 1983009808
    %v923 = vunpack.c.0.s8 %v922
    %v924 = vlaneseq
    %v925 = vshrl.u32 %v924, 7
    %v926 = vsub.s32 %v923, %v925
    %v927 = vrot.slane %v913, %v926
    %v928 = vcombine.low %v895, %v907
    %v929 = vcombine.high %v895, %v907
    %v931 = vunpack.c.l.s4 1983009808
    %v932 = vunpack.c.0.s8 %v931
    %v933 = vlaneseq
    %v934 = vshrl.u32 %v933, 7
    %v935 = vsub.s32 %v932, %v934
    %v936 = vrot.slane %v928, %v935
    %v938 = vunpack.c.l.s4 1983009808
    %v939 = vunpack.c.0.s8 %v938
    %v940 = vlaneseq
    %v941 = vshrl.u32 %v940, 7
    %v942 = vsub.s32 %v939, %v941
    %v943 = vrot.slane %v929, %v942
    %v944 = vcombine.low %v920, %v936
    %v945 = vcombine.high %v920, %v936
    %v947 = vunpack.c.l.s4 1934713408
    %v948 = vunpack.c.0.s8 %v947
    %v949 = vlaneseq
    %v950 = vshrl.u32 %v949, 7
    %v951 = vsub.s32 %v948, %v950
    %v952 = vrot.slane %v944, %v951
    %v954 = vunpack.c.l.s4 1934713408
    %v955 = vunpack.c.0.s8 %v954
    %v956 = vlaneseq
    %v957 = vshrl.u32 %v956, 7
    %v958 = vsub.s32 %v955, %v957
    %v959 = vrot.slane %v945, %v958
    %v960 = vcombine.low %v927, %v943
    %v961 = vcombine.high %v927, %v943
    %v963 = vunpack.c.l.s4 1934713408
    %v964 = vunpack.c.0.s8 %v963
    %v965 = vlaneseq
    %v966 = vshrl.u32 %v965, 7
    %v967 = vsub.s32 %v964, %v966
    %v968 = vrot.slane %v960, %v967
    %v970 = vunpack.c.l.s4 1934713408
    %v971 = vunpack.c.0.s8 %v970
    %v972 = vlaneseq
    %v973 = vshrl.u32 %v972, 7
    %v974 = vsub.s32 %v971, %v973
    %v975 = vrot.slane %v961, %v974
    %v976 = vcombine.high %v952, 0.0
    %v977 = vcombine.high %v959, 0.0
    %v978 = vcombine.high %v968, 0.0
    %v979 = vcombine.high %v975, 0.0
    %v980 = vcombine.low %v297, %v903
    %v981 = vcombine.high %v297, %v903
    %v983 = vunpack.c.l.s4 1983009808
    %v984 = vunpack.c.0.s8 %v983
    %v985 = vlaneseq
    %v986 = vshrl.u32 %v985, 7
    %v987 = vsub.s32 %v984, %v986
    %v988 = vrot.slane %v980, %v987
    %v990 = vunpack.c.l.s4 1983009808
    %v991 = vunpack.c.0.s8 %v990
    %v992 = vlaneseq
    %v993 = vshrl.u32 %v992, 7
    %v994 = vsub.s32 %v991, %v993
    %v995 = vrot.slane %v981, %v994
    %v996 = vcombine.low %v897, %v909
    %v997 = vcombine.high %v897, %v909
    %v999 = vunpack.c.l.s4 1983009808
    %v1000 = vunpack.c.0.s8 %v999
    %v1001 = vlaneseq
    %v1002 = vshrl.u32 %v1001, 7
    %v1003 = vsub.s32 %v1000, %v1002
    %v1004 = vrot.slane %v996, %v1003
    %v1006 = vunpack.c.l.s4 1983009808
    %v1007 = vunpack.c.0.s8 %v1006
    %v1008 = vlaneseq
    %v1009 = vshrl.u32 %v1008, 7
    %v1010 = vsub.s32 %v1007, %v1009
    %v1011 = vrot.slane %v997, %v1010
    %v1012 = vcombine.low %v988, %v1004
    %v1013 = vcombine.high %v988, %v1004
    %v1015 = vunpack.c.l.s4 1934713408
    %v1016 = vunpack.c.0.s8 %v1015
    %v1017 = vlaneseq
    %v1018 = vshrl.u32 %v1017, 7
    %v1019 = vsub.s32 %v1016, %v1018
    %v1020 = vrot.slane %v1012, %v1019
    %v1022 = vunpack.c.l.s4 1934713408
    %v1023 = vunpack.c.0.s8 %v1022
    %v1024 = vlaneseq
    %v1025 = vshrl.u32 %v1024, 7
    %v1026 = vsub.s32 %v1023, %v1025
    %v1027 = vrot.slane %v1013, %v1026
    %v1028 = vcombine.low %v995, %v1011
    %v1029 = vcombine.high %v995, %v1011
    %v1031 = vunpack.c.l.s4 1934713408
    %v1032 = vunpack.c.0.s8 %v1031
    %v1033 = vlaneseq
    %v1034 = vshrl.u32 %v1033, 7
    %v1035 = vsub.s32 %v1032, %v1034
    %v1036 = vrot.slane %v1028, %v1035
    %v1038 = vunpack.c.l.s4 1934713408
    %v1039 = vunpack.c.0.s8 %v1038
    %v1040 = vlaneseq
    %v1041 = vshrl.u32 %v1040, 7
    %v1042 = vsub.s32 %v1039, %v1041
    %v1043 = vrot.slane %v1029, %v1042
    %v1044 = vcombine.high %v1020, 0.0
    %v1045 = vcombine.high %v1027, 0.0
    %v1046 = vcombine.high %v1036, 0.0
    %v1047 = vcombine.high %v1043, 0.0
    %v1048 = vcombine.low %v952, %v959
    %v1050 = vunpack.c.l.s4 1983009808
    %v1051 = vunpack.c.0.s8 %v1050
    %v1052 = vlaneseq
    %v1053 = vshrl.u32 %v1052, 7
    %v1054 = vsub.s32 %v1051, %v1053
    %v1055 = vrot.slane %v1048, %v1054
    %v1056 = vcombine.low %v976, %v977
    %v1058 = vunpack.c.l.s4 1983009808
    %v1059 = vunpack.c.0.s8 %v1058
    %v1060 = vlaneseq
    %v1061 = vshrl.u32 %v1060, 7
    %v1062 = vsub.s32 %v1059, %v1061
    %v1063 = vrot.slane %v1056, %v1062
    %v1064 = vcombine.low %v968, %v975
    %v1066 = vunpack.c.l.s4 1983009808
    %v1067 = vunpack.c.0.s8 %v1066
    %v1068 = vlaneseq
    %v1069 = vshrl.u32 %v1068, 7
    %v1070 = vsub.s32 %v1067, %v1069
    %v1071 = vrot.slane %v1064, %v1070
    %v1072 = vcombine.low %v978, %v979
    %v1074 = vunpack.c.l.s4 1983009808
    %v1075 = vunpack.c.0.s8 %v1074
    %v1076 = vlaneseq
    %v1077 = vshrl.u32 %v1076, 7
    %v1078 = vsub.s32 %v1075, %v1077
    %v1079 = vrot.slane %v1072, %v1078
    %v1080 = vcombine.low %v1055, %v1063
    %v1081 = vcombine.high %v1055, %v1063
    %v1083 = vunpack.c.l.s4 1934713408
    %v1084 = vunpack.c.0.s8 %v1083
    %v1085 = vlaneseq
    %v1086 = vshrl.u32 %v1085, 7
    %v1087 = vsub.s32 %v1084, %v1086
    %v1088 = vrot.slane %v1080, %v1087
    %v1090 = vunpack.c.l.s4 1934713408
    %v1091 = vunpack.c.0.s8 %v1090
    %v1092 = vlaneseq
    %v1093 = vshrl.u32 %v1092, 7
    %v1094 = vsub.s32 %v1091, %v1093
    %v1095 = vrot.slane %v1081, %v1094
    %v1096 = vcombine.low %v1071, %v1079
    %v1097 = vcombine.high %v1071, %v1079
    %v1099 = vunpack.c.l.s4 1934713408
    %v1100 = vunpack.c.0.s8 %v1099
    %v1101 = vlaneseq
    %v1102 = vshrl.u32 %v1101, 7
    %v1103 = vsub.s32 %v1100, %v1102
    %v1104 = vrot.slane %v1096, %v1103
    %v1106 = vunpack.c.l.s4 1934713408
    %v1107 = vunpack.c.0.s8 %v1106
    %v1108 = vlaneseq
    %v1109 = vshrl.u32 %v1108, 7
    %v1110 = vsub.s32 %v1107, %v1109
    %v1111 = vrot.slane %v1097, %v1110
    %v1112 = vcombine.low %v1088, %v1104
    %v1113 = vcombine.high %v1088, %v1104
    %v1114 = vcombine.low %v1095, %v1111
    %v1115 = vcombine.high %v1095, %v1111
    %v1116 = vcombine.low %v1020, %v1027
    %v1118 = vunpack.c.l.s4 1983009808
    %v1119 = vunpack.c.0.s8 %v1118
    %v1120 = vlaneseq
    %v1121 = vshrl.u32 %v1120, 7
    %v1122 = vsub.s32 %v1119, %v1121
    %v1123 = vrot.slane %v1116, %v1122
    %v1124 = vcombine.low %v1044, %v1045
    %v1126 = vunpack.c.l.s4 1983009808
    %v1127 = vunpack.c.0.s8 %v1126
    %v1128 = vlaneseq
    %v1129 = vshrl.u32 %v1128, 7
    %v1130 = vsub.s32 %v1127, %v1129
    %v1131 = vrot.slane %v1124, %v1130
    %v1132 = vcombine.low %v1036, %v1043
    %v1134 = vunpack.c.l.s4 1983009808
    %v1135 = vunpack.c.0.s8 %v1134
    %v1136 = vlaneseq
    %v1137 = vshrl.u32 %v1136, 7
    %v1138 = vsub.s32 %v1135, %v1137
    %v1139 = vrot.slane %v1132, %v1138
    %v1140 = vcombine.low %v1046, %v1047
    %v1142 = vunpack.c.l.s4 1983009808
    %v1143 = vunpack.c.0.s8 %v1142
    %v1144 = vlaneseq
    %v1145 = vshrl.u32 %v1144, 7
    %v1146 = vsub.s32 %v1143, %v1145
    %v1147 = vrot.slane %v1140, %v1146
    %v1148 = vcombine.low %v1123, %v1131
    %v1149 = vcombine.high %v1123, %v1131
    %v1151 = vunpack.c.l.s4 1934713408
    %v1152 = vunpack.c.0.s8 %v1151
    %v1153 = vlaneseq
    %v1154 = vshrl.u32 %v1153, 7
    %v1155 = vsub.s32 %v1152, %v1154
    %v1156 = vrot.slane %v1148, %v1155
    %v1158 = vunpack.c.l.s4 1934713408
    %v1159 = vunpack.c.0.s8 %v1158
    %v1160 = vlaneseq
    %v1161 = vshrl.u32 %v1160, 7
    %v1162 = vsub.s32 %v1159, %v1161
    %v1163 = vrot.slane %v1149, %v1162
    %v1164 = vcombine.low %v1139, %v1147
    %v1165 = vcombine.high %v1139, %v1147
    %v1167 = vunpack.c.l.s4 1934713408
    %v1168 = vunpack.c.0.s8 %v1167
    %v1169 = vlaneseq
    %v1170 = vshrl.u32 %v1169, 7
    %v1171 = vsub.s32 %v1168, %v1170
    %v1172 = vrot.slane %v1164, %v1171
    %v1174 = vunpack.c.l.s4 1934713408
    %v1175 = vunpack.c.0.s8 %v1174
    %v1176 = vlaneseq
    %v1177 = vshrl.u32 %v1176, 7
    %v1178 = vsub.s32 %v1175, %v1177
    %v1179 = vrot.slane %v1165, %v1178
    %v1180 = vcombine.low %v1156, %v1172
    %v1181 = vcombine.high %v1156, %v1172
    %v1182 = vcombine.low %v1163, %v1179
    %v1183 = vcombine.high %v1163, %v1179
    %v1184 = vpack.c.bf16 %v1112, %v1112
    %v1185 = vpack.c.bf16 %v1180, %v1180
    %v1186 = vpack.c.bf16 %v1113, %v1113
    %v1187 = vpack.c.bf16 %v1181, %v1181
    %v1188 = vpack.c.bf16 %v1114, %v1114
    %v1189 = vpack.c.bf16 %v1182, %v1182
    %v1190 = vpack.c.bf16 %v1115, %v1115
    %v1191 = vpack.c.bf16 %v1183, %v1183
    %1192 = vrot.lane.b32.xlu0 %v294, 96
    %v1193 = vpop.permute.xlu0 %1192
    %1194 = vrot.lane.b32.xlu0 %v297, 96
    %v1195 = vpop.permute.xlu0 %1194
    %1196 = vrot.lane.b32.xlu0 %v895, 96
    %v1197 = vpop.permute.xlu0 %1196
    %1198 = vrot.lane.b32.xlu0 %v897, 96
    %v1199 = vpop.permute.xlu0 %1198
    %1200 = vrot.lane.b32.xlu0 %v901, 96
    %v1201 = vpop.permute.xlu0 %1200
    %1202 = vrot.lane.b32.xlu0 %v903, 96
    %v1203 = vpop.permute.xlu0 %1202
    %1204 = vrot.lane.b32.xlu0 %v907, 96
    %v1205 = vpop.permute.xlu0 %1204
    %1206 = vrot.lane.b32.xlu0 %v909, 96
    %v1207 = vpop.permute.xlu0 %1206
    %v1216 = vcombine.low %v1193, %v1201
    %v1217 = vcombine.high %v1193, %v1201
    %v1219 = vunpack.c.l.s4 1983009808
    %v1220 = vunpack.c.0.s8 %v1219
    %v1221 = vlaneseq
    %v1222 = vshrl.u32 %v1221, 7
    %v1223 = vsub.s32 %v1220, %v1222
    %v1224 = vrot.slane %v1216, %v1223
    %v1226 = vunpack.c.l.s4 1983009808
    %v1227 = vunpack.c.0.s8 %v1226
    %v1228 = vlaneseq
    %v1229 = vshrl.u32 %v1228, 7
    %v1230 = vsub.s32 %v1227, %v1229
    %v1231 = vrot.slane %v1217, %v1230
    %v1232 = vcombine.low %v1197, %v1205
    %v1233 = vcombine.high %v1197, %v1205
    %v1235 = vunpack.c.l.s4 1983009808
    %v1236 = vunpack.c.0.s8 %v1235
    %v1237 = vlaneseq
    %v1238 = vshrl.u32 %v1237, 7
    %v1239 = vsub.s32 %v1236, %v1238
    %v1240 = vrot.slane %v1232, %v1239
    %v1242 = vunpack.c.l.s4 1983009808
    %v1243 = vunpack.c.0.s8 %v1242
    %v1244 = vlaneseq
    %v1245 = vshrl.u32 %v1244, 7
    %v1246 = vsub.s32 %v1243, %v1245
    %v1247 = vrot.slane %v1233, %v1246
    %v1248 = vcombine.low %v1224, %v1240
    %v1249 = vcombine.high %v1224, %v1240
    %v1251 = vunpack.c.l.s4 1934713408
    %v1252 = vunpack.c.0.s8 %v1251
    %v1253 = vlaneseq
    %v1254 = vshrl.u32 %v1253, 7
    %v1255 = vsub.s32 %v1252, %v1254
    %v1256 = vrot.slane %v1248, %v1255
    %v1258 = vunpack.c.l.s4 1934713408
    %v1259 = vunpack.c.0.s8 %v1258
    %v1260 = vlaneseq
    %v1261 = vshrl.u32 %v1260, 7
    %v1262 = vsub.s32 %v1259, %v1261
    %v1263 = vrot.slane %v1249, %v1262
    %v1264 = vcombine.low %v1231, %v1247
    %v1265 = vcombine.high %v1231, %v1247
    %v1267 = vunpack.c.l.s4 1934713408
    %v1268 = vunpack.c.0.s8 %v1267
    %v1269 = vlaneseq
    %v1270 = vshrl.u32 %v1269, 7
    %v1271 = vsub.s32 %v1268, %v1270
    %v1272 = vrot.slane %v1264, %v1271
    %v1274 = vunpack.c.l.s4 1934713408
    %v1275 = vunpack.c.0.s8 %v1274
    %v1276 = vlaneseq
    %v1277 = vshrl.u32 %v1276, 7
    %v1278 = vsub.s32 %v1275, %v1277
    %v1279 = vrot.slane %v1265, %v1278
    %v1280 = vcombine.high %v1256, 0.0
    %v1281 = vcombine.high %v1263, 0.0
    %v1282 = vcombine.high %v1272, 0.0
    %v1283 = vcombine.high %v1279, 0.0
    %v1284 = vcombine.low %v1195, %v1203
    %v1285 = vcombine.high %v1195, %v1203
    %v1287 = vunpack.c.l.s4 1983009808
    %v1288 = vunpack.c.0.s8 %v1287
    %v1289 = vlaneseq
    %v1290 = vshrl.u32 %v1289, 7
    %v1291 = vsub.s32 %v1288, %v1290
    %v1292 = vrot.slane %v1284, %v1291
    %v1294 = vunpack.c.l.s4 1983009808
    %v1295 = vunpack.c.0.s8 %v1294
    %v1296 = vlaneseq
    %v1297 = vshrl.u32 %v1296, 7
    %v1298 = vsub.s32 %v1295, %v1297
    %v1299 = vrot.slane %v1285, %v1298
    %v1300 = vcombine.low %v1199, %v1207
    %v1301 = vcombine.high %v1199, %v1207
    %v1303 = vunpack.c.l.s4 1983009808
    %v1304 = vunpack.c.0.s8 %v1303
    %v1305 = vlaneseq
    %v1306 = vshrl.u32 %v1305, 7
    %v1307 = vsub.s32 %v1304, %v1306
    %v1308 = vrot.slane %v1300, %v1307
    %v1310 = vunpack.c.l.s4 1983009808
    %v1311 = vunpack.c.0.s8 %v1310
    %v1312 = vlaneseq
    %v1313 = vshrl.u32 %v1312, 7
    %v1314 = vsub.s32 %v1311, %v1313
    %v1315 = vrot.slane %v1301, %v1314
    %v1316 = vcombine.low %v1292, %v1308
    %v1317 = vcombine.high %v1292, %v1308
    %v1319 = vunpack.c.l.s4 1934713408
    %v1320 = vunpack.c.0.s8 %v1319
    %v1321 = vlaneseq
    %v1322 = vshrl.u32 %v1321, 7
    %v1323 = vsub.s32 %v1320, %v1322
    %v1324 = vrot.slane %v1316, %v1323
    %v1326 = vunpack.c.l.s4 1934713408
    %v1327 = vunpack.c.0.s8 %v1326
    %v1328 = vlaneseq
    %v1329 = vshrl.u32 %v1328, 7
    %v1330 = vsub.s32 %v1327, %v1329
    %v1331 = vrot.slane %v1317, %v1330
    %v1332 = vcombine.low %v1299, %v1315
    %v1333 = vcombine.high %v1299, %v1315
    %v1335 = vunpack.c.l.s4 1934713408
    %v1336 = vunpack.c.0.s8 %v1335
    %v1337 = vlaneseq
    %v1338 = vshrl.u32 %v1337, 7
    %v1339 = vsub.s32 %v1336, %v1338
    %v1340 = vrot.slane %v1332, %v1339
    %v1342 = vunpack.c.l.s4 1934713408
    %v1343 = vunpack.c.0.s8 %v1342
    %v1344 = vlaneseq
    %v1345 = vshrl.u32 %v1344, 7
    %v1346 = vsub.s32 %v1343, %v1345
    %v1347 = vrot.slane %v1333, %v1346
    %v1348 = vcombine.high %v1324, 0.0
    %v1349 = vcombine.high %v1331, 0.0
    %v1350 = vcombine.high %v1340, 0.0
    %v1351 = vcombine.high %v1347, 0.0
    %v1352 = vcombine.low %v1256, %v1263
    %v1354 = vunpack.c.l.s4 1983009808
    %v1355 = vunpack.c.0.s8 %v1354
    %v1356 = vlaneseq
    %v1357 = vshrl.u32 %v1356, 7
    %v1358 = vsub.s32 %v1355, %v1357
    %v1359 = vrot.slane %v1352, %v1358
    %v1360 = vcombine.low %v1280, %v1281
    %v1362 = vunpack.c.l.s4 1983009808
    %v1363 = vunpack.c.0.s8 %v1362
    %v1364 = vlaneseq
    %v1365 = vshrl.u32 %v1364, 7
    %v1366 = vsub.s32 %v1363, %v1365
    %v1367 = vrot.slane %v1360, %v1366
    %v1368 = vcombine.low %v1272, %v1279
    %v1370 = vunpack.c.l.s4 1983009808
    %v1371 = vunpack.c.0.s8 %v1370
    %v1372 = vlaneseq
    %v1373 = vshrl.u32 %v1372, 7
    %v1374 = vsub.s32 %v1371, %v1373
    %v1375 = vrot.slane %v1368, %v1374
    %v1376 = vcombine.low %v1282, %v1283
    %v1378 = vunpack.c.l.s4 1983009808
    %v1379 = vunpack.c.0.s8 %v1378
    %v1380 = vlaneseq
    %v1381 = vshrl.u32 %v1380, 7
    %v1382 = vsub.s32 %v1379, %v1381
    %v1383 = vrot.slane %v1376, %v1382
    %v1384 = vcombine.low %v1359, %v1367
    %v1385 = vcombine.high %v1359, %v1367
    %v1387 = vunpack.c.l.s4 1934713408
    %v1388 = vunpack.c.0.s8 %v1387
    %v1389 = vlaneseq
    %v1390 = vshrl.u32 %v1389, 7
    %v1391 = vsub.s32 %v1388, %v1390
    %v1392 = vrot.slane %v1384, %v1391
    %v1394 = vunpack.c.l.s4 1934713408
    %v1395 = vunpack.c.0.s8 %v1394
    %v1396 = vlaneseq
    %v1397 = vshrl.u32 %v1396, 7
    %v1398 = vsub.s32 %v1395, %v1397
    %v1399 = vrot.slane %v1385, %v1398
    %v1400 = vcombine.low %v1375, %v1383
    %v1401 = vcombine.high %v1375, %v1383
    %v1403 = vunpack.c.l.s4 1934713408
    %v1404 = vunpack.c.0.s8 %v1403
    %v1405 = vlaneseq
    %v1406 = vshrl.u32 %v1405, 7
    %v1407 = vsub.s32 %v1404, %v1406
    %v1408 = vrot.slane %v1400, %v1407
    %v1410 = vunpack.c.l.s4 1934713408
    %v1411 = vunpack.c.0.s8 %v1410
    %v1412 = vlaneseq
    %v1413 = vshrl.u32 %v1412, 7
    %v1414 = vsub.s32 %v1411, %v1413
    %v1415 = vrot.slane %v1401, %v1414
    %v1416 = vcombine.low %v1392, %v1408
    %v1417 = vcombine.high %v1392, %v1408
    %v1418 = vcombine.low %v1399, %v1415
    %v1419 = vcombine.high %v1399, %v1415
    %v1420 = vcombine.low %v1324, %v1331
    %v1422 = vunpack.c.l.s4 1983009808
    %v1423 = vunpack.c.0.s8 %v1422
    %v1424 = vlaneseq
    %v1425 = vshrl.u32 %v1424, 7
    %v1426 = vsub.s32 %v1423, %v1425
    %v1427 = vrot.slane %v1420, %v1426
    %v1428 = vcombine.low %v1348, %v1349
    %v1430 = vunpack.c.l.s4 1983009808
    %v1431 = vunpack.c.0.s8 %v1430
    %v1432 = vlaneseq
    %v1433 = vshrl.u32 %v1432, 7
    %v1434 = vsub.s32 %v1431, %v1433
    %v1435 = vrot.slane %v1428, %v1434
    %v1436 = vcombine.low %v1340, %v1347
    %v1438 = vunpack.c.l.s4 1983009808
    %v1439 = vunpack.c.0.s8 %v1438
    %v1440 = vlaneseq
    %v1441 = vshrl.u32 %v1440, 7
    %v1442 = vsub.s32 %v1439, %v1441
    %v1443 = vrot.slane %v1436, %v1442
    %v1444 = vcombine.low %v1350, %v1351
    %v1446 = vunpack.c.l.s4 1983009808
    %v1447 = vunpack.c.0.s8 %v1446
    %v1448 = vlaneseq
    %v1449 = vshrl.u32 %v1448, 7
    %v1450 = vsub.s32 %v1447, %v1449
    %v1451 = vrot.slane %v1444, %v1450
    %v1452 = vcombine.low %v1427, %v1435
    %v1453 = vcombine.high %v1427, %v1435
    %v1455 = vunpack.c.l.s4 1934713408
    %v1456 = vunpack.c.0.s8 %v1455
    %v1457 = vlaneseq
    %v1458 = vshrl.u32 %v1457, 7
    %v1459 = vsub.s32 %v1456, %v1458
    %v1460 = vrot.slane %v1452, %v1459
    %v1462 = vunpack.c.l.s4 1934713408
    %v1463 = vunpack.c.0.s8 %v1462
    %v1464 = vlaneseq
    %v1465 = vshrl.u32 %v1464, 7
    %v1466 = vsub.s32 %v1463, %v1465
    %v1467 = vrot.slane %v1453, %v1466
    %v1468 = vcombine.low %v1443, %v1451
    %v1469 = vcombine.high %v1443, %v1451
    %v1471 = vunpack.c.l.s4 1934713408
    %v1472 = vunpack.c.0.s8 %v1471
    %v1473 = vlaneseq
    %v1474 = vshrl.u32 %v1473, 7
    %v1475 = vsub.s32 %v1472, %v1474
    %v1476 = vrot.slane %v1468, %v1475
    %v1478 = vunpack.c.l.s4 1934713408
    %v1479 = vunpack.c.0.s8 %v1478
    %v1480 = vlaneseq
    %v1481 = vshrl.u32 %v1480, 7
    %v1482 = vsub.s32 %v1479, %v1481
    %v1483 = vrot.slane %v1469, %v1482
    %v1484 = vcombine.low %v1460, %v1476
    %v1485 = vcombine.high %v1460, %v1476
    %v1486 = vcombine.low %v1467, %v1483
    %v1487 = vcombine.high %v1467, %v1483
    %v1488 = vpack.c.bf16 %v1416, %v1416
    %v1489 = vpack.c.bf16 %v1484, %v1484
    %v1490 = vpack.c.bf16 %v1417, %v1417
    %v1491 = vpack.c.bf16 %v1485, %v1485
    %v1492 = vpack.c.bf16 %v1418, %v1418
    %v1493 = vpack.c.bf16 %v1486, %v1486
    %v1494 = vpack.c.bf16 %v1419, %v1419
    %v1495 = vpack.c.bf16 %v1487, %v1487
    %vm1496 = vcmask 64512
    %v1498 = vsel %vm1496, %v884, 0
    %v1501 = vsel %vm1496, %v1184, 0
    %1503 = vmatprep.subr.bf16.mxu0 0
    %1504 = vmatpush1.bf16.xpose.msra.mxu0 %v1501
    %1505 = vmatprep.subr.bf16.mxu0 0
    %1506 = vmatpush1.bf16.xpose.msra.mxu0 0
    %1507 = vmatprep.subr.bf16.mxu0 0
    %1508 = vmatpush1.bf16.xpose.msra.mxu0 0
    %1509 = vmatprep.subr.bf16.mxu0 0
    %1510 = vmatpush1.bf16.xpose.msra.mxu0 0
    %1511 = vmatprep.subr.bf16.mxu0 0
    %1512 = vmatpush1.bf16.xpose.msra.mxu0 0
    %1513 = vmatprep.subr.bf16.mxu0 0
    %1514 = vmatpush1.bf16.xpose.msra.mxu0 0
    %1515 = vmatprep.subr.bf16.mxu0 0
    %1516 = vmatpush1.bf16.xpose.msra.mxu0 0
    %1517 = vmatprep.subr.bf16.mxu0 0
    %1518 = vmatpush1.bf16.xpose.msra.mxu0 0
    %1519 = vmatprep.subr.bf16.mxu0 0
    %1520 = vmatpush1.bf16.xpose.msra.mxu0 0
    %1521 = vmatprep.subr.bf16.mxu0 0
    %1522 = vmatpush1.bf16.xpose.msra.mxu0 0
    %1523 = vmatprep.subr.bf16.mxu0 0
    %1524 = vmatpush1.bf16.xpose.msra.mxu0 0
    %1525 = vmatprep.subr.bf16.mxu0 0
    %1526 = vmatpush1.bf16.xpose.msra.mxu0 0
    %1527 = vmatprep.subr.bf16.mxu0 0
    %1528 = vmatpush1.bf16.xpose.msra.mxu0 0
    %1529 = vmatprep.subr.bf16.mxu0 0
    %1530 = vmatpush1.bf16.xpose.msra.mxu0 0
    %1531 = vmatprep.subr.bf16.mxu0 0
    %1532 = vmatpush1.bf16.xpose.msra.mxu0 0
    %1533 = vmatprep.subr.bf16.mxu0 0
    %1534 = vmatpush1.bf16.xpose.msra.mxu0 0
    %1535 = vmatprep.mubr.bf16.mxu0 0
    %1536 = vmatmul.mubr.bf16.gmra.mrb[0].mxu0 %v1498
    %v1537 = vpop.f32.mrb[0].mxu0
    %v1538 = vadd.f32 0.0, %v1537
    %v1539 = vpop.f32.mrb[0].mxu0
    %v1540 = vpop.f32.mrb[0].mxu0
    %v1541 = vadd.f32 0.0, %v1540
    %v1542 = vpop.f32.mrb[0].mxu0
    %1543 = vdwg.mxu0
    %v1545 = vsel %vm1496, %v885, 0
    %v1548 = vsel %vm1496, %v1185, 0
    %1550 = vmatprep.subr.bf16.mxu0 0
    %1551 = vmatpush1.bf16.xpose.msra.mxu0 %v1548
    %1552 = vmatprep.subr.bf16.mxu0 0
    %1553 = vmatpush1.bf16.xpose.msra.mxu0 0
    %1554 = vmatprep.subr.bf16.mxu0 0
    %1555 = vmatpush1.bf16.xpose.msra.mxu0 0
    %1556 = vmatprep.subr.bf16.mxu0 0
    %1557 = vmatpush1.bf16.xpose.msra.mxu0 0
    %1558 = vmatprep.subr.bf16.mxu0 0
    %1559 = vmatpush1.bf16.xpose.msra.mxu0 0
    %1560 = vmatprep.subr.bf16.mxu0 0
    %1561 = vmatpush1.bf16.xpose.msra.mxu0 0
    %1562 = vmatprep.subr.bf16.mxu0 0
    %1563 = vmatpush1.bf16.xpose.msra.mxu0 0
    %1564 = vmatprep.subr.bf16.mxu0 0
    %1565 = vmatpush1.bf16.xpose.msra.mxu0 0
    %1566 = vmatprep.subr.bf16.mxu0 0
    %1567 = vmatpush1.bf16.xpose.msra.mxu0 0
    %1568 = vmatprep.subr.bf16.mxu0 0
    %1569 = vmatpush1.bf16.xpose.msra.mxu0 0
    %1570 = vmatprep.subr.bf16.mxu0 0
    %1571 = vmatpush1.bf16.xpose.msra.mxu0 0
    %1572 = vmatprep.subr.bf16.mxu0 0
    %1573 = vmatpush1.bf16.xpose.msra.mxu0 0
    %1574 = vmatprep.subr.bf16.mxu0 0
    %1575 = vmatpush1.bf16.xpose.msra.mxu0 0
    %1576 = vmatprep.subr.bf16.mxu0 0
    %1577 = vmatpush1.bf16.xpose.msra.mxu0 0
    %1578 = vmatprep.subr.bf16.mxu0 0
    %1579 = vmatpush1.bf16.xpose.msra.mxu0 0
    %1580 = vmatprep.subr.bf16.mxu0 0
    %1581 = vmatpush1.bf16.xpose.msra.mxu0 0
    %1582 = vmatprep.mubr.bf16.mxu0 0
    %1583 = vmatmul.mubr.bf16.gmra.mrb[0].mxu0 %v1545
    %v1584 = vpop.f32.mrb[0].mxu0
    %v1585 = vadd.f32 0.0, %v1584
    %v1586 = vpop.f32.mrb[0].mxu0
    %v1587 = vpop.f32.mrb[0].mxu0
    %v1588 = vadd.f32 0.0, %v1587
    %v1589 = vpop.f32.mrb[0].mxu0
    %1590 = vdwg.mxu0
    %v1592 = vsel %vm1496, %v886, 0
    %v1595 = vsel %vm1496, %v1186, 0
    %1597 = vmatprep.subr.bf16.mxu0 0
    %1598 = vmatpush1.bf16.xpose.msra.mxu0 %v1595
    %1599 = vmatprep.subr.bf16.mxu0 0
    %1600 = vmatpush1.bf16.xpose.msra.mxu0 0
    %1601 = vmatprep.subr.bf16.mxu0 0
    %1602 = vmatpush1.bf16.xpose.msra.mxu0 0
    %1603 = vmatprep.subr.bf16.mxu0 0
    %1604 = vmatpush1.bf16.xpose.msra.mxu0 0
    %1605 = vmatprep.subr.bf16.mxu0 0
    %1606 = vmatpush1.bf16.xpose.msra.mxu0 0
    %1607 = vmatprep.subr.bf16.mxu0 0
    %1608 = vmatpush1.bf16.xpose.msra.mxu0 0
    %1609 = vmatprep.subr.bf16.mxu0 0
    %1610 = vmatpush1.bf16.xpose.msra.mxu0 0
    %1611 = vmatprep.subr.bf16.mxu0 0
    %1612 = vmatpush1.bf16.xpose.msra.mxu0 0
    %1613 = vmatprep.subr.bf16.mxu0 0
    %1614 = vmatpush1.bf16.xpose.msra.mxu0 0
    %1615 = vmatprep.subr.bf16.mxu0 0
    %1616 = vmatpush1.bf16.xpose.msra.mxu0 0
    %1617 = vmatprep.subr.bf16.mxu0 0
    %1618 = vmatpush1.bf16.xpose.msra.mxu0 0
    %1619 = vmatprep.subr.bf16.mxu0 0
    %1620 = vmatpush1.bf16.xpose.msra.mxu0 0
    %1621 = vmatprep.subr.bf16.mxu0 0
    %1622 = vmatpush1.bf16.xpose.msra.mxu0 0
    %1623 = vmatprep.subr.bf16.mxu0 0
    %1624 = vmatpush1.bf16.xpose.msra.mxu0 0
    %1625 = vmatprep.subr.bf16.mxu0 0
    %1626 = vmatpush1.bf16.xpose.msra.mxu0 0
    %1627 = vmatprep.subr.bf16.mxu0 0
    %1628 = vmatpush1.bf16.xpose.msra.mxu0 0
    %1629 = vmatprep.mubr.bf16.mxu0 0
    %1630 = vmatmul.mubr.bf16.gmra.mrb[0].mxu0 %v1592
    %v1631 = vpop.f32.mrb[0].mxu0
    %v1632 = vadd.f32 0.0, %v1631
    %v1633 = vpop.f32.mrb[0].mxu0
    %v1634 = vpop.f32.mrb[0].mxu0
    %v1635 = vadd.f32 0.0, %v1634
    %v1636 = vpop.f32.mrb[0].mxu0
    %1637 = vdwg.mxu0
    %v1639 = vsel %vm1496, %v887, 0
    %v1642 = vsel %vm1496, %v1187, 0
    %1644 = vmatprep.subr.bf16.mxu0 0
    %1645 = vmatpush1.bf16.xpose.msra.mxu0 %v1642
    %1646 = vmatprep.subr.bf16.mxu0 0
    %1647 = vmatpush1.bf16.xpose.msra.mxu0 0
    %1648 = vmatprep.subr.bf16.mxu0 0
    %1649 = vmatpush1.bf16.xpose.msra.mxu0 0
    %1650 = vmatprep.subr.bf16.mxu0 0
    %1651 = vmatpush1.bf16.xpose.msra.mxu0 0
    %1652 = vmatprep.subr.bf16.mxu0 0
    %1653 = vmatpush1.bf16.xpose.msra.mxu0 0
    %1654 = vmatprep.subr.bf16.mxu0 0
    %1655 = vmatpush1.bf16.xpose.msra.mxu0 0
    %1656 = vmatprep.subr.bf16.mxu0 0
    %1657 = vmatpush1.bf16.xpose.msra.mxu0 0
    %1658 = vmatprep.subr.bf16.mxu0 0
    %1659 = vmatpush1.bf16.xpose.msra.mxu0 0
    %1660 = vmatprep.subr.bf16.mxu0 0
    %1661 = vmatpush1.bf16.xpose.msra.mxu0 0
    %1662 = vmatprep.subr.bf16.mxu0 0
    %1663 = vmatpush1.bf16.xpose.msra.mxu0 0
    %1664 = vmatprep.subr.bf16.mxu0 0
    %1665 = vmatpush1.bf16.xpose.msra.mxu0 0
    %1666 = vmatprep.subr.bf16.mxu0 0
    %1667 = vmatpush1.bf16.xpose.msra.mxu0 0
    %1668 = vmatprep.subr.bf16.mxu0 0
    %1669 = vmatpush1.bf16.xpose.msra.mxu0 0
    %1670 = vmatprep.subr.bf16.mxu0 0
    %1671 = vmatpush1.bf16.xpose.msra.mxu0 0
    %1672 = vmatprep.subr.bf16.mxu0 0
    %1673 = vmatpush1.bf16.xpose.msra.mxu0 0
    %1674 = vmatprep.subr.bf16.mxu0 0
    %1675 = vmatpush1.bf16.xpose.msra.mxu0 0
    %1676 = vmatprep.mubr.bf16.mxu0 0
    %1677 = vmatmul.mubr.bf16.gmra.mrb[0].mxu0 %v1639
    %v1678 = vpop.f32.mrb[0].mxu0
    %v1679 = vadd.f32 0.0, %v1678
    %v1680 = vpop.f32.mrb[0].mxu0
    %v1681 = vpop.f32.mrb[0].mxu0
    %v1682 = vadd.f32 0.0, %v1681
    %v1683 = vpop.f32.mrb[0].mxu0
    %1684 = vdwg.mxu0
    %v1686 = vsel %vm1496, %v888, 0
    %v1689 = vsel %vm1496, %v1188, 0
    %1691 = vmatprep.subr.bf16.mxu0 0
    %1692 = vmatpush1.bf16.xpose.msra.mxu0 %v1689
    %1693 = vmatprep.subr.bf16.mxu0 0
    %1694 = vmatpush1.bf16.xpose.msra.mxu0 0
    %1695 = vmatprep.subr.bf16.mxu0 0
    %1696 = vmatpush1.bf16.xpose.msra.mxu0 0
    %1697 = vmatprep.subr.bf16.mxu0 0
    %1698 = vmatpush1.bf16.xpose.msra.mxu0 0
    %1699 = vmatprep.subr.bf16.mxu0 0
    %1700 = vmatpush1.bf16.xpose.msra.mxu0 0
    %1701 = vmatprep.subr.bf16.mxu0 0
    %1702 = vmatpush1.bf16.xpose.msra.mxu0 0
    %1703 = vmatprep.subr.bf16.mxu0 0
    %1704 = vmatpush1.bf16.xpose.msra.mxu0 0
    %1705 = vmatprep.subr.bf16.mxu0 0
    %1706 = vmatpush1.bf16.xpose.msra.mxu0 0
    %1707 = vmatprep.subr.bf16.mxu0 0
    %1708 = vmatpush1.bf16.xpose.msra.mxu0 0
    %1709 = vmatprep.subr.bf16.mxu0 0
    %1710 = vmatpush1.bf16.xpose.msra.mxu0 0
    %1711 = vmatprep.subr.bf16.mxu0 0
    %1712 = vmatpush1.bf16.xpose.msra.mxu0 0
    %1713 = vmatprep.subr.bf16.mxu0 0
    %1714 = vmatpush1.bf16.xpose.msra.mxu0 0
    %1715 = vmatprep.subr.bf16.mxu0 0
    %1716 = vmatpush1.bf16.xpose.msra.mxu0 0
    %1717 = vmatprep.subr.bf16.mxu0 0
    %1718 = vmatpush1.bf16.xpose.msra.mxu0 0
    %1719 = vmatprep.subr.bf16.mxu0 0
    %1720 = vmatpush1.bf16.xpose.msra.mxu0 0
    %1721 = vmatprep.subr.bf16.mxu0 0
    %1722 = vmatpush1.bf16.xpose.msra.mxu0 0
    %1723 = vmatprep.mubr.bf16.mxu0 0
    %1724 = vmatmul.mubr.bf16.gmra.mrb[0].mxu0 %v1686
    %v1725 = vpop.f32.mrb[0].mxu0
    %v1726 = vadd.f32 0.0, %v1725
    %v1727 = vpop.f32.mrb[0].mxu0
    %v1728 = vpop.f32.mrb[0].mxu0
    %v1729 = vadd.f32 0.0, %v1728
    %v1730 = vpop.f32.mrb[0].mxu0
    %1731 = vdwg.mxu0
    %v1733 = vsel %vm1496, %v889, 0
    %v1736 = vsel %vm1496, %v1189, 0
    %1738 = vmatprep.subr.bf16.mxu0 0
    %1739 = vmatpush1.bf16.xpose.msra.mxu0 %v1736
    %1740 = vmatprep.subr.bf16.mxu0 0
    %1741 = vmatpush1.bf16.xpose.msra.mxu0 0
    %1742 = vmatprep.subr.bf16.mxu0 0
    %1743 = vmatpush1.bf16.xpose.msra.mxu0 0
    %1744 = vmatprep.subr.bf16.mxu0 0
    %1745 = vmatpush1.bf16.xpose.msra.mxu0 0
    %1746 = vmatprep.subr.bf16.mxu0 0
    %1747 = vmatpush1.bf16.xpose.msra.mxu0 0
    %1748 = vmatprep.subr.bf16.mxu0 0
    %1749 = vmatpush1.bf16.xpose.msra.mxu0 0
    %1750 = vmatprep.subr.bf16.mxu0 0
    %1751 = vmatpush1.bf16.xpose.msra.mxu0 0
    %1752 = vmatprep.subr.bf16.mxu0 0
    %1753 = vmatpush1.bf16.xpose.msra.mxu0 0
    %1754 = vmatprep.subr.bf16.mxu0 0
    %1755 = vmatpush1.bf16.xpose.msra.mxu0 0
    %1756 = vmatprep.subr.bf16.mxu0 0
    %1757 = vmatpush1.bf16.xpose.msra.mxu0 0
    %1758 = vmatprep.subr.bf16.mxu0 0
    %1759 = vmatpush1.bf16.xpose.msra.mxu0 0
    %1760 = vmatprep.subr.bf16.mxu0 0
    %1761 = vmatpush1.bf16.xpose.msra.mxu0 0
    %1762 = vmatprep.subr.bf16.mxu0 0
    %1763 = vmatpush1.bf16.xpose.msra.mxu0 0
    %1764 = vmatprep.subr.bf16.mxu0 0
    %1765 = vmatpush1.bf16.xpose.msra.mxu0 0
    %1766 = vmatprep.subr.bf16.mxu0 0
    %1767 = vmatpush1.bf16.xpose.msra.mxu0 0
    %1768 = vmatprep.subr.bf16.mxu0 0
    %1769 = vmatpush1.bf16.xpose.msra.mxu0 0
    %1770 = vmatprep.mubr.bf16.mxu0 0
    %1771 = vmatmul.mubr.bf16.gmra.mrb[0].mxu0 %v1733
    %v1772 = vpop.f32.mrb[0].mxu0
    %v1773 = vadd.f32 0.0, %v1772
    %v1774 = vpop.f32.mrb[0].mxu0
    %v1775 = vpop.f32.mrb[0].mxu0
    %v1776 = vadd.f32 0.0, %v1775
    %v1777 = vpop.f32.mrb[0].mxu0
    %1778 = vdwg.mxu0
    %v1780 = vsel %vm1496, %v890, 0
    %v1783 = vsel %vm1496, %v1190, 0
    %1785 = vmatprep.subr.bf16.mxu0 0
    %1786 = vmatpush1.bf16.xpose.msra.mxu0 %v1783
    %1787 = vmatprep.subr.bf16.mxu0 0
    %1788 = vmatpush1.bf16.xpose.msra.mxu0 0
    %1789 = vmatprep.subr.bf16.mxu0 0
    %1790 = vmatpush1.bf16.xpose.msra.mxu0 0
    %1791 = vmatprep.subr.bf16.mxu0 0
    %1792 = vmatpush1.bf16.xpose.msra.mxu0 0
    %1793 = vmatprep.subr.bf16.mxu0 0
    %1794 = vmatpush1.bf16.xpose.msra.mxu0 0
    %1795 = vmatprep.subr.bf16.mxu0 0
    %1796 = vmatpush1.bf16.xpose.msra.mxu0 0
    %1797 = vmatprep.subr.bf16.mxu0 0
    %1798 = vmatpush1.bf16.xpose.msra.mxu0 0
    %1799 = vmatprep.subr.bf16.mxu0 0
    %1800 = vmatpush1.bf16.xpose.msra.mxu0 0
    %1801 = vmatprep.subr.bf16.mxu0 0
    %1802 = vmatpush1.bf16.xpose.msra.mxu0 0
    %1803 = vmatprep.subr.bf16.mxu0 0
    %1804 = vmatpush1.bf16.xpose.msra.mxu0 0
    %1805 = vmatprep.subr.bf16.mxu0 0
    %1806 = vmatpush1.bf16.xpose.msra.mxu0 0
    %1807 = vmatprep.subr.bf16.mxu0 0
    %1808 = vmatpush1.bf16.xpose.msra.mxu0 0
    %1809 = vmatprep.subr.bf16.mxu0 0
    %1810 = vmatpush1.bf16.xpose.msra.mxu0 0
    %1811 = vmatprep.subr.bf16.mxu0 0
    %1812 = vmatpush1.bf16.xpose.msra.mxu0 0
    %1813 = vmatprep.subr.bf16.mxu0 0
    %1814 = vmatpush1.bf16.xpose.msra.mxu0 0
    %1815 = vmatprep.subr.bf16.mxu0 0
    %1816 = vmatpush1.bf16.xpose.msra.mxu0 0
    %1817 = vmatprep.mubr.bf16.mxu0 0
    %1818 = vmatmul.mubr.bf16.gmra.mrb[0].mxu0 %v1780
    %v1819 = vpop.f32.mrb[0].mxu0
    %v1820 = vadd.f32 0.0, %v1819
    %v1821 = vpop.f32.mrb[0].mxu0
    %v1822 = vpop.f32.mrb[0].mxu0
    %v1823 = vadd.f32 0.0, %v1822
    %v1824 = vpop.f32.mrb[0].mxu0
    %1825 = vdwg.mxu0
    %v1827 = vsel %vm1496, %v891, 0
    %v1830 = vsel %vm1496, %v1191, 0
    %1832 = vmatprep.subr.bf16.mxu0 0
    %1833 = vmatpush1.bf16.xpose.msra.mxu0 %v1830
    %1834 = vmatprep.subr.bf16.mxu0 0
    %1835 = vmatpush1.bf16.xpose.msra.mxu0 0
    %1836 = vmatprep.subr.bf16.mxu0 0
    %1837 = vmatpush1.bf16.xpose.msra.mxu0 0
    %1838 = vmatprep.subr.bf16.mxu0 0
    %1839 = vmatpush1.bf16.xpose.msra.mxu0 0
    %1840 = vmatprep.subr.bf16.mxu0 0
    %1841 = vmatpush1.bf16.xpose.msra.mxu0 0
    %1842 = vmatprep.subr.bf16.mxu0 0
    %1843 = vmatpush1.bf16.xpose.msra.mxu0 0
    %1844 = vmatprep.subr.bf16.mxu0 0
    %1845 = vmatpush1.bf16.xpose.msra.mxu0 0
    %1846 = vmatprep.subr.bf16.mxu0 0
    %1847 = vmatpush1.bf16.xpose.msra.mxu0 0
    %1848 = vmatprep.subr.bf16.mxu0 0
    %1849 = vmatpush1.bf16.xpose.msra.mxu0 0
    %1850 = vmatprep.subr.bf16.mxu0 0
    %1851 = vmatpush1.bf16.xpose.msra.mxu0 0
    %1852 = vmatprep.subr.bf16.mxu0 0
    %1853 = vmatpush1.bf16.xpose.msra.mxu0 0
    %1854 = vmatprep.subr.bf16.mxu0 0
    %1855 = vmatpush1.bf16.xpose.msra.mxu0 0
    %1856 = vmatprep.subr.bf16.mxu0 0
    %1857 = vmatpush1.bf16.xpose.msra.mxu0 0
    %1858 = vmatprep.subr.bf16.mxu0 0
    %1859 = vmatpush1.bf16.xpose.msra.mxu0 0
    %1860 = vmatprep.subr.bf16.mxu0 0
    %1861 = vmatpush1.bf16.xpose.msra.mxu0 0
    %1862 = vmatprep.subr.bf16.mxu0 0
    %1863 = vmatpush1.bf16.xpose.msra.mxu0 0
    %1864 = vmatprep.mubr.bf16.mxu0 0
    %1865 = vmatmul.mubr.bf16.gmra.mrb[0].mxu0 %v1827
    %v1866 = vpop.f32.mrb[0].mxu0
    %v1867 = vadd.f32 0.0, %v1866
    %v1868 = vpop.f32.mrb[0].mxu0
    %v1869 = vpop.f32.mrb[0].mxu0
    %v1870 = vadd.f32 0.0, %v1869
    %v1871 = vpop.f32.mrb[0].mxu0
    %1872 = vdwg.mxu0
    %v1873 = vsel %vm1496, %v1538, -inf
    %1874 = vmax.xlane.f32.xlu0 %v1873
    %v1875 = vpop.xlane.xlu0 %1874
    %v1876 = vsel %vm1496, %v1541, -inf
    %1877 = vmax.xlane.f32.xlu0 %v1876
    %v1878 = vpop.xlane.xlu0 %1877
    %v1879 = vsel %vm1496, %v1585, -inf
    %1880 = vmax.xlane.f32.xlu0 %v1879
    %v1881 = vpop.xlane.xlu0 %1880
    %v1882 = vsel %vm1496, %v1588, -inf
    %1883 = vmax.xlane.f32.xlu0 %v1882
    %v1884 = vpop.xlane.xlu0 %1883
    %v1885 = vsel %vm1496, %v1632, -inf
    %1886 = vmax.xlane.f32.xlu0 %v1885
    %v1887 = vpop.xlane.xlu0 %1886
    %v1888 = vsel %vm1496, %v1635, -inf
    %1889 = vmax.xlane.f32.xlu0 %v1888
    %v1890 = vpop.xlane.xlu0 %1889
    %v1891 = vsel %vm1496, %v1679, -inf
    %1892 = vmax.xlane.f32.xlu0 %v1891
    %v1893 = vpop.xlane.xlu0 %1892
    %v1894 = vsel %vm1496, %v1682, -inf
    %1895 = vmax.xlane.f32.xlu0 %v1894
    %v1896 = vpop.xlane.xlu0 %1895
    %v1897 = vsel %vm1496, %v1726, -inf
    %1898 = vmax.xlane.f32.xlu0 %v1897
    %v1899 = vpop.xlane.xlu0 %1898
    %v1900 = vsel %vm1496, %v1729, -inf
    %1901 = vmax.xlane.f32.xlu0 %v1900
    %v1902 = vpop.xlane.xlu0 %1901
    %v1903 = vsel %vm1496, %v1773, -inf
    %1904 = vmax.xlane.f32.xlu0 %v1903
    %v1905 = vpop.xlane.xlu0 %1904
    %v1906 = vsel %vm1496, %v1776, -inf
    %1907 = vmax.xlane.f32.xlu0 %v1906
    %v1908 = vpop.xlane.xlu0 %1907
    %v1909 = vsel %vm1496, %v1820, -inf
    %1910 = vmax.xlane.f32.xlu0 %v1909
    %v1911 = vpop.xlane.xlu0 %1910
    %v1912 = vsel %vm1496, %v1823, -inf
    %1913 = vmax.xlane.f32.xlu0 %v1912
    %v1914 = vpop.xlane.xlu0 %1913
    %v1915 = vsel %vm1496, %v1867, -inf
    %1916 = vmax.xlane.f32.xlu0 %v1915
    %v1917 = vpop.xlane.xlu0 %1916
    %v1918 = vsel %vm1496, %v1870, -inf
    %1919 = vmax.xlane.f32.xlu0 %v1918
    %v1920 = vpop.xlane.xlu0 %1919
    %v1921 = vsub.f32 %v1538, %v1875
    %v1922 = vsub.f32 %v1541, %v1878
    %v1923 = vsub.f32 %v1585, %v1881
    %v1924 = vsub.f32 %v1588, %v1884
    %v1925 = vsub.f32 %v1632, %v1887
    %v1926 = vsub.f32 %v1635, %v1890
    %v1927 = vsub.f32 %v1679, %v1893
    %v1928 = vsub.f32 %v1682, %v1896
    %v1929 = vsub.f32 %v1726, %v1899
    %v1930 = vsub.f32 %v1729, %v1902
    %v1931 = vsub.f32 %v1773, %v1905
    %v1932 = vsub.f32 %v1776, %v1908
    %v1933 = vsub.f32 %v1820, %v1911
    %v1934 = vsub.f32 %v1823, %v1914
    %v1935 = vsub.f32 %v1867, %v1917
    %v1936 = vsub.f32 %v1870, %v1920
    %v1937 = vmul.f32 %v1921, 1.442695
    %v1938 = vpow.pop %v1937
    %v1939 = vmul.f32 %v1922, 1.442695
    %v1940 = vpow.pop %v1939
    %v1941 = vmul.f32 %v1923, 1.442695
    %v1942 = vpow.pop %v1941
    %v1943 = vmul.f32 %v1924, 1.442695
    %v1944 = vpow.pop %v1943
    %v1945 = vmul.f32 %v1925, 1.442695
    %v1946 = vpow.pop %v1945
    %v1947 = vmul.f32 %v1926, 1.442695
    %v1948 = vpow.pop %v1947
    %v1949 = vmul.f32 %v1927, 1.442695
    %v1950 = vpow.pop %v1949
    %v1951 = vmul.f32 %v1928, 1.442695
    %v1952 = vpow.pop %v1951
    %v1953 = vmul.f32 %v1929, 1.442695
    %v1954 = vpow.pop %v1953
    %v1955 = vmul.f32 %v1930, 1.442695
    %v1956 = vpow.pop %v1955
    %v1957 = vmul.f32 %v1931, 1.442695
    %v1958 = vpow.pop %v1957
    %v1959 = vmul.f32 %v1932, 1.442695
    %v1960 = vpow.pop %v1959
    %v1961 = vmul.f32 %v1933, 1.442695
    %v1962 = vpow.pop %v1961
    %v1963 = vmul.f32 %v1934, 1.442695
    %v1964 = vpow.pop %v1963
    %v1965 = vmul.f32 %v1935, 1.442695
    %v1966 = vpow.pop %v1965
    %v1967 = vmul.f32 %v1936, 1.442695
    %v1968 = vpow.pop %v1967
    %v1969 = vsel %vm1496, %v1938, 0.0
    %1970 = vadd.xlane.f32.xlu0 %v1969
    %v1971 = vpop.xlane.xlu0 %1970
    %v1972 = vsel %vm1496, %v1940, 0.0
    %1973 = vadd.xlane.f32.xlu0 %v1972
    %v1974 = vpop.xlane.xlu0 %1973
    %v1975 = vsel %vm1496, %v1942, 0.0
    %1976 = vadd.xlane.f32.xlu0 %v1975
    %v1977 = vpop.xlane.xlu0 %1976
    %v1978 = vsel %vm1496, %v1944, 0.0
    %1979 = vadd.xlane.f32.xlu0 %v1978
    %v1980 = vpop.xlane.xlu0 %1979
    %v1981 = vsel %vm1496, %v1946, 0.0
    %1982 = vadd.xlane.f32.xlu0 %v1981
    %v1983 = vpop.xlane.xlu0 %1982
    %v1984 = vsel %vm1496, %v1948, 0.0
    %1985 = vadd.xlane.f32.xlu0 %v1984
    %v1986 = vpop.xlane.xlu0 %1985
    %v1987 = vsel %vm1496, %v1950, 0.0
    %1988 = vadd.xlane.f32.xlu0 %v1987
    %v1989 = vpop.xlane.xlu0 %1988
    %v1990 = vsel %vm1496, %v1952, 0.0
    %1991 = vadd.xlane.f32.xlu0 %v1990
    %v1992 = vpop.xlane.xlu0 %1991
    %v1993 = vsel %vm1496, %v1954, 0.0
    %1994 = vadd.xlane.f32.xlu0 %v1993
    %v1995 = vpop.xlane.xlu0 %1994
    %v1996 = vsel %vm1496, %v1956, 0.0
    %1997 = vadd.xlane.f32.xlu0 %v1996
    %v1998 = vpop.xlane.xlu0 %1997
    %v1999 = vsel %vm1496, %v1958, 0.0
    %2000 = vadd.xlane.f32.xlu0 %v1999
    %v2001 = vpop.xlane.xlu0 %2000
    %v2002 = vsel %vm1496, %v1960, 0.0
    %2003 = vadd.xlane.f32.xlu0 %v2002
    %v2004 = vpop.xlane.xlu0 %2003
    %v2005 = vsel %vm1496, %v1962, 0.0
    %2006 = vadd.xlane.f32.xlu0 %v2005
    %v2007 = vpop.xlane.xlu0 %2006
    %v2008 = vsel %vm1496, %v1964, 0.0
    %2009 = vadd.xlane.f32.xlu0 %v2008
    %v2010 = vpop.xlane.xlu0 %2009
    %v2011 = vsel %vm1496, %v1966, 0.0
    %2012 = vadd.xlane.f32.xlu0 %v2011
    %v2013 = vpop.xlane.xlu0 %2012
    %v2014 = vsel %vm1496, %v1968, 0.0
    %2015 = vadd.xlane.f32.xlu0 %v2014
    %v2016 = vpop.xlane.xlu0 %2015
    %v2017 = vrcp.pop %v1971
    %v2018 = vrcp.pop %v1974
    %v2019 = vrcp.pop %v1977
    %v2020 = vrcp.pop %v1980
    %v2021 = vrcp.pop %v1983
    %v2022 = vrcp.pop %v1986
    %v2023 = vrcp.pop %v1989
    %v2024 = vrcp.pop %v1992
    %v2025 = vrcp.pop %v1995
    %v2026 = vrcp.pop %v1998
    %v2027 = vrcp.pop %v2001
    %v2028 = vrcp.pop %v2004
    %v2029 = vrcp.pop %v2007
    %v2030 = vrcp.pop %v2010
    %v2031 = vrcp.pop %v2013
    %v2032 = vrcp.pop %v2016
    %v2033 = vmul.f32 %v1938, %v2017
    %v2034 = vmul.f32 %v1940, %v2018
    %v2035 = vmul.f32 %v1942, %v2019
    %v2036 = vmul.f32 %v1944, %v2020
    %v2037 = vmul.f32 %v1946, %v2021
    %v2038 = vmul.f32 %v1948, %v2022
    %v2039 = vmul.f32 %v1950, %v2023
    %v2040 = vmul.f32 %v1952, %v2024
    %v2041 = vmul.f32 %v1954, %v2025
    %v2042 = vmul.f32 %v1956, %v2026
    %v2043 = vmul.f32 %v1958, %v2027
    %v2044 = vmul.f32 %v1960, %v2028
    %v2045 = vmul.f32 %v1962, %v2029
    %v2046 = vmul.f32 %v1964, %v2030
    %v2047 = vmul.f32 %v1966, %v2031
    %v2048 = vmul.f32 %v1968, %v2032
    %v2049 = vpack.c.bf16 %v2034, %v2033
    %v2050 = vpack.c.bf16 %v2036, %v2035
    %v2051 = vpack.c.bf16 %v2038, %v2037
    %v2052 = vpack.c.bf16 %v2040, %v2039
    %v2053 = vpack.c.bf16 %v2042, %v2041
    %v2054 = vpack.c.bf16 %v2044, %v2043
    %v2055 = vpack.c.bf16 %v2046, %v2045
    %v2056 = vpack.c.bf16 %v2048, %v2047
    %v2058 = vsel %vm1496, %v2049, 0
    %vm2060 = vcmask 1043456
    %v2062 = vsel %vm2060, %v1488, 0
    %2064 = vmatprep.subr.bf16.mxu0 0
    %2065 = vmatpush1.bf16.msra.mxu0 %v2062
    %2066 = vmatprep.subr.bf16.mxu0 0
    %2067 = vmatpush1.bf16.msra.mxu0 0
    %2068 = vmatprep.subr.bf16.mxu0 0
    %2069 = vmatpush1.bf16.msra.mxu0 0
    %2070 = vmatprep.subr.bf16.mxu0 0
    %2071 = vmatpush1.bf16.msra.mxu0 0
    %2072 = vmatprep.subr.bf16.mxu0 0
    %2073 = vmatpush1.bf16.msra.mxu0 0
    %2074 = vmatprep.subr.bf16.mxu0 0
    %2075 = vmatpush1.bf16.msra.mxu0 0
    %2076 = vmatprep.subr.bf16.mxu0 0
    %2077 = vmatpush1.bf16.msra.mxu0 0
    %2078 = vmatprep.subr.bf16.mxu0 0
    %2079 = vmatpush1.bf16.msra.mxu0 0
    %2080 = vmatprep.subr.bf16.mxu0 0
    %2081 = vmatpush1.bf16.msra.mxu0 0
    %2082 = vmatprep.subr.bf16.mxu0 0
    %2083 = vmatpush1.bf16.msra.mxu0 0
    %2084 = vmatprep.subr.bf16.mxu0 0
    %2085 = vmatpush1.bf16.msra.mxu0 0
    %2086 = vmatprep.subr.bf16.mxu0 0
    %2087 = vmatpush1.bf16.msra.mxu0 0
    %2088 = vmatprep.subr.bf16.mxu0 0
    %2089 = vmatpush1.bf16.msra.mxu0 0
    %2090 = vmatprep.subr.bf16.mxu0 0
    %2091 = vmatpush1.bf16.msra.mxu0 0
    %2092 = vmatprep.subr.bf16.mxu0 0
    %2093 = vmatpush1.bf16.msra.mxu0 0
    %2094 = vmatprep.subr.bf16.mxu0 0
    %2095 = vmatpush1.bf16.msra.mxu0 0
    %2096 = vmatprep.mubr.bf16.mxu0 0
    %2097 = vmatmul.mubr.bf16.gmra.mrb[0].mxu0 %v2058
    %v2098 = vpop.f32.mrb[0].mxu0
    %v2099 = vadd.f32 0.0, %v2098
    %v2100 = vpop.f32.mrb[0].mxu0
    %v2101 = vpop.f32.mrb[0].mxu0
    %v2102 = vadd.f32 0.0, %v2101
    %v2103 = vpop.f32.mrb[0].mxu0
    %2104 = vdwg.mxu0
    %v2106 = vsel %vm1496, %v2050, 0
    %v2109 = vsel %vm2060, %v1489, 0
    %2111 = vmatprep.subr.bf16.mxu0 0
    %2112 = vmatpush1.bf16.msra.mxu0 %v2109
    %2113 = vmatprep.subr.bf16.mxu0 0
    %2114 = vmatpush1.bf16.msra.mxu0 0
    %2115 = vmatprep.subr.bf16.mxu0 0
    %2116 = vmatpush1.bf16.msra.mxu0 0
    %2117 = vmatprep.subr.bf16.mxu0 0
    %2118 = vmatpush1.bf16.msra.mxu0 0
    %2119 = vmatprep.subr.bf16.mxu0 0
    %2120 = vmatpush1.bf16.msra.mxu0 0
    %2121 = vmatprep.subr.bf16.mxu0 0
    %2122 = vmatpush1.bf16.msra.mxu0 0
    %2123 = vmatprep.subr.bf16.mxu0 0
    %2124 = vmatpush1.bf16.msra.mxu0 0
    %2125 = vmatprep.subr.bf16.mxu0 0
    %2126 = vmatpush1.bf16.msra.mxu0 0
    %2127 = vmatprep.subr.bf16.mxu0 0
    %2128 = vmatpush1.bf16.msra.mxu0 0
    %2129 = vmatprep.subr.bf16.mxu0 0
    %2130 = vmatpush1.bf16.msra.mxu0 0
    %2131 = vmatprep.subr.bf16.mxu0 0
    %2132 = vmatpush1.bf16.msra.mxu0 0
    %2133 = vmatprep.subr.bf16.mxu0 0
    %2134 = vmatpush1.bf16.msra.mxu0 0
    %2135 = vmatprep.subr.bf16.mxu0 0
    %2136 = vmatpush1.bf16.msra.mxu0 0
    %2137 = vmatprep.subr.bf16.mxu0 0
    %2138 = vmatpush1.bf16.msra.mxu0 0
    %2139 = vmatprep.subr.bf16.mxu0 0
    %2140 = vmatpush1.bf16.msra.mxu0 0
    %2141 = vmatprep.subr.bf16.mxu0 0
    %2142 = vmatpush1.bf16.msra.mxu0 0
    %2143 = vmatprep.mubr.bf16.mxu0 0
    %2144 = vmatmul.mubr.bf16.gmra.mrb[0].mxu0 %v2106
    %v2145 = vpop.f32.mrb[0].mxu0
    %v2146 = vadd.f32 0.0, %v2145
    %v2147 = vpop.f32.mrb[0].mxu0
    %v2148 = vpop.f32.mrb[0].mxu0
    %v2149 = vadd.f32 0.0, %v2148
    %v2150 = vpop.f32.mrb[0].mxu0
    %2151 = vdwg.mxu0
    %v2153 = vsel %vm1496, %v2051, 0
    %v2156 = vsel %vm2060, %v1490, 0
    %2158 = vmatprep.subr.bf16.mxu0 0
    %2159 = vmatpush1.bf16.msra.mxu0 %v2156
    %2160 = vmatprep.subr.bf16.mxu0 0
    %2161 = vmatpush1.bf16.msra.mxu0 0
    %2162 = vmatprep.subr.bf16.mxu0 0
    %2163 = vmatpush1.bf16.msra.mxu0 0
    %2164 = vmatprep.subr.bf16.mxu0 0
    %2165 = vmatpush1.bf16.msra.mxu0 0
    %2166 = vmatprep.subr.bf16.mxu0 0
    %2167 = vmatpush1.bf16.msra.mxu0 0
    %2168 = vmatprep.subr.bf16.mxu0 0
    %2169 = vmatpush1.bf16.msra.mxu0 0
    %2170 = vmatprep.subr.bf16.mxu0 0
    %2171 = vmatpush1.bf16.msra.mxu0 0
    %2172 = vmatprep.subr.bf16.mxu0 0
    %2173 = vmatpush1.bf16.msra.mxu0 0
    %2174 = vmatprep.subr.bf16.mxu0 0
    %2175 = vmatpush1.bf16.msra.mxu0 0
    %2176 = vmatprep.subr.bf16.mxu0 0
    %2177 = vmatpush1.bf16.msra.mxu0 0
    %2178 = vmatprep.subr.bf16.mxu0 0
    %2179 = vmatpush1.bf16.msra.mxu0 0
    %2180 = vmatprep.subr.bf16.mxu0 0
    %2181 = vmatpush1.bf16.msra.mxu0 0
    %2182 = vmatprep.subr.bf16.mxu0 0
    %2183 = vmatpush1.bf16.msra.mxu0 0
    %2184 = vmatprep.subr.bf16.mxu0 0
    %2185 = vmatpush1.bf16.msra.mxu0 0
    %2186 = vmatprep.subr.bf16.mxu0 0
    %2187 = vmatpush1.bf16.msra.mxu0 0
    %2188 = vmatprep.subr.bf16.mxu0 0
    %2189 = vmatpush1.bf16.msra.mxu0 0
    %2190 = vmatprep.mubr.bf16.mxu0 0
    %2191 = vmatmul.mubr.bf16.gmra.mrb[0].mxu0 %v2153
    %v2192 = vpop.f32.mrb[0].mxu0
    %v2193 = vadd.f32 0.0, %v2192
    %v2194 = vpop.f32.mrb[0].mxu0
    %v2195 = vpop.f32.mrb[0].mxu0
    %v2196 = vadd.f32 0.0, %v2195
    %v2197 = vpop.f32.mrb[0].mxu0
    %2198 = vdwg.mxu0
    %v2200 = vsel %vm1496, %v2052, 0
    %v2203 = vsel %vm2060, %v1491, 0
    %2205 = vmatprep.subr.bf16.mxu0 0
    %2206 = vmatpush1.bf16.msra.mxu0 %v2203
    %2207 = vmatprep.subr.bf16.mxu0 0
    %2208 = vmatpush1.bf16.msra.mxu0 0
    %2209 = vmatprep.subr.bf16.mxu0 0
    %2210 = vmatpush1.bf16.msra.mxu0 0
    %2211 = vmatprep.subr.bf16.mxu0 0
    %2212 = vmatpush1.bf16.msra.mxu0 0
    %2213 = vmatprep.subr.bf16.mxu0 0
    %2214 = vmatpush1.bf16.msra.mxu0 0
    %2215 = vmatprep.subr.bf16.mxu0 0
    %2216 = vmatpush1.bf16.msra.mxu0 0
    %2217 = vmatprep.subr.bf16.mxu0 0
    %2218 = vmatpush1.bf16.msra.mxu0 0
    %2219 = vmatprep.subr.bf16.mxu0 0
    %2220 = vmatpush1.bf16.msra.mxu0 0
    %2221 = vmatprep.subr.bf16.mxu0 0
    %2222 = vmatpush1.bf16.msra.mxu0 0
    %2223 = vmatprep.subr.bf16.mxu0 0
    %2224 = vmatpush1.bf16.msra.mxu0 0
    %2225 = vmatprep.subr.bf16.mxu0 0
    %2226 = vmatpush1.bf16.msra.mxu0 0
    %2227 = vmatprep.subr.bf16.mxu0 0
    %2228 = vmatpush1.bf16.msra.mxu0 0
    %2229 = vmatprep.subr.bf16.mxu0 0
    %2230 = vmatpush1.bf16.msra.mxu0 0
    %2231 = vmatprep.subr.bf16.mxu0 0
    %2232 = vmatpush1.bf16.msra.mxu0 0
    %2233 = vmatprep.subr.bf16.mxu0 0
    %2234 = vmatpush1.bf16.msra.mxu0 0
    %2235 = vmatprep.subr.bf16.mxu0 0
    %2236 = vmatpush1.bf16.msra.mxu0 0
    %2237 = vmatprep.mubr.bf16.mxu0 0
    %2238 = vmatmul.mubr.bf16.gmra.mrb[0].mxu0 %v2200
    %v2239 = vpop.f32.mrb[0].mxu0
    %v2240 = vadd.f32 0.0, %v2239
    %v2241 = vpop.f32.mrb[0].mxu0
    %v2242 = vpop.f32.mrb[0].mxu0
    %v2243 = vadd.f32 0.0, %v2242
    %v2244 = vpop.f32.mrb[0].mxu0
    %2245 = vdwg.mxu0
    %v2247 = vsel %vm1496, %v2053, 0
    %v2250 = vsel %vm2060, %v1492, 0
    %2252 = vmatprep.subr.bf16.mxu0 0
    %2253 = vmatpush1.bf16.msra.mxu0 %v2250
    %2254 = vmatprep.subr.bf16.mxu0 0
    %2255 = vmatpush1.bf16.msra.mxu0 0
    %2256 = vmatprep.subr.bf16.mxu0 0
    %2257 = vmatpush1.bf16.msra.mxu0 0
    %2258 = vmatprep.subr.bf16.mxu0 0
    %2259 = vmatpush1.bf16.msra.mxu0 0
    %2260 = vmatprep.subr.bf16.mxu0 0
    %2261 = vmatpush1.bf16.msra.mxu0 0
    %2262 = vmatprep.subr.bf16.mxu0 0
    %2263 = vmatpush1.bf16.msra.mxu0 0
    %2264 = vmatprep.subr.bf16.mxu0 0
    %2265 = vmatpush1.bf16.msra.mxu0 0
    %2266 = vmatprep.subr.bf16.mxu0 0
    %2267 = vmatpush1.bf16.msra.mxu0 0
    %2268 = vmatprep.subr.bf16.mxu0 0
    %2269 = vmatpush1.bf16.msra.mxu0 0
    %2270 = vmatprep.subr.bf16.mxu0 0
    %2271 = vmatpush1.bf16.msra.mxu0 0
    %2272 = vmatprep.subr.bf16.mxu0 0
    %2273 = vmatpush1.bf16.msra.mxu0 0
    %2274 = vmatprep.subr.bf16.mxu0 0
    %2275 = vmatpush1.bf16.msra.mxu0 0
    %2276 = vmatprep.subr.bf16.mxu0 0
    %2277 = vmatpush1.bf16.msra.mxu0 0
    %2278 = vmatprep.subr.bf16.mxu0 0
    %2279 = vmatpush1.bf16.msra.mxu0 0
    %2280 = vmatprep.subr.bf16.mxu0 0
    %2281 = vmatpush1.bf16.msra.mxu0 0
    %2282 = vmatprep.subr.bf16.mxu0 0
    %2283 = vmatpush1.bf16.msra.mxu0 0
    %2284 = vmatprep.mubr.bf16.mxu0 0
    %2285 = vmatmul.mubr.bf16.gmra.mrb[0].mxu0 %v2247
    %v2286 = vpop.f32.mrb[0].mxu0
    %v2287 = vadd.f32 0.0, %v2286
    %v2288 = vpop.f32.mrb[0].mxu0
    %v2289 = vpop.f32.mrb[0].mxu0
    %v2290 = vadd.f32 0.0, %v2289
    %v2291 = vpop.f32.mrb[0].mxu0
    %2292 = vdwg.mxu0
    %v2294 = vsel %vm1496, %v2054, 0
    %v2297 = vsel %vm2060, %v1493, 0
    %2299 = vmatprep.subr.bf16.mxu0 0
    %2300 = vmatpush1.bf16.msra.mxu0 %v2297
    %2301 = vmatprep.subr.bf16.mxu0 0
    %2302 = vmatpush1.bf16.msra.mxu0 0
    %2303 = vmatprep.subr.bf16.mxu0 0
    %2304 = vmatpush1.bf16.msra.mxu0 0
    %2305 = vmatprep.subr.bf16.mxu0 0
    %2306 = vmatpush1.bf16.msra.mxu0 0
    %2307 = vmatprep.subr.bf16.mxu0 0
    %2308 = vmatpush1.bf16.msra.mxu0 0
    %2309 = vmatprep.subr.bf16.mxu0 0
    %2310 = vmatpush1.bf16.msra.mxu0 0
    %2311 = vmatprep.subr.bf16.mxu0 0
    %2312 = vmatpush1.bf16.msra.mxu0 0
    %2313 = vmatprep.subr.bf16.mxu0 0
    %2314 = vmatpush1.bf16.msra.mxu0 0
    %2315 = vmatprep.subr.bf16.mxu0 0
    %2316 = vmatpush1.bf16.msra.mxu0 0
    %2317 = vmatprep.subr.bf16.mxu0 0
    %2318 = vmatpush1.bf16.msra.mxu0 0
    %2319 = vmatprep.subr.bf16.mxu0 0
    %2320 = vmatpush1.bf16.msra.mxu0 0
    %2321 = vmatprep.subr.bf16.mxu0 0
    %2322 = vmatpush1.bf16.msra.mxu0 0
    %2323 = vmatprep.subr.bf16.mxu0 0
    %2324 = vmatpush1.bf16.msra.mxu0 0
    %2325 = vmatprep.subr.bf16.mxu0 0
    %2326 = vmatpush1.bf16.msra.mxu0 0
    %2327 = vmatprep.subr.bf16.mxu0 0
    %2328 = vmatpush1.bf16.msra.mxu0 0
    %2329 = vmatprep.subr.bf16.mxu0 0
    %2330 = vmatpush1.bf16.msra.mxu0 0
    %2331 = vmatprep.mubr.bf16.mxu0 0
    %2332 = vmatmul.mubr.bf16.gmra.mrb[0].mxu0 %v2294
    %v2333 = vpop.f32.mrb[0].mxu0
    %v2334 = vadd.f32 0.0, %v2333
    %v2335 = vpop.f32.mrb[0].mxu0
    %v2336 = vpop.f32.mrb[0].mxu0
    %v2337 = vadd.f32 0.0, %v2336
    %v2338 = vpop.f32.mrb[0].mxu0
    %2339 = vdwg.mxu0
    %v2341 = vsel %vm1496, %v2055, 0
    %v2344 = vsel %vm2060, %v1494, 0
    %2346 = vmatprep.subr.bf16.mxu0 0
    %2347 = vmatpush1.bf16.msra.mxu0 %v2344
    %2348 = vmatprep.subr.bf16.mxu0 0
    %2349 = vmatpush1.bf16.msra.mxu0 0
    %2350 = vmatprep.subr.bf16.mxu0 0
    %2351 = vmatpush1.bf16.msra.mxu0 0
    %2352 = vmatprep.subr.bf16.mxu0 0
    %2353 = vmatpush1.bf16.msra.mxu0 0
    %2354 = vmatprep.subr.bf16.mxu0 0
    %2355 = vmatpush1.bf16.msra.mxu0 0
    %2356 = vmatprep.subr.bf16.mxu0 0
    %2357 = vmatpush1.bf16.msra.mxu0 0
    %2358 = vmatprep.subr.bf16.mxu0 0
    %2359 = vmatpush1.bf16.msra.mxu0 0
    %2360 = vmatprep.subr.bf16.mxu0 0
    %2361 = vmatpush1.bf16.msra.mxu0 0
    %2362 = vmatprep.subr.bf16.mxu0 0
    %2363 = vmatpush1.bf16.msra.mxu0 0
    %2364 = vmatprep.subr.bf16.mxu0 0
    %2365 = vmatpush1.bf16.msra.mxu0 0
    %2366 = vmatprep.subr.bf16.mxu0 0
    %2367 = vmatpush1.bf16.msra.mxu0 0
    %2368 = vmatprep.subr.bf16.mxu0 0
    %2369 = vmatpush1.bf16.msra.mxu0 0
    %2370 = vmatprep.subr.bf16.mxu0 0
    %2371 = vmatpush1.bf16.msra.mxu0 0
    %2372 = vmatprep.subr.bf16.mxu0 0
    %2373 = vmatpush1.bf16.msra.mxu0 0
    %2374 = vmatprep.subr.bf16.mxu0 0
    %2375 = vmatpush1.bf16.msra.mxu0 0
    %2376 = vmatprep.subr.bf16.mxu0 0
    %2377 = vmatpush1.bf16.msra.mxu0 0
    %2378 = vmatprep.mubr.bf16.mxu0 0
    %2379 = vmatmul.mubr.bf16.gmra.mrb[0].mxu0 %v2341
    %v2380 = vpop.f32.mrb[0].mxu0
    %v2381 = vadd.f32 0.0, %v2380
    %v2382 = vpop.f32.mrb[0].mxu0
    %v2383 = vpop.f32.mrb[0].mxu0
    %v2384 = vadd.f32 0.0, %v2383
    %v2385 = vpop.f32.mrb[0].mxu0
    %2386 = vdwg.mxu0
    %v2388 = vsel %vm1496, %v2056, 0
    %v2391 = vsel %vm2060, %v1495, 0
    %2393 = vmatprep.subr.bf16.mxu0 0
    %2394 = vmatpush1.bf16.msra.mxu0 %v2391
    %2395 = vmatprep.subr.bf16.mxu0 0
    %2396 = vmatpush1.bf16.msra.mxu0 0
    %2397 = vmatprep.subr.bf16.mxu0 0
    %2398 = vmatpush1.bf16.msra.mxu0 0
    %2399 = vmatprep.subr.bf16.mxu0 0
    %2400 = vmatpush1.bf16.msra.mxu0 0
    %2401 = vmatprep.subr.bf16.mxu0 0
    %2402 = vmatpush1.bf16.msra.mxu0 0
    %2403 = vmatprep.subr.bf16.mxu0 0
    %2404 = vmatpush1.bf16.msra.mxu0 0
    %2405 = vmatprep.subr.bf16.mxu0 0
    %2406 = vmatpush1.bf16.msra.mxu0 0
    %2407 = vmatprep.subr.bf16.mxu0 0
    %2408 = vmatpush1.bf16.msra.mxu0 0
    %2409 = vmatprep.subr.bf16.mxu0 0
    %2410 = vmatpush1.bf16.msra.mxu0 0
    %2411 = vmatprep.subr.bf16.mxu0 0
    %2412 = vmatpush1.bf16.msra.mxu0 0
    %2413 = vmatprep.subr.bf16.mxu0 0
    %2414 = vmatpush1.bf16.msra.mxu0 0
    %2415 = vmatprep.subr.bf16.mxu0 0
    %2416 = vmatpush1.bf16.msra.mxu0 0
    %2417 = vmatprep.subr.bf16.mxu0 0
    %2418 = vmatpush1.bf16.msra.mxu0 0
    %2419 = vmatprep.subr.bf16.mxu0 0
    %2420 = vmatpush1.bf16.msra.mxu0 0
    %2421 = vmatprep.subr.bf16.mxu0 0
    %2422 = vmatpush1.bf16.msra.mxu0 0
    %2423 = vmatprep.subr.bf16.mxu0 0
    %2424 = vmatpush1.bf16.msra.mxu0 0
    %2425 = vmatprep.mubr.bf16.mxu0 0
    %2426 = vmatmul.mubr.bf16.gmra.mrb[0].mxu0 %v2388
    %v2427 = vpop.f32.mrb[0].mxu0
    %v2428 = vadd.f32 0.0, %v2427
    %v2429 = vpop.f32.mrb[0].mxu0
    %v2430 = vpop.f32.mrb[0].mxu0
    %v2431 = vadd.f32 0.0, %v2430
    %v2432 = vpop.f32.mrb[0].mxu0
    %2433 = vdwg.mxu0
    %v2434 = vcombine.low %v2099, %v2287
    %v2435 = vcombine.high %v2099, %v2287
    %v2437 = vunpack.c.l.s4 1983009808
    %v2438 = vunpack.c.0.s8 %v2437
    %v2439 = vlaneseq
    %v2440 = vshrl.u32 %v2439, 7
    %v2441 = vsub.s32 %v2438, %v2440
    %v2442 = vrot.slane %v2434, %v2441
    %v2444 = vunpack.c.l.s4 1983009808
    %v2445 = vunpack.c.0.s8 %v2444
    %v2446 = vlaneseq
    %v2447 = vshrl.u32 %v2446, 7
    %v2448 = vsub.s32 %v2445, %v2447
    %v2449 = vrot.slane %v2435, %v2448
    %v2450 = vcombine.low %v2193, %v2381
    %v2451 = vcombine.high %v2193, %v2381
    %v2453 = vunpack.c.l.s4 1983009808
    %v2454 = vunpack.c.0.s8 %v2453
    %v2455 = vlaneseq
    %v2456 = vshrl.u32 %v2455, 7
    %v2457 = vsub.s32 %v2454, %v2456
    %v2458 = vrot.slane %v2450, %v2457
    %v2460 = vunpack.c.l.s4 1983009808
    %v2461 = vunpack.c.0.s8 %v2460
    %v2462 = vlaneseq
    %v2463 = vshrl.u32 %v2462, 7
    %v2464 = vsub.s32 %v2461, %v2463
    %v2465 = vrot.slane %v2451, %v2464
    %v2466 = vcombine.low %v2442, %v2458
    %v2467 = vcombine.high %v2442, %v2458
    %v2469 = vunpack.c.l.s4 1934713408
    %v2470 = vunpack.c.0.s8 %v2469
    %v2471 = vlaneseq
    %v2472 = vshrl.u32 %v2471, 7
    %v2473 = vsub.s32 %v2470, %v2472
    %v2474 = vrot.slane %v2466, %v2473
    %v2476 = vunpack.c.l.s4 1934713408
    %v2477 = vunpack.c.0.s8 %v2476
    %v2478 = vlaneseq
    %v2479 = vshrl.u32 %v2478, 7
    %v2480 = vsub.s32 %v2477, %v2479
    %v2481 = vrot.slane %v2467, %v2480
    %v2482 = vcombine.low %v2449, %v2465
    %v2483 = vcombine.high %v2449, %v2465
    %v2485 = vunpack.c.l.s4 1934713408
    %v2486 = vunpack.c.0.s8 %v2485
    %v2487 = vlaneseq
    %v2488 = vshrl.u32 %v2487, 7
    %v2489 = vsub.s32 %v2486, %v2488
    %v2490 = vrot.slane %v2482, %v2489
    %v2492 = vunpack.c.l.s4 1934713408
    %v2493 = vunpack.c.0.s8 %v2492
    %v2494 = vlaneseq
    %v2495 = vshrl.u32 %v2494, 7
    %v2496 = vsub.s32 %v2493, %v2495
    %v2497 = vrot.slane %v2483, %v2496
    %v2498 = vcombine.high %v2474, 0.0
    %v2499 = vcombine.high %v2481, 0.0
    %v2500 = vcombine.high %v2490, 0.0
    %v2501 = vcombine.high %v2497, 0.0
    %v2502 = vcombine.low %v2102, %v2290
    %v2503 = vcombine.high %v2102, %v2290
    %v2505 = vunpack.c.l.s4 1983009808
    %v2506 = vunpack.c.0.s8 %v2505
    %v2507 = vlaneseq
    %v2508 = vshrl.u32 %v2507, 7
    %v2509 = vsub.s32 %v2506, %v2508
    %v2510 = vrot.slane %v2502, %v2509
    %v2512 = vunpack.c.l.s4 1983009808
    %v2513 = vunpack.c.0.s8 %v2512
    %v2514 = vlaneseq
    %v2515 = vshrl.u32 %v2514, 7
    %v2516 = vsub.s32 %v2513, %v2515
    %v2517 = vrot.slane %v2503, %v2516
    %v2518 = vcombine.low %v2196, %v2384
    %v2519 = vcombine.high %v2196, %v2384
    %v2521 = vunpack.c.l.s4 1983009808
    %v2522 = vunpack.c.0.s8 %v2521
    %v2523 = vlaneseq
    %v2524 = vshrl.u32 %v2523, 7
    %v2525 = vsub.s32 %v2522, %v2524
    %v2526 = vrot.slane %v2518, %v2525
    %v2528 = vunpack.c.l.s4 1983009808
    %v2529 = vunpack.c.0.s8 %v2528
    %v2530 = vlaneseq
    %v2531 = vshrl.u32 %v2530, 7
    %v2532 = vsub.s32 %v2529, %v2531
    %v2533 = vrot.slane %v2519, %v2532
    %v2534 = vcombine.low %v2510, %v2526
    %v2535 = vcombine.high %v2510, %v2526
    %v2537 = vunpack.c.l.s4 1934713408
    %v2538 = vunpack.c.0.s8 %v2537
    %v2539 = vlaneseq
    %v2540 = vshrl.u32 %v2539, 7
    %v2541 = vsub.s32 %v2538, %v2540
    %v2542 = vrot.slane %v2534, %v2541
    %v2544 = vunpack.c.l.s4 1934713408
    %v2545 = vunpack.c.0.s8 %v2544
    %v2546 = vlaneseq
    %v2547 = vshrl.u32 %v2546, 7
    %v2548 = vsub.s32 %v2545, %v2547
    %v2549 = vrot.slane %v2535, %v2548
    %v2550 = vcombine.low %v2517, %v2533
    %v2551 = vcombine.high %v2517, %v2533
    %v2553 = vunpack.c.l.s4 1934713408
    %v2554 = vunpack.c.0.s8 %v2553
    %v2555 = vlaneseq
    %v2556 = vshrl.u32 %v2555, 7
    %v2557 = vsub.s32 %v2554, %v2556
    %v2558 = vrot.slane %v2550, %v2557
    %v2560 = vunpack.c.l.s4 1934713408
    %v2561 = vunpack.c.0.s8 %v2560
    %v2562 = vlaneseq
    %v2563 = vshrl.u32 %v2562, 7
    %v2564 = vsub.s32 %v2561, %v2563
    %v2565 = vrot.slane %v2551, %v2564
    %v2566 = vcombine.high %v2542, 0.0
    %v2567 = vcombine.high %v2549, 0.0
    %v2568 = vcombine.high %v2558, 0.0
    %v2569 = vcombine.high %v2565, 0.0
    %v2570 = vcombine.low %v2146, %v2334
    %v2571 = vcombine.high %v2146, %v2334
    %v2573 = vunpack.c.l.s4 1983009808
    %v2574 = vunpack.c.0.s8 %v2573
    %v2575 = vlaneseq
    %v2576 = vshrl.u32 %v2575, 7
    %v2577 = vsub.s32 %v2574, %v2576
    %v2578 = vrot.slane %v2570, %v2577
    %v2580 = vunpack.c.l.s4 1983009808
    %v2581 = vunpack.c.0.s8 %v2580
    %v2582 = vlaneseq
    %v2583 = vshrl.u32 %v2582, 7
    %v2584 = vsub.s32 %v2581, %v2583
    %v2585 = vrot.slane %v2571, %v2584
    %v2586 = vcombine.low %v2240, %v2428
    %v2587 = vcombine.high %v2240, %v2428
    %v2589 = vunpack.c.l.s4 1983009808
    %v2590 = vunpack.c.0.s8 %v2589
    %v2591 = vlaneseq
    %v2592 = vshrl.u32 %v2591, 7
    %v2593 = vsub.s32 %v2590, %v2592
    %v2594 = vrot.slane %v2586, %v2593
    %v2596 = vunpack.c.l.s4 1983009808
    %v2597 = vunpack.c.0.s8 %v2596
    %v2598 = vlaneseq
    %v2599 = vshrl.u32 %v2598, 7
    %v2600 = vsub.s32 %v2597, %v2599
    %v2601 = vrot.slane %v2587, %v2600
    %v2602 = vcombine.low %v2578, %v2594
    %v2603 = vcombine.high %v2578, %v2594
    %v2605 = vunpack.c.l.s4 1934713408
    %v2606 = vunpack.c.0.s8 %v2605
    %v2607 = vlaneseq
    %v2608 = vshrl.u32 %v2607, 7
    %v2609 = vsub.s32 %v2606, %v2608
    %v2610 = vrot.slane %v2602, %v2609
    %v2612 = vunpack.c.l.s4 1934713408
    %v2613 = vunpack.c.0.s8 %v2612
    %v2614 = vlaneseq
    %v2615 = vshrl.u32 %v2614, 7
    %v2616 = vsub.s32 %v2613, %v2615
    %v2617 = vrot.slane %v2603, %v2616
    %v2618 = vcombine.low %v2585, %v2601
    %v2619 = vcombine.high %v2585, %v2601
    %v2621 = vunpack.c.l.s4 1934713408
    %v2622 = vunpack.c.0.s8 %v2621
    %v2623 = vlaneseq
    %v2624 = vshrl.u32 %v2623, 7
    %v2625 = vsub.s32 %v2622, %v2624
    %v2626 = vrot.slane %v2618, %v2625
    %v2628 = vunpack.c.l.s4 1934713408
    %v2629 = vunpack.c.0.s8 %v2628
    %v2630 = vlaneseq
    %v2631 = vshrl.u32 %v2630, 7
    %v2632 = vsub.s32 %v2629, %v2631
    %v2633 = vrot.slane %v2619, %v2632
    %v2634 = vcombine.high %v2610, 0.0
    %v2635 = vcombine.high %v2617, 0.0
    %v2636 = vcombine.high %v2626, 0.0
    %v2637 = vcombine.high %v2633, 0.0
    %v2638 = vcombine.low %v2149, %v2337
    %v2639 = vcombine.high %v2149, %v2337
    %v2641 = vunpack.c.l.s4 1983009808
    %v2642 = vunpack.c.0.s8 %v2641
    %v2643 = vlaneseq
    %v2644 = vshrl.u32 %v2643, 7
    %v2645 = vsub.s32 %v2642, %v2644
    %v2646 = vrot.slane %v2638, %v2645
    %v2648 = vunpack.c.l.s4 1983009808
    %v2649 = vunpack.c.0.s8 %v2648
    %v2650 = vlaneseq
    %v2651 = vshrl.u32 %v2650, 7
    %v2652 = vsub.s32 %v2649, %v2651
    %v2653 = vrot.slane %v2639, %v2652
    %v2654 = vcombine.low %v2243, %v2431
    %v2655 = vcombine.high %v2243, %v2431
    %v2657 = vunpack.c.l.s4 1983009808
    %v2658 = vunpack.c.0.s8 %v2657
    %v2659 = vlaneseq
    %v2660 = vshrl.u32 %v2659, 7
    %v2661 = vsub.s32 %v2658, %v2660
    %v2662 = vrot.slane %v2654, %v2661
    %v2664 = vunpack.c.l.s4 1983009808
    %v2665 = vunpack.c.0.s8 %v2664
    %v2666 = vlaneseq
    %v2667 = vshrl.u32 %v2666, 7
    %v2668 = vsub.s32 %v2665, %v2667
    %v2669 = vrot.slane %v2655, %v2668
    %v2670 = vcombine.low %v2646, %v2662
    %v2671 = vcombine.high %v2646, %v2662
    %v2673 = vunpack.c.l.s4 1934713408
    %v2674 = vunpack.c.0.s8 %v2673
    %v2675 = vlaneseq
    %v2676 = vshrl.u32 %v2675, 7
    %v2677 = vsub.s32 %v2674, %v2676
    %v2678 = vrot.slane %v2670, %v2677
    %v2680 = vunpack.c.l.s4 1934713408
    %v2681 = vunpack.c.0.s8 %v2680
    %v2682 = vlaneseq
    %v2683 = vshrl.u32 %v2682, 7
    %v2684 = vsub.s32 %v2681, %v2683
    %v2685 = vrot.slane %v2671, %v2684
    %v2686 = vcombine.low %v2653, %v2669
    %v2687 = vcombine.high %v2653, %v2669
    %v2689 = vunpack.c.l.s4 1934713408
    %v2690 = vunpack.c.0.s8 %v2689
    %v2691 = vlaneseq
    %v2692 = vshrl.u32 %v2691, 7
    %v2693 = vsub.s32 %v2690, %v2692
    %v2694 = vrot.slane %v2686, %v2693
    %v2696 = vunpack.c.l.s4 1934713408
    %v2697 = vunpack.c.0.s8 %v2696
    %v2698 = vlaneseq
    %v2699 = vshrl.u32 %v2698, 7
    %v2700 = vsub.s32 %v2697, %v2699
    %v2701 = vrot.slane %v2687, %v2700
    %v2702 = vcombine.high %v2678, 0.0
    %v2703 = vcombine.high %v2685, 0.0
    %v2704 = vcombine.high %v2694, 0.0
    %v2705 = vcombine.high %v2701, 0.0
    %v2706 = vcombine.low %v2474, %v2481
    %v2708 = vunpack.c.l.s4 1983009808
    %v2709 = vunpack.c.0.s8 %v2708
    %v2710 = vlaneseq
    %v2711 = vshrl.u32 %v2710, 7
    %v2712 = vsub.s32 %v2709, %v2711
    %v2713 = vrot.slane %v2706, %v2712
    %v2714 = vcombine.low %v2498, %v2499
    %v2716 = vunpack.c.l.s4 1983009808
    %v2717 = vunpack.c.0.s8 %v2716
    %v2718 = vlaneseq
    %v2719 = vshrl.u32 %v2718, 7
    %v2720 = vsub.s32 %v2717, %v2719
    %v2721 = vrot.slane %v2714, %v2720
    %v2722 = vcombine.low %v2490, %v2497
    %v2724 = vunpack.c.l.s4 1983009808
    %v2725 = vunpack.c.0.s8 %v2724
    %v2726 = vlaneseq
    %v2727 = vshrl.u32 %v2726, 7
    %v2728 = vsub.s32 %v2725, %v2727
    %v2729 = vrot.slane %v2722, %v2728
    %v2730 = vcombine.low %v2500, %v2501
    %v2732 = vunpack.c.l.s4 1983009808
    %v2733 = vunpack.c.0.s8 %v2732
    %v2734 = vlaneseq
    %v2735 = vshrl.u32 %v2734, 7
    %v2736 = vsub.s32 %v2733, %v2735
    %v2737 = vrot.slane %v2730, %v2736
    %v2738 = vcombine.low %v2713, %v2721
    %v2739 = vcombine.high %v2713, %v2721
    %v2741 = vunpack.c.l.s4 1934713408
    %v2742 = vunpack.c.0.s8 %v2741
    %v2743 = vlaneseq
    %v2744 = vshrl.u32 %v2743, 7
    %v2745 = vsub.s32 %v2742, %v2744
    %v2746 = vrot.slane %v2738, %v2745
    %v2748 = vunpack.c.l.s4 1934713408
    %v2749 = vunpack.c.0.s8 %v2748
    %v2750 = vlaneseq
    %v2751 = vshrl.u32 %v2750, 7
    %v2752 = vsub.s32 %v2749, %v2751
    %v2753 = vrot.slane %v2739, %v2752
    %v2754 = vcombine.low %v2729, %v2737
    %v2755 = vcombine.high %v2729, %v2737
    %v2757 = vunpack.c.l.s4 1934713408
    %v2758 = vunpack.c.0.s8 %v2757
    %v2759 = vlaneseq
    %v2760 = vshrl.u32 %v2759, 7
    %v2761 = vsub.s32 %v2758, %v2760
    %v2762 = vrot.slane %v2754, %v2761
    %v2764 = vunpack.c.l.s4 1934713408
    %v2765 = vunpack.c.0.s8 %v2764
    %v2766 = vlaneseq
    %v2767 = vshrl.u32 %v2766, 7
    %v2768 = vsub.s32 %v2765, %v2767
    %v2769 = vrot.slane %v2755, %v2768
    %v2770 = vcombine.low %v2746, %v2762
    %v2771 = vcombine.high %v2746, %v2762
    %v2772 = vcombine.low %v2753, %v2769
    %v2773 = vcombine.high %v2753, %v2769
    %v2774 = vcombine.low %v2542, %v2549
    %v2776 = vunpack.c.l.s4 1983009808
    %v2777 = vunpack.c.0.s8 %v2776
    %v2778 = vlaneseq
    %v2779 = vshrl.u32 %v2778, 7
    %v2780 = vsub.s32 %v2777, %v2779
    %v2781 = vrot.slane %v2774, %v2780
    %v2782 = vcombine.low %v2566, %v2567
    %v2784 = vunpack.c.l.s4 1983009808
    %v2785 = vunpack.c.0.s8 %v2784
    %v2786 = vlaneseq
    %v2787 = vshrl.u32 %v2786, 7
    %v2788 = vsub.s32 %v2785, %v2787
    %v2789 = vrot.slane %v2782, %v2788
    %v2790 = vcombine.low %v2558, %v2565
    %v2792 = vunpack.c.l.s4 1983009808
    %v2793 = vunpack.c.0.s8 %v2792
    %v2794 = vlaneseq
    %v2795 = vshrl.u32 %v2794, 7
    %v2796 = vsub.s32 %v2793, %v2795
    %v2797 = vrot.slane %v2790, %v2796
    %v2798 = vcombine.low %v2568, %v2569
    %v2800 = vunpack.c.l.s4 1983009808
    %v2801 = vunpack.c.0.s8 %v2800
    %v2802 = vlaneseq
    %v2803 = vshrl.u32 %v2802, 7
    %v2804 = vsub.s32 %v2801, %v2803
    %v2805 = vrot.slane %v2798, %v2804
    %v2806 = vcombine.low %v2781, %v2789
    %v2807 = vcombine.high %v2781, %v2789
    %v2809 = vunpack.c.l.s4 1934713408
    %v2810 = vunpack.c.0.s8 %v2809
    %v2811 = vlaneseq
    %v2812 = vshrl.u32 %v2811, 7
    %v2813 = vsub.s32 %v2810, %v2812
    %v2814 = vrot.slane %v2806, %v2813
    %v2816 = vunpack.c.l.s4 1934713408
    %v2817 = vunpack.c.0.s8 %v2816
    %v2818 = vlaneseq
    %v2819 = vshrl.u32 %v2818, 7
    %v2820 = vsub.s32 %v2817, %v2819
    %v2821 = vrot.slane %v2807, %v2820
    %v2822 = vcombine.low %v2797, %v2805
    %v2823 = vcombine.high %v2797, %v2805
    %v2825 = vunpack.c.l.s4 1934713408
    %v2826 = vunpack.c.0.s8 %v2825
    %v2827 = vlaneseq
    %v2828 = vshrl.u32 %v2827, 7
    %v2829 = vsub.s32 %v2826, %v2828
    %v2830 = vrot.slane %v2822, %v2829
    %v2832 = vunpack.c.l.s4 1934713408
    %v2833 = vunpack.c.0.s8 %v2832
    %v2834 = vlaneseq
    %v2835 = vshrl.u32 %v2834, 7
    %v2836 = vsub.s32 %v2833, %v2835
    %v2837 = vrot.slane %v2823, %v2836
    %v2838 = vcombine.low %v2814, %v2830
    %v2839 = vcombine.high %v2814, %v2830
    %v2840 = vcombine.low %v2821, %v2837
    %v2841 = vcombine.high %v2821, %v2837
    %v2842 = vcombine.low %v2610, %v2617
    %v2844 = vunpack.c.l.s4 1983009808
    %v2845 = vunpack.c.0.s8 %v2844
    %v2846 = vlaneseq
    %v2847 = vshrl.u32 %v2846, 7
    %v2848 = vsub.s32 %v2845, %v2847
    %v2849 = vrot.slane %v2842, %v2848
    %v2850 = vcombine.low %v2634, %v2635
    %v2852 = vunpack.c.l.s4 1983009808
    %v2853 = vunpack.c.0.s8 %v2852
    %v2854 = vlaneseq
    %v2855 = vshrl.u32 %v2854, 7
    %v2856 = vsub.s32 %v2853, %v2855
    %v2857 = vrot.slane %v2850, %v2856
    %v2858 = vcombine.low %v2626, %v2633
    %v2860 = vunpack.c.l.s4 1983009808
    %v2861 = vunpack.c.0.s8 %v2860
    %v2862 = vlaneseq
    %v2863 = vshrl.u32 %v2862, 7
    %v2864 = vsub.s32 %v2861, %v2863
    %v2865 = vrot.slane %v2858, %v2864
    %v2866 = vcombine.low %v2636, %v2637
    %v2868 = vunpack.c.l.s4 1983009808
    %v2869 = vunpack.c.0.s8 %v2868
    %v2870 = vlaneseq
    %v2871 = vshrl.u32 %v2870, 7
    %v2872 = vsub.s32 %v2869, %v2871
    %v2873 = vrot.slane %v2866, %v2872
    %v2874 = vcombine.low %v2849, %v2857
    %v2875 = vcombine.high %v2849, %v2857
    %v2877 = vunpack.c.l.s4 1934713408
    %v2878 = vunpack.c.0.s8 %v2877
    %v2879 = vlaneseq
    %v2880 = vshrl.u32 %v2879, 7
    %v2881 = vsub.s32 %v2878, %v2880
    %v2882 = vrot.slane %v2874, %v2881
    %v2884 = vunpack.c.l.s4 1934713408
    %v2885 = vunpack.c.0.s8 %v2884
    %v2886 = vlaneseq
    %v2887 = vshrl.u32 %v2886, 7
    %v2888 = vsub.s32 %v2885, %v2887
    %v2889 = vrot.slane %v2875, %v2888
    %v2890 = vcombine.low %v2865, %v2873
    %v2891 = vcombine.high %v2865, %v2873
    %v2893 = vunpack.c.l.s4 1934713408
    %v2894 = vunpack.c.0.s8 %v2893
    %v2895 = vlaneseq
    %v2896 = vshrl.u32 %v2895, 7
    %v2897 = vsub.s32 %v2894, %v2896
    %v2898 = vrot.slane %v2890, %v2897
    %v2900 = vunpack.c.l.s4 1934713408
    %v2901 = vunpack.c.0.s8 %v2900
    %v2902 = vlaneseq
    %v2903 = vshrl.u32 %v2902, 7
    %v2904 = vsub.s32 %v2901, %v2903
    %v2905 = vrot.slane %v2891, %v2904
    %v2906 = vcombine.low %v2882, %v2898
    %v2907 = vcombine.high %v2882, %v2898
    %v2908 = vcombine.low %v2889, %v2905
    %v2909 = vcombine.high %v2889, %v2905
    %v2910 = vcombine.low %v2678, %v2685
    %v2912 = vunpack.c.l.s4 1983009808
    %v2913 = vunpack.c.0.s8 %v2912
    %v2914 = vlaneseq
    %v2915 = vshrl.u32 %v2914, 7
    %v2916 = vsub.s32 %v2913, %v2915
    %v2917 = vrot.slane %v2910, %v2916
    %v2918 = vcombine.low %v2702, %v2703
    %v2920 = vunpack.c.l.s4 1983009808
    %v2921 = vunpack.c.0.s8 %v2920
    %v2922 = vlaneseq
    %v2923 = vshrl.u32 %v2922, 7
    %v2924 = vsub.s32 %v2921, %v2923
    %v2925 = vrot.slane %v2918, %v2924
    %v2926 = vcombine.low %v2694, %v2701
    %v2928 = vunpack.c.l.s4 1983009808
    %v2929 = vunpack.c.0.s8 %v2928
    %v2930 = vlaneseq
    %v2931 = vshrl.u32 %v2930, 7
    %v2932 = vsub.s32 %v2929, %v2931
    %v2933 = vrot.slane %v2926, %v2932
    %v2934 = vcombine.low %v2704, %v2705
    %v2936 = vunpack.c.l.s4 1983009808
    %v2937 = vunpack.c.0.s8 %v2936
    %v2938 = vlaneseq
    %v2939 = vshrl.u32 %v2938, 7
    %v2940 = vsub.s32 %v2937, %v2939
    %v2941 = vrot.slane %v2934, %v2940
    %v2942 = vcombine.low %v2917, %v2925
    %v2943 = vcombine.high %v2917, %v2925
    %v2945 = vunpack.c.l.s4 1934713408
    %v2946 = vunpack.c.0.s8 %v2945
    %v2947 = vlaneseq
    %v2948 = vshrl.u32 %v2947, 7
    %v2949 = vsub.s32 %v2946, %v2948
    %v2950 = vrot.slane %v2942, %v2949
    %v2952 = vunpack.c.l.s4 1934713408
    %v2953 = vunpack.c.0.s8 %v2952
    %v2954 = vlaneseq
    %v2955 = vshrl.u32 %v2954, 7
    %v2956 = vsub.s32 %v2953, %v2955
    %v2957 = vrot.slane %v2943, %v2956
    %v2958 = vcombine.low %v2933, %v2941
    %v2959 = vcombine.high %v2933, %v2941
    %v2961 = vunpack.c.l.s4 1934713408
    %v2962 = vunpack.c.0.s8 %v2961
    %v2963 = vlaneseq
    %v2964 = vshrl.u32 %v2963, 7
    %v2965 = vsub.s32 %v2962, %v2964
    %v2966 = vrot.slane %v2958, %v2965
    %v2968 = vunpack.c.l.s4 1934713408
    %v2969 = vunpack.c.0.s8 %v2968
    %v2970 = vlaneseq
    %v2971 = vshrl.u32 %v2970, 7
    %v2972 = vsub.s32 %v2969, %v2971
    %v2973 = vrot.slane %v2959, %v2972
    %v2974 = vcombine.low %v2950, %v2966
    %v2975 = vcombine.high %v2950, %v2966
    %v2976 = vcombine.low %v2957, %v2973
    %v2977 = vcombine.high %v2957, %v2973
    %2982 = vrot.lane.b32.xlu0 %v2771, 8
    %v2983 = vpop.permute.xlu0 %2982
    %2984 = vrot.lane.b32.xlu0 %v2839, 8
    %v2985 = vpop.permute.xlu0 %2984
    %2986 = vrot.lane.b32.xlu0 %v2907, 8
    %v2987 = vpop.permute.xlu0 %2986
    %2988 = vrot.lane.b32.xlu0 %v2975, 8
    %v2989 = vpop.permute.xlu0 %2988
    %2998 = vrot.lane.b32.xlu0 %v2772, 16
    %v2999 = vpop.permute.xlu0 %2998
    %3000 = vrot.lane.b32.xlu0 %v2840, 16
    %v3001 = vpop.permute.xlu0 %3000
    %3002 = vrot.lane.b32.xlu0 %v2908, 16
    %v3003 = vpop.permute.xlu0 %3002
    %3004 = vrot.lane.b32.xlu0 %v2976, 16
    %v3005 = vpop.permute.xlu0 %3004
    %3014 = vrot.lane.b32.xlu0 %v2773, 24
    %v3015 = vpop.permute.xlu0 %3014
    %3016 = vrot.lane.b32.xlu0 %v2841, 24
    %v3017 = vpop.permute.xlu0 %3016
    %3018 = vrot.lane.b32.xlu0 %v2909, 24
    %v3019 = vpop.permute.xlu0 %3018
    %3020 = vrot.lane.b32.xlu0 %v2977, 24
    %v3021 = vpop.permute.xlu0 %3020
    %v3026 = vsel %vm1496, %v2770, %v2983
    %v3027 = vsel %vm1496, %v2838, %v2985
    %v3028 = vsel %vm1496, %v2906, %v2987
    %v3029 = vsel %vm1496, %v2974, %v2989
    %vm3030 = vcmask 130048
    %v3031 = vsel %vm3030, %v3026, %v2999
    %v3032 = vsel %vm3030, %v3027, %v3001
    %v3033 = vsel %vm3030, %v3028, %v3003
    %v3034 = vsel %vm3030, %v3029, %v3005
    %vm3035 = vcmask 195584
    %v3036 = vsel %vm3035, %v3031, %v3015
    %v3037 = vsel %vm3035, %v3032, %v3017
    %v3038 = vsel %vm3035, %v3033, %v3019
    %v3039 = vsel %vm3035, %v3034, %v3021
    %v3040 = vpack.c.bf16 %v3037, %v3036
    %v3041 = vpack.c.bf16 %v3039, %v3038
    %v3042 = vld [vmem:[%s6] sm:$0xf]
    %v3043 = vld [vmem:[%s6 + $0x4] sm:$0xf]
    %v3044 = vld [vmem:[%s6 + $0x8] sm:$0xf]
    %v3045 = vld [vmem:[%s6 + $0xc] sm:$0xf]
    %v3046 = vld [vmem:[#allocation10] sm:$0x1]
    %v3048 = vlaneseq
    %v3049 = vshrl.u32 %v3048, 7
    %v3050 = vsub.s32 0, %v3049
    %v3051 = vrot.slane %v3046, %v3050
    %v3057 = vunpack.c.l.b16 %v3042
    %v3058 = vunpack.c.l.b16 %v3043
    %v3059 = vunpack.c.l.b16 %v3044
    %v3060 = vunpack.c.l.b16 %v3045
    %v3061 = vpack.c.b16 %v3058, %v3057
    %v3062 = vpack.c.b16 %v3060, %v3059
    %v3066 = vsel %vm177, %v3040, 0
    %v3069 = vsel %vm177, %v3041, 0
    %3071 = vmatprep.subr.bf16.mxu0 0
    %3072 = vmatpush1.bf16.msra.mxu0 %v3061
    %3073 = vmatprep.subr.bf16.mxu0 0
    %3074 = vmatpush1.bf16.msra.mxu0 %v3062
    %3075 = vmatprep.subr.bf16.mxu0 0
    %3076 = vmatpush1.bf16.msra.mxu0 0
    %3077 = vmatprep.subr.bf16.mxu0 0
    %3078 = vmatpush1.bf16.msra.mxu0 0
    %3079 = vmatprep.subr.bf16.mxu0 0
    %3080 = vmatpush1.bf16.msra.mxu0 0
    %3081 = vmatprep.subr.bf16.mxu0 0
    %3082 = vmatpush1.bf16.msra.mxu0 0
    %3083 = vmatprep.subr.bf16.mxu0 0
    %3084 = vmatpush1.bf16.msra.mxu0 0
    %3085 = vmatprep.subr.bf16.mxu0 0
    %3086 = vmatpush1.bf16.msra.mxu0 0
    %3087 = vmatprep.subr.bf16.mxu0 0
    %3088 = vmatpush1.bf16.msra.mxu0 0
    %3089 = vmatprep.subr.bf16.mxu0 0
    %3090 = vmatpush1.bf16.msra.mxu0 0
    %3091 = vmatprep.subr.bf16.mxu0 0
    %3092 = vmatpush1.bf16.msra.mxu0 0
    %3093 = vmatprep.subr.bf16.mxu0 0
    %3094 = vmatpush1.bf16.msra.mxu0 0
    %3095 = vmatprep.subr.bf16.mxu0 0
    %3096 = vmatpush1.bf16.msra.mxu0 0
    %3097 = vmatprep.subr.bf16.mxu0 0
    %3098 = vmatpush1.bf16.msra.mxu0 0
    %3099 = vmatprep.subr.bf16.mxu0 0
    %3100 = vmatpush1.bf16.msra.mxu0 0
    %3101 = vmatprep.subr.bf16.mxu0 0
    %3102 = vmatpush1.bf16.msra.mxu0 0
    %3103 = vmatprep.mubr.bf16.mxu0 0
    %3104 = vmatmul.mubr.bf16.gmra.mrb[0].mxu0 %v3066
    %v3105 = vpop.f32.mrb[0].mxu0
    %v3106 = vadd.f32 %v3051, %v3105
    %v3107 = vpop.f32.mrb[0].mxu0
    %v3108 = vpop.f32.mrb[0].mxu0
    %v3109 = vadd.f32 %v3051, %v3108
    %v3110 = vpop.f32.mrb[0].mxu0
    %3111 = vmatprep.mubr.bf16.mxu0 0
    %3112 = vmatmul.mubr.bf16.gmra.mrb[0].mxu0 %v3069
    %v3113 = vpop.f32.mrb[0].mxu0
    %v3114 = vadd.f32 %v3051, %v3113
    %v3115 = vpop.f32.mrb[0].mxu0
    %v3116 = vpop.f32.mrb[0].mxu0
    %v3117 = vadd.f32 %v3051, %v3116
    %v3118 = vpop.f32.mrb[0].mxu0
    %3119 = vdwg.mxu0
    %3120 = vst.msk [vmem:[#allocation14] sm:$0xff] %vm177, %v3106
    %3121 = vst.msk [vmem:[#allocation14 + $0x8] sm:$0xff] %vm177, %v3109
    %3122 = vst.msk [vmem:[#allocation14 + $0x10] sm:$0xff] %vm177, %v3114
    %3123 = vst.msk [vmem:[#allocation14 + $0x18] sm:$0xff] %vm177, %v3117
    %v3124 = vld [vmem:[#allocation11] sm:$0xf]
    %v3125 = vld [vmem:[#allocation11 + $0x4] sm:$0xf]
    %v3126 = vld [vmem:[#allocation11 + $0x8] sm:$0xf]
    %v3127 = vld [vmem:[#allocation11 + $0xc] sm:$0xf]
    %v3128 = vld [vmem:[%s10] sm:$0x1]
    %v3130 = vlaneseq
    %v3131 = vshrl.u32 %v3130, 7
    %v3132 = vsub.s32 0, %v3131
    %v3133 = vrot.slane %v3128, %v3132
    %v3139 = vunpack.c.l.b16 %v3124
    %v3140 = vunpack.c.l.b16 %v3125
    %v3141 = vunpack.c.l.b16 %v3126
    %v3142 = vunpack.c.l.b16 %v3127
    %v3143 = vpack.c.b16 %v3140, %v3139
    %v3144 = vpack.c.b16 %v3142, %v3141
    %3147 = vmatprep.subr.bf16.mxu0 0
    %3148 = vmatpush1.bf16.msra.mxu0 %v3143
    %3149 = vmatprep.subr.bf16.mxu0 0
    %3150 = vmatpush1.bf16.msra.mxu0 %v3144
    %3151 = vmatprep.subr.bf16.mxu0 0
    %3152 = vmatpush1.bf16.msra.mxu0 0
    %3153 = vmatprep.subr.bf16.mxu0 0
    %3154 = vmatpush1.bf16.msra.mxu0 0
    %3155 = vmatprep.subr.bf16.mxu0 0
    %3156 = vmatpush1.bf16.msra.mxu0 0
    %3157 = vmatprep.subr.bf16.mxu0 0
    %3158 = vmatpush1.bf16.msra.mxu0 0
    %3159 = vmatprep.subr.bf16.mxu0 0
    %3160 = vmatpush1.bf16.msra.mxu0 0
    %3161 = vmatprep.subr.bf16.mxu0 0
    %3162 = vmatpush1.bf16.msra.mxu0 0
    %3163 = vmatprep.subr.bf16.mxu0 0
    %3164 = vmatpush1.bf16.msra.mxu0 0
    %3165 = vmatprep.subr.bf16.mxu0 0
    %3166 = vmatpush1.bf16.msra.mxu0 0
    %3167 = vmatprep.subr.bf16.mxu0 0
    %3168 = vmatpush1.bf16.msra.mxu0 0
    %3169 = vmatprep.subr.bf16.mxu0 0
    %3170 = vmatpush1.bf16.msra.mxu0 0
    %3171 = vmatprep.subr.bf16.mxu0 0
    %3172 = vmatpush1.bf16.msra.mxu0 0
    %3173 = vmatprep.subr.bf16.mxu0 0
    %3174 = vmatpush1.bf16.msra.mxu0 0
    %3175 = vmatprep.subr.bf16.mxu0 0
    %3176 = vmatpush1.bf16.msra.mxu0 0
    %3177 = vmatprep.subr.bf16.mxu0 0
    %3178 = vmatpush1.bf16.msra.mxu0 0
    %3179 = vmatprep.mubr.bf16.mxu0 0
    %3180 = vmatmul.mubr.bf16.gmra.mrb[0].mxu0 %v257
    %v3181 = vpop.f32.mrb[0].mxu0
    %v3182 = vadd.f32 %v3133, %v3181
    %v3183 = vpop.f32.mrb[0].mxu0
    %v3184 = vpop.f32.mrb[0].mxu0
    %v3185 = vadd.f32 %v3133, %v3184
    %v3186 = vpop.f32.mrb[0].mxu0
    %3187 = vdwg.mxu0
    %v3188 = vld [vmem:[%s9] sm:$0xf]
    %v3189 = vld [vmem:[%s9 + $0x4] sm:$0xf]
    %v3190 = vld [vmem:[%s9 + $0x8] sm:$0xf]
    %v3191 = vld [vmem:[%s9 + $0xc] sm:$0xf]
    %v3192 = vld [vmem:[%s11] sm:$0x1]
    %v3194 = vlaneseq
    %v3195 = vshrl.u32 %v3194, 7
    %v3196 = vsub.s32 0, %v3195
    %v3197 = vrot.slane %v3192, %v3196
    %v3203 = vunpack.c.l.b16 %v3188
    %v3204 = vunpack.c.l.b16 %v3189
    %v3205 = vunpack.c.l.b16 %v3190
    %v3206 = vunpack.c.l.b16 %v3191
    %v3207 = vpack.c.b16 %v3204, %v3203
    %v3208 = vpack.c.b16 %v3206, %v3205
    %3211 = vmatprep.subr.bf16.mxu0 0
    %3212 = vmatpush1.bf16.msra.mxu0 %v3207
    %3213 = vmatprep.subr.bf16.mxu0 0
    %3214 = vmatpush1.bf16.msra.mxu0 %v3208
    %3215 = vmatprep.subr.bf16.mxu0 0
    %3216 = vmatpush1.bf16.msra.mxu0 0
    %3217 = vmatprep.subr.bf16.mxu0 0
    %3218 = vmatpush1.bf16.msra.mxu0 0
    %3219 = vmatprep.subr.bf16.mxu0 0
    %3220 = vmatpush1.bf16.msra.mxu0 0
    %3221 = vmatprep.subr.bf16.mxu0 0
    %3222 = vmatpush1.bf16.msra.mxu0 0
    %3223 = vmatprep.subr.bf16.mxu0 0
    %3224 = vmatpush1.bf16.msra.mxu0 0
    %3225 = vmatprep.subr.bf16.mxu0 0
    %3226 = vmatpush1.bf16.msra.mxu0 0
    %3227 = vmatprep.subr.bf16.mxu0 0
    %3228 = vmatpush1.bf16.msra.mxu0 0
    %3229 = vmatprep.subr.bf16.mxu0 0
    %3230 = vmatpush1.bf16.msra.mxu0 0
    %3231 = vmatprep.subr.bf16.mxu0 0
    %3232 = vmatpush1.bf16.msra.mxu0 0
    %3233 = vmatprep.subr.bf16.mxu0 0
    %3234 = vmatpush1.bf16.msra.mxu0 0
    %3235 = vmatprep.subr.bf16.mxu0 0
    %3236 = vmatpush1.bf16.msra.mxu0 0
    %3237 = vmatprep.subr.bf16.mxu0 0
    %3238 = vmatpush1.bf16.msra.mxu0 0
    %3239 = vmatprep.subr.bf16.mxu0 0
    %3240 = vmatpush1.bf16.msra.mxu0 0
    %3241 = vmatprep.subr.bf16.mxu0 0
    %3242 = vmatpush1.bf16.msra.mxu0 0
    %3243 = vmatprep.mubr.bf16.mxu0 0
    %3244 = vmatmul.mubr.bf16.gmra.mrb[0].mxu0 %v179
    %v3245 = vpop.f32.mrb[0].mxu0
    %v3246 = vadd.f32 %v3197, %v3245
    %v3247 = vpop.f32.mrb[0].mxu0
    %v3248 = vpop.f32.mrb[0].mxu0
    %v3249 = vadd.f32 %v3197, %v3248
    %v3250 = vpop.f32.mrb[0].mxu0
    %3251 = vmatprep.mubr.bf16.mxu0 0
    %3252 = vmatmul.mubr.bf16.gmra.mrb[0].mxu0 %v182
    %v3253 = vpop.f32.mrb[0].mxu0
    %v3254 = vadd.f32 %v3197, %v3253
    %v3255 = vpop.f32.mrb[0].mxu0
    %v3256 = vpop.f32.mrb[0].mxu0
    %v3257 = vadd.f32 %v3197, %v3256
    %v3258 = vpop.f32.mrb[0].mxu0
    %3259 = vdwg.mxu0
    %3262 = vrot.lane.b32.xlu0 %v3182, 120
    %v3263 = vpop.permute.xlu0 %3262
    %3264 = vrot.lane.b32.xlu0 %v3185, 120
    %v3265 = vpop.permute.xlu0 %3264
    %3268 = vrot.lane.b32.xlu0 %v3182, 112
    %v3269 = vpop.permute.xlu0 %3268
    %3270 = vrot.lane.b32.xlu0 %v3185, 112
    %v3271 = vpop.permute.xlu0 %3270
    %3274 = vrot.lane.b32.xlu0 %v3182, 104
    %v3275 = vpop.permute.xlu0 %3274
    %3276 = vrot.lane.b32.xlu0 %v3185, 104
    %v3277 = vpop.permute.xlu0 %3276
    %v3280 = vcombine.low %v3182, %v3269
    %v3281 = vcombine.high %v3182, %v3269
    %v3283 = vunpack.c.l.s4 1983009808
    %v3284 = vunpack.c.0.s8 %v3283
    %v3285 = vlaneseq
    %v3286 = vshrl.u32 %v3285, 7
    %v3287 = vsub.s32 %v3284, %v3286
    %v3288 = vrot.slane %v3280, %v3287
    %v3290 = vunpack.c.l.s4 1983009808
    %v3291 = vunpack.c.0.s8 %v3290
    %v3292 = vlaneseq
    %v3293 = vshrl.u32 %v3292, 7
    %v3294 = vsub.s32 %v3291, %v3293
    %v3295 = vrot.slane %v3281, %v3294
    %v3296 = vcombine.low %v3263, %v3275
    %v3297 = vcombine.high %v3263, %v3275
    %v3299 = vunpack.c.l.s4 1983009808
    %v3300 = vunpack.c.0.s8 %v3299
    %v3301 = vlaneseq
    %v3302 = vshrl.u32 %v3301, 7
    %v3303 = vsub.s32 %v3300, %v3302
    %v3304 = vrot.slane %v3296, %v3303
    %v3306 = vunpack.c.l.s4 1983009808
    %v3307 = vunpack.c.0.s8 %v3306
    %v3308 = vlaneseq
    %v3309 = vshrl.u32 %v3308, 7
    %v3310 = vsub.s32 %v3307, %v3309
    %v3311 = vrot.slane %v3297, %v3310
    %v3312 = vcombine.low %v3288, %v3304
    %v3313 = vcombine.high %v3288, %v3304
    %v3315 = vunpack.c.l.s4 1934713408
    %v3316 = vunpack.c.0.s8 %v3315
    %v3317 = vlaneseq
    %v3318 = vshrl.u32 %v3317, 7
    %v3319 = vsub.s32 %v3316, %v3318
    %v3320 = vrot.slane %v3312, %v3319
    %v3322 = vunpack.c.l.s4 1934713408
    %v3323 = vunpack.c.0.s8 %v3322
    %v3324 = vlaneseq
    %v3325 = vshrl.u32 %v3324, 7
    %v3326 = vsub.s32 %v3323, %v3325
    %v3327 = vrot.slane %v3313, %v3326
    %v3328 = vcombine.low %v3295, %v3311
    %v3329 = vcombine.high %v3295, %v3311
    %v3331 = vunpack.c.l.s4 1934713408
    %v3332 = vunpack.c.0.s8 %v3331
    %v3333 = vlaneseq
    %v3334 = vshrl.u32 %v3333, 7
    %v3335 = vsub.s32 %v3332, %v3334
    %v3336 = vrot.slane %v3328, %v3335
    %v3338 = vunpack.c.l.s4 1934713408
    %v3339 = vunpack.c.0.s8 %v3338
    %v3340 = vlaneseq
    %v3341 = vshrl.u32 %v3340, 7
    %v3342 = vsub.s32 %v3339, %v3341
    %v3343 = vrot.slane %v3329, %v3342
    %v3344 = vcombine.high %v3320, 0.0
    %v3345 = vcombine.high %v3327, 0.0
    %v3346 = vcombine.high %v3336, 0.0
    %v3347 = vcombine.high %v3343, 0.0
    %v3348 = vcombine.low %v3185, %v3271
    %v3349 = vcombine.high %v3185, %v3271
    %v3351 = vunpack.c.l.s4 1983009808
    %v3352 = vunpack.c.0.s8 %v3351
    %v3353 = vlaneseq
    %v3354 = vshrl.u32 %v3353, 7
    %v3355 = vsub.s32 %v3352, %v3354
    %v3356 = vrot.slane %v3348, %v3355
    %v3358 = vunpack.c.l.s4 1983009808
    %v3359 = vunpack.c.0.s8 %v3358
    %v3360 = vlaneseq
    %v3361 = vshrl.u32 %v3360, 7
    %v3362 = vsub.s32 %v3359, %v3361
    %v3363 = vrot.slane %v3349, %v3362
    %v3364 = vcombine.low %v3265, %v3277
    %v3365 = vcombine.high %v3265, %v3277
    %v3367 = vunpack.c.l.s4 1983009808
    %v3368 = vunpack.c.0.s8 %v3367
    %v3369 = vlaneseq
    %v3370 = vshrl.u32 %v3369, 7
    %v3371 = vsub.s32 %v3368, %v3370
    %v3372 = vrot.slane %v3364, %v3371
    %v3374 = vunpack.c.l.s4 1983009808
    %v3375 = vunpack.c.0.s8 %v3374
    %v3376 = vlaneseq
    %v3377 = vshrl.u32 %v3376, 7
    %v3378 = vsub.s32 %v3375, %v3377
    %v3379 = vrot.slane %v3365, %v3378
    %v3380 = vcombine.low %v3356, %v3372
    %v3381 = vcombine.high %v3356, %v3372
    %v3383 = vunpack.c.l.s4 1934713408
    %v3384 = vunpack.c.0.s8 %v3383
    %v3385 = vlaneseq
    %v3386 = vshrl.u32 %v3385, 7
    %v3387 = vsub.s32 %v3384, %v3386
    %v3388 = vrot.slane %v3380, %v3387
    %v3390 = vunpack.c.l.s4 1934713408
    %v3391 = vunpack.c.0.s8 %v3390
    %v3392 = vlaneseq
    %v3393 = vshrl.u32 %v3392, 7
    %v3394 = vsub.s32 %v3391, %v3393
    %v3395 = vrot.slane %v3381, %v3394
    %v3396 = vcombine.low %v3363, %v3379
    %v3397 = vcombine.high %v3363, %v3379
    %v3399 = vunpack.c.l.s4 1934713408
    %v3400 = vunpack.c.0.s8 %v3399
    %v3401 = vlaneseq
    %v3402 = vshrl.u32 %v3401, 7
    %v3403 = vsub.s32 %v3400, %v3402
    %v3404 = vrot.slane %v3396, %v3403
    %v3406 = vunpack.c.l.s4 1934713408
    %v3407 = vunpack.c.0.s8 %v3406
    %v3408 = vlaneseq
    %v3409 = vshrl.u32 %v3408, 7
    %v3410 = vsub.s32 %v3407, %v3409
    %v3411 = vrot.slane %v3397, %v3410
    %v3412 = vcombine.high %v3388, 0.0
    %v3413 = vcombine.high %v3395, 0.0
    %v3414 = vcombine.high %v3404, 0.0
    %v3415 = vcombine.high %v3411, 0.0
    %v3416 = vcombine.low %v3320, %v3327
    %v3418 = vunpack.c.l.s4 1983009808
    %v3419 = vunpack.c.0.s8 %v3418
    %v3420 = vlaneseq
    %v3421 = vshrl.u32 %v3420, 7
    %v3422 = vsub.s32 %v3419, %v3421
    %v3423 = vrot.slane %v3416, %v3422
    %v3424 = vcombine.low %v3344, %v3345
    %v3426 = vunpack.c.l.s4 1983009808
    %v3427 = vunpack.c.0.s8 %v3426
    %v3428 = vlaneseq
    %v3429 = vshrl.u32 %v3428, 7
    %v3430 = vsub.s32 %v3427, %v3429
    %v3431 = vrot.slane %v3424, %v3430
    %v3432 = vcombine.low %v3336, %v3343
    %v3434 = vunpack.c.l.s4 1983009808
    %v3435 = vunpack.c.0.s8 %v3434
    %v3436 = vlaneseq
    %v3437 = vshrl.u32 %v3436, 7
    %v3438 = vsub.s32 %v3435, %v3437
    %v3439 = vrot.slane %v3432, %v3438
    %v3440 = vcombine.low %v3346, %v3347
    %v3442 = vunpack.c.l.s4 1983009808
    %v3443 = vunpack.c.0.s8 %v3442
    %v3444 = vlaneseq
    %v3445 = vshrl.u32 %v3444, 7
    %v3446 = vsub.s32 %v3443, %v3445
    %v3447 = vrot.slane %v3440, %v3446
    %v3448 = vcombine.low %v3423, %v3431
    %v3449 = vcombine.high %v3423, %v3431
    %v3451 = vunpack.c.l.s4 1934713408
    %v3452 = vunpack.c.0.s8 %v3451
    %v3453 = vlaneseq
    %v3454 = vshrl.u32 %v3453, 7
    %v3455 = vsub.s32 %v3452, %v3454
    %v3456 = vrot.slane %v3448, %v3455
    %v3458 = vunpack.c.l.s4 1934713408
    %v3459 = vunpack.c.0.s8 %v3458
    %v3460 = vlaneseq
    %v3461 = vshrl.u32 %v3460, 7
    %v3462 = vsub.s32 %v3459, %v3461
    %v3463 = vrot.slane %v3449, %v3462
    %v3464 = vcombine.low %v3439, %v3447
    %v3465 = vcombine.high %v3439, %v3447
    %v3467 = vunpack.c.l.s4 1934713408
    %v3468 = vunpack.c.0.s8 %v3467
    %v3469 = vlaneseq
    %v3470 = vshrl.u32 %v3469, 7
    %v3471 = vsub.s32 %v3468, %v3470
    %v3472 = vrot.slane %v3464, %v3471
    %v3474 = vunpack.c.l.s4 1934713408
    %v3475 = vunpack.c.0.s8 %v3474
    %v3476 = vlaneseq
    %v3477 = vshrl.u32 %v3476, 7
    %v3478 = vsub.s32 %v3475, %v3477
    %v3479 = vrot.slane %v3465, %v3478
    %v3480 = vcombine.low %v3456, %v3472
    %v3481 = vcombine.high %v3456, %v3472
    %v3482 = vcombine.low %v3463, %v3479
    %v3483 = vcombine.high %v3463, %v3479
    %v3484 = vcombine.low %v3388, %v3395
    %v3486 = vunpack.c.l.s4 1983009808
    %v3487 = vunpack.c.0.s8 %v3486
    %v3488 = vlaneseq
    %v3489 = vshrl.u32 %v3488, 7
    %v3490 = vsub.s32 %v3487, %v3489
    %v3491 = vrot.slane %v3484, %v3490
    %v3492 = vcombine.low %v3412, %v3413
    %v3494 = vunpack.c.l.s4 1983009808
    %v3495 = vunpack.c.0.s8 %v3494
    %v3496 = vlaneseq
    %v3497 = vshrl.u32 %v3496, 7
    %v3498 = vsub.s32 %v3495, %v3497
    %v3499 = vrot.slane %v3492, %v3498
    %v3500 = vcombine.low %v3404, %v3411
    %v3502 = vunpack.c.l.s4 1983009808
    %v3503 = vunpack.c.0.s8 %v3502
    %v3504 = vlaneseq
    %v3505 = vshrl.u32 %v3504, 7
    %v3506 = vsub.s32 %v3503, %v3505
    %v3507 = vrot.slane %v3500, %v3506
    %v3508 = vcombine.low %v3414, %v3415
    %v3510 = vunpack.c.l.s4 1983009808
    %v3511 = vunpack.c.0.s8 %v3510
    %v3512 = vlaneseq
    %v3513 = vshrl.u32 %v3512, 7
    %v3514 = vsub.s32 %v3511, %v3513
    %v3515 = vrot.slane %v3508, %v3514
    %v3516 = vcombine.low %v3491, %v3499
    %v3517 = vcombine.high %v3491, %v3499
    %v3519 = vunpack.c.l.s4 1934713408
    %v3520 = vunpack.c.0.s8 %v3519
    %v3521 = vlaneseq
    %v3522 = vshrl.u32 %v3521, 7
    %v3523 = vsub.s32 %v3520, %v3522
    %v3524 = vrot.slane %v3516, %v3523
    %v3526 = vunpack.c.l.s4 1934713408
    %v3527 = vunpack.c.0.s8 %v3526
    %v3528 = vlaneseq
    %v3529 = vshrl.u32 %v3528, 7
    %v3530 = vsub.s32 %v3527, %v3529
    %v3531 = vrot.slane %v3517, %v3530
    %v3532 = vcombine.low %v3507, %v3515
    %v3533 = vcombine.high %v3507, %v3515
    %v3535 = vunpack.c.l.s4 1934713408
    %v3536 = vunpack.c.0.s8 %v3535
    %v3537 = vlaneseq
    %v3538 = vshrl.u32 %v3537, 7
    %v3539 = vsub.s32 %v3536, %v3538
    %v3540 = vrot.slane %v3532, %v3539
    %v3542 = vunpack.c.l.s4 1934713408
    %v3543 = vunpack.c.0.s8 %v3542
    %v3544 = vlaneseq
    %v3545 = vshrl.u32 %v3544, 7
    %v3546 = vsub.s32 %v3543, %v3545
    %v3547 = vrot.slane %v3533, %v3546
    %v3548 = vcombine.low %v3524, %v3540
    %v3549 = vcombine.high %v3524, %v3540
    %v3550 = vcombine.low %v3531, %v3547
    %v3551 = vcombine.high %v3531, %v3547
    %v3552 = vpack.c.bf16 %v3480, %v3480
    %v3553 = vpack.c.bf16 %v3548, %v3548
    %v3554 = vpack.c.bf16 %v3481, %v3481
    %v3555 = vpack.c.bf16 %v3549, %v3549
    %v3556 = vpack.c.bf16 %v3482, %v3482
    %v3557 = vpack.c.bf16 %v3550, %v3550
    %v3558 = vpack.c.bf16 %v3483, %v3483
    %v3559 = vpack.c.bf16 %v3551, %v3551
    %3564 = vrot.lane.b32.xlu0 %v3246, 120
    %v3565 = vpop.permute.xlu0 %3564
    %3566 = vrot.lane.b32.xlu0 %v3249, 120
    %v3567 = vpop.permute.xlu0 %3566
    %3568 = vrot.lane.b32.xlu0 %v3254, 120
    %v3569 = vpop.permute.xlu0 %3568
    %3570 = vrot.lane.b32.xlu0 %v3257, 120
    %v3571 = vpop.permute.xlu0 %3570
    %3576 = vrot.lane.b32.xlu0 %v3246, 112
    %v3577 = vpop.permute.xlu0 %3576
    %3578 = vrot.lane.b32.xlu0 %v3249, 112
    %v3579 = vpop.permute.xlu0 %3578
    %3580 = vrot.lane.b32.xlu0 %v3254, 112
    %v3581 = vpop.permute.xlu0 %3580
    %3582 = vrot.lane.b32.xlu0 %v3257, 112
    %v3583 = vpop.permute.xlu0 %3582
    %3588 = vrot.lane.b32.xlu0 %v3246, 104
    %v3589 = vpop.permute.xlu0 %3588
    %3590 = vrot.lane.b32.xlu0 %v3249, 104
    %v3591 = vpop.permute.xlu0 %3590
    %3592 = vrot.lane.b32.xlu0 %v3254, 104
    %v3593 = vpop.permute.xlu0 %3592
    %3594 = vrot.lane.b32.xlu0 %v3257, 104
    %v3595 = vpop.permute.xlu0 %3594
    %v3600 = vcombine.low %v3246, %v3577
    %v3601 = vcombine.high %v3246, %v3577
    %v3603 = vunpack.c.l.s4 1983009808
    %v3604 = vunpack.c.0.s8 %v3603
    %v3605 = vlaneseq
    %v3606 = vshrl.u32 %v3605, 7
    %v3607 = vsub.s32 %v3604, %v3606
    %v3608 = vrot.slane %v3600, %v3607
    %v3610 = vunpack.c.l.s4 1983009808
    %v3611 = vunpack.c.0.s8 %v3610
    %v3612 = vlaneseq
    %v3613 = vshrl.u32 %v3612, 7
    %v3614 = vsub.s32 %v3611, %v3613
    %v3615 = vrot.slane %v3601, %v3614
    %v3616 = vcombine.low %v3565, %v3589
    %v3617 = vcombine.high %v3565, %v3589
    %v3619 = vunpack.c.l.s4 1983009808
    %v3620 = vunpack.c.0.s8 %v3619
    %v3621 = vlaneseq
    %v3622 = vshrl.u32 %v3621, 7
    %v3623 = vsub.s32 %v3620, %v3622
    %v3624 = vrot.slane %v3616, %v3623
    %v3626 = vunpack.c.l.s4 1983009808
    %v3627 = vunpack.c.0.s8 %v3626
    %v3628 = vlaneseq
    %v3629 = vshrl.u32 %v3628, 7
    %v3630 = vsub.s32 %v3627, %v3629
    %v3631 = vrot.slane %v3617, %v3630
    %v3632 = vcombine.low %v3608, %v3624
    %v3633 = vcombine.high %v3608, %v3624
    %v3635 = vunpack.c.l.s4 1934713408
    %v3636 = vunpack.c.0.s8 %v3635
    %v3637 = vlaneseq
    %v3638 = vshrl.u32 %v3637, 7
    %v3639 = vsub.s32 %v3636, %v3638
    %v3640 = vrot.slane %v3632, %v3639
    %v3642 = vunpack.c.l.s4 1934713408
    %v3643 = vunpack.c.0.s8 %v3642
    %v3644 = vlaneseq
    %v3645 = vshrl.u32 %v3644, 7
    %v3646 = vsub.s32 %v3643, %v3645
    %v3647 = vrot.slane %v3633, %v3646
    %v3648 = vcombine.low %v3615, %v3631
    %v3649 = vcombine.high %v3615, %v3631
    %v3651 = vunpack.c.l.s4 1934713408
    %v3652 = vunpack.c.0.s8 %v3651
    %v3653 = vlaneseq
    %v3654 = vshrl.u32 %v3653, 7
    %v3655 = vsub.s32 %v3652, %v3654
    %v3656 = vrot.slane %v3648, %v3655
    %v3658 = vunpack.c.l.s4 1934713408
    %v3659 = vunpack.c.0.s8 %v3658
    %v3660 = vlaneseq
    %v3661 = vshrl.u32 %v3660, 7
    %v3662 = vsub.s32 %v3659, %v3661
    %v3663 = vrot.slane %v3649, %v3662
    %v3664 = vcombine.high %v3640, 0.0
    %v3665 = vcombine.high %v3647, 0.0
    %v3666 = vcombine.high %v3656, 0.0
    %v3667 = vcombine.high %v3663, 0.0
    %v3668 = vcombine.low %v3249, %v3579
    %v3669 = vcombine.high %v3249, %v3579
    %v3671 = vunpack.c.l.s4 1983009808
    %v3672 = vunpack.c.0.s8 %v3671
    %v3673 = vlaneseq
    %v3674 = vshrl.u32 %v3673, 7
    %v3675 = vsub.s32 %v3672, %v3674
    %v3676 = vrot.slane %v3668, %v3675
    %v3678 = vunpack.c.l.s4 1983009808
    %v3679 = vunpack.c.0.s8 %v3678
    %v3680 = vlaneseq
    %v3681 = vshrl.u32 %v3680, 7
    %v3682 = vsub.s32 %v3679, %v3681
    %v3683 = vrot.slane %v3669, %v3682
    %v3684 = vcombine.low %v3567, %v3591
    %v3685 = vcombine.high %v3567, %v3591
    %v3687 = vunpack.c.l.s4 1983009808
    %v3688 = vunpack.c.0.s8 %v3687
    %v3689 = vlaneseq
    %v3690 = vshrl.u32 %v3689, 7
    %v3691 = vsub.s32 %v3688, %v3690
    %v3692 = vrot.slane %v3684, %v3691
    %v3694 = vunpack.c.l.s4 1983009808
    %v3695 = vunpack.c.0.s8 %v3694
    %v3696 = vlaneseq
    %v3697 = vshrl.u32 %v3696, 7
    %v3698 = vsub.s32 %v3695, %v3697
    %v3699 = vrot.slane %v3685, %v3698
    %v3700 = vcombine.low %v3676, %v3692
    %v3701 = vcombine.high %v3676, %v3692
    %v3703 = vunpack.c.l.s4 1934713408
    %v3704 = vunpack.c.0.s8 %v3703
    %v3705 = vlaneseq
    %v3706 = vshrl.u32 %v3705, 7
    %v3707 = vsub.s32 %v3704, %v3706
    %v3708 = vrot.slane %v3700, %v3707
    %v3710 = vunpack.c.l.s4 1934713408
    %v3711 = vunpack.c.0.s8 %v3710
    %v3712 = vlaneseq
    %v3713 = vshrl.u32 %v3712, 7
    %v3714 = vsub.s32 %v3711, %v3713
    %v3715 = vrot.slane %v3701, %v3714
    %v3716 = vcombine.low %v3683, %v3699
    %v3717 = vcombine.high %v3683, %v3699
    %v3719 = vunpack.c.l.s4 1934713408
    %v3720 = vunpack.c.0.s8 %v3719
    %v3721 = vlaneseq
    %v3722 = vshrl.u32 %v3721, 7
    %v3723 = vsub.s32 %v3720, %v3722
    %v3724 = vrot.slane %v3716, %v3723
    %v3726 = vunpack.c.l.s4 1934713408
    %v3727 = vunpack.c.0.s8 %v3726
    %v3728 = vlaneseq
    %v3729 = vshrl.u32 %v3728, 7
    %v3730 = vsub.s32 %v3727, %v3729
    %v3731 = vrot.slane %v3717, %v3730
    %v3732 = vcombine.high %v3708, 0.0
    %v3733 = vcombine.high %v3715, 0.0
    %v3734 = vcombine.high %v3724, 0.0
    %v3735 = vcombine.high %v3731, 0.0
    %v3736 = vcombine.low %v3254, %v3581
    %v3737 = vcombine.high %v3254, %v3581
    %v3739 = vunpack.c.l.s4 1983009808
    %v3740 = vunpack.c.0.s8 %v3739
    %v3741 = vlaneseq
    %v3742 = vshrl.u32 %v3741, 7
    %v3743 = vsub.s32 %v3740, %v3742
    %v3744 = vrot.slane %v3736, %v3743
    %v3746 = vunpack.c.l.s4 1983009808
    %v3747 = vunpack.c.0.s8 %v3746
    %v3748 = vlaneseq
    %v3749 = vshrl.u32 %v3748, 7
    %v3750 = vsub.s32 %v3747, %v3749
    %v3751 = vrot.slane %v3737, %v3750
    %v3752 = vcombine.low %v3569, %v3593
    %v3753 = vcombine.high %v3569, %v3593
    %v3755 = vunpack.c.l.s4 1983009808
    %v3756 = vunpack.c.0.s8 %v3755
    %v3757 = vlaneseq
    %v3758 = vshrl.u32 %v3757, 7
    %v3759 = vsub.s32 %v3756, %v3758
    %v3760 = vrot.slane %v3752, %v3759
    %v3762 = vunpack.c.l.s4 1983009808
    %v3763 = vunpack.c.0.s8 %v3762
    %v3764 = vlaneseq
    %v3765 = vshrl.u32 %v3764, 7
    %v3766 = vsub.s32 %v3763, %v3765
    %v3767 = vrot.slane %v3753, %v3766
    %v3768 = vcombine.low %v3744, %v3760
    %v3769 = vcombine.high %v3744, %v3760
    %v3771 = vunpack.c.l.s4 1934713408
    %v3772 = vunpack.c.0.s8 %v3771
    %v3773 = vlaneseq
    %v3774 = vshrl.u32 %v3773, 7
    %v3775 = vsub.s32 %v3772, %v3774
    %v3776 = vrot.slane %v3768, %v3775
    %v3778 = vunpack.c.l.s4 1934713408
    %v3779 = vunpack.c.0.s8 %v3778
    %v3780 = vlaneseq
    %v3781 = vshrl.u32 %v3780, 7
    %v3782 = vsub.s32 %v3779, %v3781
    %v3783 = vrot.slane %v3769, %v3782
    %v3784 = vcombine.low %v3751, %v3767
    %v3785 = vcombine.high %v3751, %v3767
    %v3787 = vunpack.c.l.s4 1934713408
    %v3788 = vunpack.c.0.s8 %v3787
    %v3789 = vlaneseq
    %v3790 = vshrl.u32 %v3789, 7
    %v3791 = vsub.s32 %v3788, %v3790
    %v3792 = vrot.slane %v3784, %v3791
    %v3794 = vunpack.c.l.s4 1934713408
    %v3795 = vunpack.c.0.s8 %v3794
    %v3796 = vlaneseq
    %v3797 = vshrl.u32 %v3796, 7
    %v3798 = vsub.s32 %v3795, %v3797
    %v3799 = vrot.slane %v3785, %v3798
    %v3800 = vcombine.high %v3776, 0.0
    %v3801 = vcombine.high %v3783, 0.0
    %v3802 = vcombine.high %v3792, 0.0
    %v3803 = vcombine.high %v3799, 0.0
    %v3804 = vcombine.low %v3257, %v3583
    %v3805 = vcombine.high %v3257, %v3583
    %v3807 = vunpack.c.l.s4 1983009808
    %v3808 = vunpack.c.0.s8 %v3807
    %v3809 = vlaneseq
    %v3810 = vshrl.u32 %v3809, 7
    %v3811 = vsub.s32 %v3808, %v3810
    %v3812 = vrot.slane %v3804, %v3811
    %v3814 = vunpack.c.l.s4 1983009808
    %v3815 = vunpack.c.0.s8 %v3814
    %v3816 = vlaneseq
    %v3817 = vshrl.u32 %v3816, 7
    %v3818 = vsub.s32 %v3815, %v3817
    %v3819 = vrot.slane %v3805, %v3818
    %v3820 = vcombine.low %v3571, %v3595
    %v3821 = vcombine.high %v3571, %v3595
    %v3823 = vunpack.c.l.s4 1983009808
    %v3824 = vunpack.c.0.s8 %v3823
    %v3825 = vlaneseq
    %v3826 = vshrl.u32 %v3825, 7
    %v3827 = vsub.s32 %v3824, %v3826
    %v3828 = vrot.slane %v3820, %v3827
    %v3830 = vunpack.c.l.s4 1983009808
    %v3831 = vunpack.c.0.s8 %v3830
    %v3832 = vlaneseq
    %v3833 = vshrl.u32 %v3832, 7
    %v3834 = vsub.s32 %v3831, %v3833
    %v3835 = vrot.slane %v3821, %v3834
    %v3836 = vcombine.low %v3812, %v3828
    %v3837 = vcombine.high %v3812, %v3828
    %v3839 = vunpack.c.l.s4 1934713408
    %v3840 = vunpack.c.0.s8 %v3839
    %v3841 = vlaneseq
    %v3842 = vshrl.u32 %v3841, 7
    %v3843 = vsub.s32 %v3840, %v3842
    %v3844 = vrot.slane %v3836, %v3843
    %v3846 = vunpack.c.l.s4 1934713408
    %v3847 = vunpack.c.0.s8 %v3846
    %v3848 = vlaneseq
    %v3849 = vshrl.u32 %v3848, 7
    %v3850 = vsub.s32 %v3847, %v3849
    %v3851 = vrot.slane %v3837, %v3850
    %v3852 = vcombine.low %v3819, %v3835
    %v3853 = vcombine.high %v3819, %v3835
    %v3855 = vunpack.c.l.s4 1934713408
    %v3856 = vunpack.c.0.s8 %v3855
    %v3857 = vlaneseq
    %v3858 = vshrl.u32 %v3857, 7
    %v3859 = vsub.s32 %v3856, %v3858
    %v3860 = vrot.slane %v3852, %v3859
    %v3862 = vunpack.c.l.s4 1934713408
    %v3863 = vunpack.c.0.s8 %v3862
    %v3864 = vlaneseq
    %v3865 = vshrl.u32 %v3864, 7
    %v3866 = vsub.s32 %v3863, %v3865
    %v3867 = vrot.slane %v3853, %v3866
    %v3868 = vcombine.high %v3844, 0.0
    %v3869 = vcombine.high %v3851, 0.0
    %v3870 = vcombine.high %v3860, 0.0
    %v3871 = vcombine.high %v3867, 0.0
    %v3872 = vcombine.low %v3640, %v3647
    %v3874 = vunpack.c.l.s4 1983009808
    %v3875 = vunpack.c.0.s8 %v3874
    %v3876 = vlaneseq
    %v3877 = vshrl.u32 %v3876, 7
    %v3878 = vsub.s32 %v3875, %v3877
    %v3879 = vrot.slane %v3872, %v3878
    %v3880 = vcombine.low %v3664, %v3665
    %v3882 = vunpack.c.l.s4 1983009808
    %v3883 = vunpack.c.0.s8 %v3882
    %v3884 = vlaneseq
    %v3885 = vshrl.u32 %v3884, 7
    %v3886 = vsub.s32 %v3883, %v3885
    %v3887 = vrot.slane %v3880, %v3886
    %v3888 = vcombine.low %v3656, %v3663
    %v3890 = vunpack.c.l.s4 1983009808
    %v3891 = vunpack.c.0.s8 %v3890
    %v3892 = vlaneseq
    %v3893 = vshrl.u32 %v3892, 7
    %v3894 = vsub.s32 %v3891, %v3893
    %v3895 = vrot.slane %v3888, %v3894
    %v3896 = vcombine.low %v3666, %v3667
    %v3898 = vunpack.c.l.s4 1983009808
    %v3899 = vunpack.c.0.s8 %v3898
    %v3900 = vlaneseq
    %v3901 = vshrl.u32 %v3900, 7
    %v3902 = vsub.s32 %v3899, %v3901
    %v3903 = vrot.slane %v3896, %v3902
    %v3904 = vcombine.low %v3879, %v3887
    %v3905 = vcombine.high %v3879, %v3887
    %v3907 = vunpack.c.l.s4 1934713408
    %v3908 = vunpack.c.0.s8 %v3907
    %v3909 = vlaneseq
    %v3910 = vshrl.u32 %v3909, 7
    %v3911 = vsub.s32 %v3908, %v3910
    %v3912 = vrot.slane %v3904, %v3911
    %v3914 = vunpack.c.l.s4 1934713408
    %v3915 = vunpack.c.0.s8 %v3914
    %v3916 = vlaneseq
    %v3917 = vshrl.u32 %v3916, 7
    %v3918 = vsub.s32 %v3915, %v3917
    %v3919 = vrot.slane %v3905, %v3918
    %v3920 = vcombine.low %v3895, %v3903
    %v3921 = vcombine.high %v3895, %v3903
    %v3923 = vunpack.c.l.s4 1934713408
    %v3924 = vunpack.c.0.s8 %v3923
    %v3925 = vlaneseq
    %v3926 = vshrl.u32 %v3925, 7
    %v3927 = vsub.s32 %v3924, %v3926
    %v3928 = vrot.slane %v3920, %v3927
    %v3930 = vunpack.c.l.s4 1934713408
    %v3931 = vunpack.c.0.s8 %v3930
    %v3932 = vlaneseq
    %v3933 = vshrl.u32 %v3932, 7
    %v3934 = vsub.s32 %v3931, %v3933
    %v3935 = vrot.slane %v3921, %v3934
    %v3936 = vcombine.low %v3912, %v3928
    %v3937 = vcombine.high %v3912, %v3928
    %v3938 = vcombine.low %v3919, %v3935
    %v3939 = vcombine.high %v3919, %v3935
    %v3940 = vcombine.low %v3708, %v3715
    %v3942 = vunpack.c.l.s4 1983009808
    %v3943 = vunpack.c.0.s8 %v3942
    %v3944 = vlaneseq
    %v3945 = vshrl.u32 %v3944, 7
    %v3946 = vsub.s32 %v3943, %v3945
    %v3947 = vrot.slane %v3940, %v3946
    %v3948 = vcombine.low %v3732, %v3733
    %v3950 = vunpack.c.l.s4 1983009808
    %v3951 = vunpack.c.0.s8 %v3950
    %v3952 = vlaneseq
    %v3953 = vshrl.u32 %v3952, 7
    %v3954 = vsub.s32 %v3951, %v3953
    %v3955 = vrot.slane %v3948, %v3954
    %v3956 = vcombine.low %v3724, %v3731
    %v3958 = vunpack.c.l.s4 1983009808
    %v3959 = vunpack.c.0.s8 %v3958
    %v3960 = vlaneseq
    %v3961 = vshrl.u32 %v3960, 7
    %v3962 = vsub.s32 %v3959, %v3961
    %v3963 = vrot.slane %v3956, %v3962
    %v3964 = vcombine.low %v3734, %v3735
    %v3966 = vunpack.c.l.s4 1983009808
    %v3967 = vunpack.c.0.s8 %v3966
    %v3968 = vlaneseq
    %v3969 = vshrl.u32 %v3968, 7
    %v3970 = vsub.s32 %v3967, %v3969
    %v3971 = vrot.slane %v3964, %v3970
    %v3972 = vcombine.low %v3947, %v3955
    %v3973 = vcombine.high %v3947, %v3955
    %v3975 = vunpack.c.l.s4 1934713408
    %v3976 = vunpack.c.0.s8 %v3975
    %v3977 = vlaneseq
    %v3978 = vshrl.u32 %v3977, 7
    %v3979 = vsub.s32 %v3976, %v3978
    %v3980 = vrot.slane %v3972, %v3979
    %v3982 = vunpack.c.l.s4 1934713408
    %v3983 = vunpack.c.0.s8 %v3982
    %v3984 = vlaneseq
    %v3985 = vshrl.u32 %v3984, 7
    %v3986 = vsub.s32 %v3983, %v3985
    %v3987 = vrot.slane %v3973, %v3986
    %v3988 = vcombine.low %v3963, %v3971
    %v3989 = vcombine.high %v3963, %v3971
    %v3991 = vunpack.c.l.s4 1934713408
    %v3992 = vunpack.c.0.s8 %v3991
    %v3993 = vlaneseq
    %v3994 = vshrl.u32 %v3993, 7
    %v3995 = vsub.s32 %v3992, %v3994
    %v3996 = vrot.slane %v3988, %v3995
    %v3998 = vunpack.c.l.s4 1934713408
    %v3999 = vunpack.c.0.s8 %v3998
    %v4000 = vlaneseq
    %v4001 = vshrl.u32 %v4000, 7
    %v4002 = vsub.s32 %v3999, %v4001
    %v4003 = vrot.slane %v3989, %v4002
    %v4004 = vcombine.low %v3980, %v3996
    %v4005 = vcombine.high %v3980, %v3996
    %v4006 = vcombine.low %v3987, %v4003
    %v4007 = vcombine.high %v3987, %v4003
    %v4008 = vcombine.low %v3776, %v3783
    %v4010 = vunpack.c.l.s4 1983009808
    %v4011 = vunpack.c.0.s8 %v4010
    %v4012 = vlaneseq
    %v4013 = vshrl.u32 %v4012, 7
    %v4014 = vsub.s32 %v4011, %v4013
    %v4015 = vrot.slane %v4008, %v4014
    %v4016 = vcombine.low %v3800, %v3801
    %v4018 = vunpack.c.l.s4 1983009808
    %v4019 = vunpack.c.0.s8 %v4018
    %v4020 = vlaneseq
    %v4021 = vshrl.u32 %v4020, 7
    %v4022 = vsub.s32 %v4019, %v4021
    %v4023 = vrot.slane %v4016, %v4022
    %v4024 = vcombine.low %v3792, %v3799
    %v4026 = vunpack.c.l.s4 1983009808
    %v4027 = vunpack.c.0.s8 %v4026
    %v4028 = vlaneseq
    %v4029 = vshrl.u32 %v4028, 7
    %v4030 = vsub.s32 %v4027, %v4029
    %v4031 = vrot.slane %v4024, %v4030
    %v4032 = vcombine.low %v3802, %v3803
    %v4034 = vunpack.c.l.s4 1983009808
    %v4035 = vunpack.c.0.s8 %v4034
    %v4036 = vlaneseq
    %v4037 = vshrl.u32 %v4036, 7
    %v4038 = vsub.s32 %v4035, %v4037
    %v4039 = vrot.slane %v4032, %v4038
    %v4040 = vcombine.low %v4015, %v4023
    %v4041 = vcombine.high %v4015, %v4023
    %v4043 = vunpack.c.l.s4 1934713408
    %v4044 = vunpack.c.0.s8 %v4043
    %v4045 = vlaneseq
    %v4046 = vshrl.u32 %v4045, 7
    %v4047 = vsub.s32 %v4044, %v4046
    %v4048 = vrot.slane %v4040, %v4047
    %v4050 = vunpack.c.l.s4 1934713408
    %v4051 = vunpack.c.0.s8 %v4050
    %v4052 = vlaneseq
    %v4053 = vshrl.u32 %v4052, 7
    %v4054 = vsub.s32 %v4051, %v4053
    %v4055 = vrot.slane %v4041, %v4054
    %v4056 = vcombine.low %v4031, %v4039
    %v4057 = vcombine.high %v4031, %v4039
    %v4059 = vunpack.c.l.s4 1934713408
    %v4060 = vunpack.c.0.s8 %v4059
    %v4061 = vlaneseq
    %v4062 = vshrl.u32 %v4061, 7
    %v4063 = vsub.s32 %v4060, %v4062
    %v4064 = vrot.slane %v4056, %v4063
    %v4066 = vunpack.c.l.s4 1934713408
    %v4067 = vunpack.c.0.s8 %v4066
    %v4068 = vlaneseq
    %v4069 = vshrl.u32 %v4068, 7
    %v4070 = vsub.s32 %v4067, %v4069
    %v4071 = vrot.slane %v4057, %v4070
    %v4072 = vcombine.low %v4048, %v4064
    %v4073 = vcombine.high %v4048, %v4064
    %v4074 = vcombine.low %v4055, %v4071
    %v4075 = vcombine.high %v4055, %v4071
    %v4076 = vcombine.low %v3844, %v3851
    %v4078 = vunpack.c.l.s4 1983009808
    %v4079 = vunpack.c.0.s8 %v4078
    %v4080 = vlaneseq
    %v4081 = vshrl.u32 %v4080, 7
    %v4082 = vsub.s32 %v4079, %v4081
    %v4083 = vrot.slane %v4076, %v4082
    %v4084 = vcombine.low %v3868, %v3869
    %v4086 = vunpack.c.l.s4 1983009808
    %v4087 = vunpack.c.0.s8 %v4086
    %v4088 = vlaneseq
    %v4089 = vshrl.u32 %v4088, 7
    %v4090 = vsub.s32 %v4087, %v4089
    %v4091 = vrot.slane %v4084, %v4090
    %v4092 = vcombine.low %v3860, %v3867
    %v4094 = vunpack.c.l.s4 1983009808
    %v4095 = vunpack.c.0.s8 %v4094
    %v4096 = vlaneseq
    %v4097 = vshrl.u32 %v4096, 7
    %v4098 = vsub.s32 %v4095, %v4097
    %v4099 = vrot.slane %v4092, %v4098
    %v4100 = vcombine.low %v3870, %v3871
    %v4102 = vunpack.c.l.s4 1983009808
    %v4103 = vunpack.c.0.s8 %v4102
    %v4104 = vlaneseq
    %v4105 = vshrl.u32 %v4104, 7
    %v4106 = vsub.s32 %v4103, %v4105
    %v4107 = vrot.slane %v4100, %v4106
    %v4108 = vcombine.low %v4083, %v4091
    %v4109 = vcombine.high %v4083, %v4091
    %v4111 = vunpack.c.l.s4 1934713408
    %v4112 = vunpack.c.0.s8 %v4111
    %v4113 = vlaneseq
    %v4114 = vshrl.u32 %v4113, 7
    %v4115 = vsub.s32 %v4112, %v4114
    %v4116 = vrot.slane %v4108, %v4115
    %v4118 = vunpack.c.l.s4 1934713408
    %v4119 = vunpack.c.0.s8 %v4118
    %v4120 = vlaneseq
    %v4121 = vshrl.u32 %v4120, 7
    %v4122 = vsub.s32 %v4119, %v4121
    %v4123 = vrot.slane %v4109, %v4122
    %v4124 = vcombine.low %v4099, %v4107
    %v4125 = vcombine.high %v4099, %v4107
    %v4127 = vunpack.c.l.s4 1934713408
    %v4128 = vunpack.c.0.s8 %v4127
    %v4129 = vlaneseq
    %v4130 = vshrl.u32 %v4129, 7
    %v4131 = vsub.s32 %v4128, %v4130
    %v4132 = vrot.slane %v4124, %v4131
    %v4134 = vunpack.c.l.s4 1934713408
    %v4135 = vunpack.c.0.s8 %v4134
    %v4136 = vlaneseq
    %v4137 = vshrl.u32 %v4136, 7
    %v4138 = vsub.s32 %v4135, %v4137
    %v4139 = vrot.slane %v4125, %v4138
    %v4140 = vcombine.low %v4116, %v4132
    %v4141 = vcombine.high %v4116, %v4132
    %v4142 = vcombine.low %v4123, %v4139
    %v4143 = vcombine.high %v4123, %v4139
    %v4144 = vpack.c.bf16 %v4004, %v3936
    %v4145 = vpack.c.bf16 %v4140, %v4072
    %v4146 = vpack.c.bf16 %v4005, %v3937
    %v4147 = vpack.c.bf16 %v4141, %v4073
    %v4148 = vpack.c.bf16 %v4006, %v3938
    %v4149 = vpack.c.bf16 %v4142, %v4074
    %v4150 = vpack.c.bf16 %v4007, %v3939
    %v4151 = vpack.c.bf16 %v4143, %v4075
    %4152 = vrot.lane.b32.xlu0 %v3246, 96
    %v4153 = vpop.permute.xlu0 %4152
    %4154 = vrot.lane.b32.xlu0 %v3249, 96
    %v4155 = vpop.permute.xlu0 %4154
    %4156 = vrot.lane.b32.xlu0 %v3254, 96
    %v4157 = vpop.permute.xlu0 %4156
    %4158 = vrot.lane.b32.xlu0 %v3257, 96
    %v4159 = vpop.permute.xlu0 %4158
    %4160 = vrot.lane.b32.xlu0 %v3565, 96
    %v4161 = vpop.permute.xlu0 %4160
    %4162 = vrot.lane.b32.xlu0 %v3567, 96
    %v4163 = vpop.permute.xlu0 %4162
    %4164 = vrot.lane.b32.xlu0 %v3569, 96
    %v4165 = vpop.permute.xlu0 %4164
    %4166 = vrot.lane.b32.xlu0 %v3571, 96
    %v4167 = vpop.permute.xlu0 %4166
    %4168 = vrot.lane.b32.xlu0 %v3577, 96
    %v4169 = vpop.permute.xlu0 %4168
    %4170 = vrot.lane.b32.xlu0 %v3579, 96
    %v4171 = vpop.permute.xlu0 %4170
    %4172 = vrot.lane.b32.xlu0 %v3581, 96
    %v4173 = vpop.permute.xlu0 %4172
    %4174 = vrot.lane.b32.xlu0 %v3583, 96
    %v4175 = vpop.permute.xlu0 %4174
    %4176 = vrot.lane.b32.xlu0 %v3589, 96
    %v4177 = vpop.permute.xlu0 %4176
    %4178 = vrot.lane.b32.xlu0 %v3591, 96
    %v4179 = vpop.permute.xlu0 %4178
    %4180 = vrot.lane.b32.xlu0 %v3593, 96
    %v4181 = vpop.permute.xlu0 %4180
    %4182 = vrot.lane.b32.xlu0 %v3595, 96
    %v4183 = vpop.permute.xlu0 %4182
    %v4200 = vcombine.low %v4153, %v4169
    %v4201 = vcombine.high %v4153, %v4169
    %v4203 = vunpack.c.l.s4 1983009808
    %v4204 = vunpack.c.0.s8 %v4203
    %v4205 = vlaneseq
    %v4206 = vshrl.u32 %v4205, 7
    %v4207 = vsub.s32 %v4204, %v4206
    %v4208 = vrot.slane %v4200, %v4207
    %v4210 = vunpack.c.l.s4 1983009808
    %v4211 = vunpack.c.0.s8 %v4210
    %v4212 = vlaneseq
    %v4213 = vshrl.u32 %v4212, 7
    %v4214 = vsub.s32 %v4211, %v4213
    %v4215 = vrot.slane %v4201, %v4214
    %v4216 = vcombine.low %v4161, %v4177
    %v4217 = vcombine.high %v4161, %v4177
    %v4219 = vunpack.c.l.s4 1983009808
    %v4220 = vunpack.c.0.s8 %v4219
    %v4221 = vlaneseq
    %v4222 = vshrl.u32 %v4221, 7
    %v4223 = vsub.s32 %v4220, %v4222
    %v4224 = vrot.slane %v4216, %v4223
    %v4226 = vunpack.c.l.s4 1983009808
    %v4227 = vunpack.c.0.s8 %v4226
    %v4228 = vlaneseq
    %v4229 = vshrl.u32 %v4228, 7
    %v4230 = vsub.s32 %v4227, %v4229
    %v4231 = vrot.slane %v4217, %v4230
    %v4232 = vcombine.low %v4208, %v4224
    %v4233 = vcombine.high %v4208, %v4224
    %v4235 = vunpack.c.l.s4 1934713408
    %v4236 = vunpack.c.0.s8 %v4235
    %v4237 = vlaneseq
    %v4238 = vshrl.u32 %v4237, 7
    %v4239 = vsub.s32 %v4236, %v4238
    %v4240 = vrot.slane %v4232, %v4239
    %v4242 = vunpack.c.l.s4 1934713408
    %v4243 = vunpack.c.0.s8 %v4242
    %v4244 = vlaneseq
    %v4245 = vshrl.u32 %v4244, 7
    %v4246 = vsub.s32 %v4243, %v4245
    %v4247 = vrot.slane %v4233, %v4246
    %v4248 = vcombine.low %v4215, %v4231
    %v4249 = vcombine.high %v4215, %v4231
    %v4251 = vunpack.c.l.s4 1934713408
    %v4252 = vunpack.c.0.s8 %v4251
    %v4253 = vlaneseq
    %v4254 = vshrl.u32 %v4253, 7
    %v4255 = vsub.s32 %v4252, %v4254
    %v4256 = vrot.slane %v4248, %v4255
    %v4258 = vunpack.c.l.s4 1934713408
    %v4259 = vunpack.c.0.s8 %v4258
    %v4260 = vlaneseq
    %v4261 = vshrl.u32 %v4260, 7
    %v4262 = vsub.s32 %v4259, %v4261
    %v4263 = vrot.slane %v4249, %v4262
    %v4264 = vcombine.high %v4240, 0.0
    %v4265 = vcombine.high %v4247, 0.0
    %v4266 = vcombine.high %v4256, 0.0
    %v4267 = vcombine.high %v4263, 0.0
    %v4268 = vcombine.low %v4155, %v4171
    %v4269 = vcombine.high %v4155, %v4171
    %v4271 = vunpack.c.l.s4 1983009808
    %v4272 = vunpack.c.0.s8 %v4271
    %v4273 = vlaneseq
    %v4274 = vshrl.u32 %v4273, 7
    %v4275 = vsub.s32 %v4272, %v4274
    %v4276 = vrot.slane %v4268, %v4275
    %v4278 = vunpack.c.l.s4 1983009808
    %v4279 = vunpack.c.0.s8 %v4278
    %v4280 = vlaneseq
    %v4281 = vshrl.u32 %v4280, 7
    %v4282 = vsub.s32 %v4279, %v4281
    %v4283 = vrot.slane %v4269, %v4282
    %v4284 = vcombine.low %v4163, %v4179
    %v4285 = vcombine.high %v4163, %v4179
    %v4287 = vunpack.c.l.s4 1983009808
    %v4288 = vunpack.c.0.s8 %v4287
    %v4289 = vlaneseq
    %v4290 = vshrl.u32 %v4289, 7
    %v4291 = vsub.s32 %v4288, %v4290
    %v4292 = vrot.slane %v4284, %v4291
    %v4294 = vunpack.c.l.s4 1983009808
    %v4295 = vunpack.c.0.s8 %v4294
    %v4296 = vlaneseq
    %v4297 = vshrl.u32 %v4296, 7
    %v4298 = vsub.s32 %v4295, %v4297
    %v4299 = vrot.slane %v4285, %v4298
    %v4300 = vcombine.low %v4276, %v4292
    %v4301 = vcombine.high %v4276, %v4292
    %v4303 = vunpack.c.l.s4 1934713408
    %v4304 = vunpack.c.0.s8 %v4303
    %v4305 = vlaneseq
    %v4306 = vshrl.u32 %v4305, 7
    %v4307 = vsub.s32 %v4304, %v4306
    %v4308 = vrot.slane %v4300, %v4307
    %v4310 = vunpack.c.l.s4 1934713408
    %v4311 = vunpack.c.0.s8 %v4310
    %v4312 = vlaneseq
    %v4313 = vshrl.u32 %v4312, 7
    %v4314 = vsub.s32 %v4311, %v4313
    %v4315 = vrot.slane %v4301, %v4314
    %v4316 = vcombine.low %v4283, %v4299
    %v4317 = vcombine.high %v4283, %v4299
    %v4319 = vunpack.c.l.s4 1934713408
    %v4320 = vunpack.c.0.s8 %v4319
    %v4321 = vlaneseq
    %v4322 = vshrl.u32 %v4321, 7
    %v4323 = vsub.s32 %v4320, %v4322
    %v4324 = vrot.slane %v4316, %v4323
    %v4326 = vunpack.c.l.s4 1934713408
    %v4327 = vunpack.c.0.s8 %v4326
    %v4328 = vlaneseq
    %v4329 = vshrl.u32 %v4328, 7
    %v4330 = vsub.s32 %v4327, %v4329
    %v4331 = vrot.slane %v4317, %v4330
    %v4332 = vcombine.high %v4308, 0.0
    %v4333 = vcombine.high %v4315, 0.0
    %v4334 = vcombine.high %v4324, 0.0
    %v4335 = vcombine.high %v4331, 0.0
    %v4336 = vcombine.low %v4157, %v4173
    %v4337 = vcombine.high %v4157, %v4173
    %v4339 = vunpack.c.l.s4 1983009808
    %v4340 = vunpack.c.0.s8 %v4339
    %v4341 = vlaneseq
    %v4342 = vshrl.u32 %v4341, 7
    %v4343 = vsub.s32 %v4340, %v4342
    %v4344 = vrot.slane %v4336, %v4343
    %v4346 = vunpack.c.l.s4 1983009808
    %v4347 = vunpack.c.0.s8 %v4346
    %v4348 = vlaneseq
    %v4349 = vshrl.u32 %v4348, 7
    %v4350 = vsub.s32 %v4347, %v4349
    %v4351 = vrot.slane %v4337, %v4350
    %v4352 = vcombine.low %v4165, %v4181
    %v4353 = vcombine.high %v4165, %v4181
    %v4355 = vunpack.c.l.s4 1983009808
    %v4356 = vunpack.c.0.s8 %v4355
    %v4357 = vlaneseq
    %v4358 = vshrl.u32 %v4357, 7
    %v4359 = vsub.s32 %v4356, %v4358
    %v4360 = vrot.slane %v4352, %v4359
    %v4362 = vunpack.c.l.s4 1983009808
    %v4363 = vunpack.c.0.s8 %v4362
    %v4364 = vlaneseq
    %v4365 = vshrl.u32 %v4364, 7
    %v4366 = vsub.s32 %v4363, %v4365
    %v4367 = vrot.slane %v4353, %v4366
    %v4368 = vcombine.low %v4344, %v4360
    %v4369 = vcombine.high %v4344, %v4360
    %v4371 = vunpack.c.l.s4 1934713408
    %v4372 = vunpack.c.0.s8 %v4371
    %v4373 = vlaneseq
    %v4374 = vshrl.u32 %v4373, 7
    %v4375 = vsub.s32 %v4372, %v4374
    %v4376 = vrot.slane %v4368, %v4375
    %v4378 = vunpack.c.l.s4 1934713408
    %v4379 = vunpack.c.0.s8 %v4378
    %v4380 = vlaneseq
    %v4381 = vshrl.u32 %v4380, 7
    %v4382 = vsub.s32 %v4379, %v4381
    %v4383 = vrot.slane %v4369, %v4382
    %v4384 = vcombine.low %v4351, %v4367
    %v4385 = vcombine.high %v4351, %v4367
    %v4387 = vunpack.c.l.s4 1934713408
    %v4388 = vunpack.c.0.s8 %v4387
    %v4389 = vlaneseq
    %v4390 = vshrl.u32 %v4389, 7
    %v4391 = vsub.s32 %v4388, %v4390
    %v4392 = vrot.slane %v4384, %v4391
    %v4394 = vunpack.c.l.s4 1934713408
    %v4395 = vunpack.c.0.s8 %v4394
    %v4396 = vlaneseq
    %v4397 = vshrl.u32 %v4396, 7
    %v4398 = vsub.s32 %v4395, %v4397
    %v4399 = vrot.slane %v4385, %v4398
    %v4400 = vcombine.high %v4376, 0.0
    %v4401 = vcombine.high %v4383, 0.0
    %v4402 = vcombine.high %v4392, 0.0
    %v4403 = vcombine.high %v4399, 0.0
    %v4404 = vcombine.low %v4159, %v4175
    %v4405 = vcombine.high %v4159, %v4175
    %v4407 = vunpack.c.l.s4 1983009808
    %v4408 = vunpack.c.0.s8 %v4407
    %v4409 = vlaneseq
    %v4410 = vshrl.u32 %v4409, 7
    %v4411 = vsub.s32 %v4408, %v4410
    %v4412 = vrot.slane %v4404, %v4411
    %v4414 = vunpack.c.l.s4 1983009808
    %v4415 = vunpack.c.0.s8 %v4414
    %v4416 = vlaneseq
    %v4417 = vshrl.u32 %v4416, 7
    %v4418 = vsub.s32 %v4415, %v4417
    %v4419 = vrot.slane %v4405, %v4418
    %v4420 = vcombine.low %v4167, %v4183
    %v4421 = vcombine.high %v4167, %v4183
    %v4423 = vunpack.c.l.s4 1983009808
    %v4424 = vunpack.c.0.s8 %v4423
    %v4425 = vlaneseq
    %v4426 = vshrl.u32 %v4425, 7
    %v4427 = vsub.s32 %v4424, %v4426
    %v4428 = vrot.slane %v4420, %v4427
    %v4430 = vunpack.c.l.s4 1983009808
    %v4431 = vunpack.c.0.s8 %v4430
    %v4432 = vlaneseq
    %v4433 = vshrl.u32 %v4432, 7
    %v4434 = vsub.s32 %v4431, %v4433
    %v4435 = vrot.slane %v4421, %v4434
    %v4436 = vcombine.low %v4412, %v4428
    %v4437 = vcombine.high %v4412, %v4428
    %v4439 = vunpack.c.l.s4 1934713408
    %v4440 = vunpack.c.0.s8 %v4439
    %v4441 = vlaneseq
    %v4442 = vshrl.u32 %v4441, 7
    %v4443 = vsub.s32 %v4440, %v4442
    %v4444 = vrot.slane %v4436, %v4443
    %v4446 = vunpack.c.l.s4 1934713408
    %v4447 = vunpack.c.0.s8 %v4446
    %v4448 = vlaneseq
    %v4449 = vshrl.u32 %v4448, 7
    %v4450 = vsub.s32 %v4447, %v4449
    %v4451 = vrot.slane %v4437, %v4450
    %v4452 = vcombine.low %v4419, %v4435
    %v4453 = vcombine.high %v4419, %v4435
    %v4455 = vunpack.c.l.s4 1934713408
    %v4456 = vunpack.c.0.s8 %v4455
    %v4457 = vlaneseq
    %v4458 = vshrl.u32 %v4457, 7
    %v4459 = vsub.s32 %v4456, %v4458
    %v4460 = vrot.slane %v4452, %v4459
    %v4462 = vunpack.c.l.s4 1934713408
    %v4463 = vunpack.c.0.s8 %v4462
    %v4464 = vlaneseq
    %v4465 = vshrl.u32 %v4464, 7
    %v4466 = vsub.s32 %v4463, %v4465
    %v4467 = vrot.slane %v4453, %v4466
    %v4468 = vcombine.high %v4444, 0.0
    %v4469 = vcombine.high %v4451, 0.0
    %v4470 = vcombine.high %v4460, 0.0
    %v4471 = vcombine.high %v4467, 0.0
    %v4472 = vcombine.low %v4240, %v4247
    %v4474 = vunpack.c.l.s4 1983009808
    %v4475 = vunpack.c.0.s8 %v4474
    %v4476 = vlaneseq
    %v4477 = vshrl.u32 %v4476, 7
    %v4478 = vsub.s32 %v4475, %v4477
    %v4479 = vrot.slane %v4472, %v4478
    %v4480 = vcombine.low %v4264, %v4265
    %v4482 = vunpack.c.l.s4 1983009808
    %v4483 = vunpack.c.0.s8 %v4482
    %v4484 = vlaneseq
    %v4485 = vshrl.u32 %v4484, 7
    %v4486 = vsub.s32 %v4483, %v4485
    %v4487 = vrot.slane %v4480, %v4486
    %v4488 = vcombine.low %v4256, %v4263
    %v4490 = vunpack.c.l.s4 1983009808
    %v4491 = vunpack.c.0.s8 %v4490
    %v4492 = vlaneseq
    %v4493 = vshrl.u32 %v4492, 7
    %v4494 = vsub.s32 %v4491, %v4493
    %v4495 = vrot.slane %v4488, %v4494
    %v4496 = vcombine.low %v4266, %v4267
    %v4498 = vunpack.c.l.s4 1983009808
    %v4499 = vunpack.c.0.s8 %v4498
    %v4500 = vlaneseq
    %v4501 = vshrl.u32 %v4500, 7
    %v4502 = vsub.s32 %v4499, %v4501
    %v4503 = vrot.slane %v4496, %v4502
    %v4504 = vcombine.low %v4479, %v4487
    %v4505 = vcombine.high %v4479, %v4487
    %v4507 = vunpack.c.l.s4 1934713408
    %v4508 = vunpack.c.0.s8 %v4507
    %v4509 = vlaneseq
    %v4510 = vshrl.u32 %v4509, 7
    %v4511 = vsub.s32 %v4508, %v4510
    %v4512 = vrot.slane %v4504, %v4511
    %v4514 = vunpack.c.l.s4 1934713408
    %v4515 = vunpack.c.0.s8 %v4514
    %v4516 = vlaneseq
    %v4517 = vshrl.u32 %v4516, 7
    %v4518 = vsub.s32 %v4515, %v4517
    %v4519 = vrot.slane %v4505, %v4518
    %v4520 = vcombine.low %v4495, %v4503
    %v4521 = vcombine.high %v4495, %v4503
    %v4523 = vunpack.c.l.s4 1934713408
    %v4524 = vunpack.c.0.s8 %v4523
    %v4525 = vlaneseq
    %v4526 = vshrl.u32 %v4525, 7
    %v4527 = vsub.s32 %v4524, %v4526
    %v4528 = vrot.slane %v4520, %v4527
    %v4530 = vunpack.c.l.s4 1934713408
    %v4531 = vunpack.c.0.s8 %v4530
    %v4532 = vlaneseq
    %v4533 = vshrl.u32 %v4532, 7
    %v4534 = vsub.s32 %v4531, %v4533
    %v4535 = vrot.slane %v4521, %v4534
    %v4536 = vcombine.low %v4512, %v4528
    %v4537 = vcombine.high %v4512, %v4528
    %v4538 = vcombine.low %v4519, %v4535
    %v4539 = vcombine.high %v4519, %v4535
    %v4540 = vcombine.low %v4308, %v4315
    %v4542 = vunpack.c.l.s4 1983009808
    %v4543 = vunpack.c.0.s8 %v4542
    %v4544 = vlaneseq
    %v4545 = vshrl.u32 %v4544, 7
    %v4546 = vsub.s32 %v4543, %v4545
    %v4547 = vrot.slane %v4540, %v4546
    %v4548 = vcombine.low %v4332, %v4333
    %v4550 = vunpack.c.l.s4 1983009808
    %v4551 = vunpack.c.0.s8 %v4550
    %v4552 = vlaneseq
    %v4553 = vshrl.u32 %v4552, 7
    %v4554 = vsub.s32 %v4551, %v4553
    %v4555 = vrot.slane %v4548, %v4554
    %v4556 = vcombine.low %v4324, %v4331
    %v4558 = vunpack.c.l.s4 1983009808
    %v4559 = vunpack.c.0.s8 %v4558
    %v4560 = vlaneseq
    %v4561 = vshrl.u32 %v4560, 7
    %v4562 = vsub.s32 %v4559, %v4561
    %v4563 = vrot.slane %v4556, %v4562
    %v4564 = vcombine.low %v4334, %v4335
    %v4566 = vunpack.c.l.s4 1983009808
    %v4567 = vunpack.c.0.s8 %v4566
    %v4568 = vlaneseq
    %v4569 = vshrl.u32 %v4568, 7
    %v4570 = vsub.s32 %v4567, %v4569
    %v4571 = vrot.slane %v4564, %v4570
    %v4572 = vcombine.low %v4547, %v4555
    %v4573 = vcombine.high %v4547, %v4555
    %v4575 = vunpack.c.l.s4 1934713408
    %v4576 = vunpack.c.0.s8 %v4575
    %v4577 = vlaneseq
    %v4578 = vshrl.u32 %v4577, 7
    %v4579 = vsub.s32 %v4576, %v4578
    %v4580 = vrot.slane %v4572, %v4579
    %v4582 = vunpack.c.l.s4 1934713408
    %v4583 = vunpack.c.0.s8 %v4582
    %v4584 = vlaneseq
    %v4585 = vshrl.u32 %v4584, 7
    %v4586 = vsub.s32 %v4583, %v4585
    %v4587 = vrot.slane %v4573, %v4586
    %v4588 = vcombine.low %v4563, %v4571
    %v4589 = vcombine.high %v4563, %v4571
    %v4591 = vunpack.c.l.s4 1934713408
    %v4592 = vunpack.c.0.s8 %v4591
    %v4593 = vlaneseq
    %v4594 = vshrl.u32 %v4593, 7
    %v4595 = vsub.s32 %v4592, %v4594
    %v4596 = vrot.slane %v4588, %v4595
    %v4598 = vunpack.c.l.s4 1934713408
    %v4599 = vunpack.c.0.s8 %v4598
    %v4600 = vlaneseq
    %v4601 = vshrl.u32 %v4600, 7
    %v4602 = vsub.s32 %v4599, %v4601
    %v4603 = vrot.slane %v4589, %v4602
    %v4604 = vcombine.low %v4580, %v4596
    %v4605 = vcombine.high %v4580, %v4596
    %v4606 = vcombine.low %v4587, %v4603
    %v4607 = vcombine.high %v4587, %v4603
    %v4608 = vcombine.low %v4376, %v4383
    %v4610 = vunpack.c.l.s4 1983009808
    %v4611 = vunpack.c.0.s8 %v4610
    %v4612 = vlaneseq
    %v4613 = vshrl.u32 %v4612, 7
    %v4614 = vsub.s32 %v4611, %v4613
    %v4615 = vrot.slane %v4608, %v4614
    %v4616 = vcombine.low %v4400, %v4401
    %v4618 = vunpack.c.l.s4 1983009808
    %v4619 = vunpack.c.0.s8 %v4618
    %v4620 = vlaneseq
    %v4621 = vshrl.u32 %v4620, 7
    %v4622 = vsub.s32 %v4619, %v4621
    %v4623 = vrot.slane %v4616, %v4622
    %v4624 = vcombine.low %v4392, %v4399
    %v4626 = vunpack.c.l.s4 1983009808
    %v4627 = vunpack.c.0.s8 %v4626
    %v4628 = vlaneseq
    %v4629 = vshrl.u32 %v4628, 7
    %v4630 = vsub.s32 %v4627, %v4629
    %v4631 = vrot.slane %v4624, %v4630
    %v4632 = vcombine.low %v4402, %v4403
    %v4634 = vunpack.c.l.s4 1983009808
    %v4635 = vunpack.c.0.s8 %v4634
    %v4636 = vlaneseq
    %v4637 = vshrl.u32 %v4636, 7
    %v4638 = vsub.s32 %v4635, %v4637
    %v4639 = vrot.slane %v4632, %v4638
    %v4640 = vcombine.low %v4615, %v4623
    %v4641 = vcombine.high %v4615, %v4623
    %v4643 = vunpack.c.l.s4 1934713408
    %v4644 = vunpack.c.0.s8 %v4643
    %v4645 = vlaneseq
    %v4646 = vshrl.u32 %v4645, 7
    %v4647 = vsub.s32 %v4644, %v4646
    %v4648 = vrot.slane %v4640, %v4647
    %v4650 = vunpack.c.l.s4 1934713408
    %v4651 = vunpack.c.0.s8 %v4650
    %v4652 = vlaneseq
    %v4653 = vshrl.u32 %v4652, 7
    %v4654 = vsub.s32 %v4651, %v4653
    %v4655 = vrot.slane %v4641, %v4654
    %v4656 = vcombine.low %v4631, %v4639
    %v4657 = vcombine.high %v4631, %v4639
    %v4659 = vunpack.c.l.s4 1934713408
    %v4660 = vunpack.c.0.s8 %v4659
    %v4661 = vlaneseq
    %v4662 = vshrl.u32 %v4661, 7
    %v4663 = vsub.s32 %v4660, %v4662
    %v4664 = vrot.slane %v4656, %v4663
    %v4666 = vunpack.c.l.s4 1934713408
    %v4667 = vunpack.c.0.s8 %v4666
    %v4668 = vlaneseq
    %v4669 = vshrl.u32 %v4668, 7
    %v4670 = vsub.s32 %v4667, %v4669
    %v4671 = vrot.slane %v4657, %v4670
    %v4672 = vcombine.low %v4648, %v4664
    %v4673 = vcombine.high %v4648, %v4664
    %v4674 = vcombine.low %v4655, %v4671
    %v4675 = vcombine.high %v4655, %v4671
    %v4676 = vcombine.low %v4444, %v4451
    %v4678 = vunpack.c.l.s4 1983009808
    %v4679 = vunpack.c.0.s8 %v4678
    %v4680 = vlaneseq
    %v4681 = vshrl.u32 %v4680, 7
    %v4682 = vsub.s32 %v4679, %v4681
    %v4683 = vrot.slane %v4676, %v4682
    %v4684 = vcombine.low %v4468, %v4469
    %v4686 = vunpack.c.l.s4 1983009808
    %v4687 = vunpack.c.0.s8 %v4686
    %v4688 = vlaneseq
    %v4689 = vshrl.u32 %v4688, 7
    %v4690 = vsub.s32 %v4687, %v4689
    %v4691 = vrot.slane %v4684, %v4690
    %v4692 = vcombine.low %v4460, %v4467
    %v4694 = vunpack.c.l.s4 1983009808
    %v4695 = vunpack.c.0.s8 %v4694
    %v4696 = vlaneseq
    %v4697 = vshrl.u32 %v4696, 7
    %v4698 = vsub.s32 %v4695, %v4697
    %v4699 = vrot.slane %v4692, %v4698
    %v4700 = vcombine.low %v4470, %v4471
    %v4702 = vunpack.c.l.s4 1983009808
    %v4703 = vunpack.c.0.s8 %v4702
    %v4704 = vlaneseq
    %v4705 = vshrl.u32 %v4704, 7
    %v4706 = vsub.s32 %v4703, %v4705
    %v4707 = vrot.slane %v4700, %v4706
    %v4708 = vcombine.low %v4683, %v4691
    %v4709 = vcombine.high %v4683, %v4691
    %v4711 = vunpack.c.l.s4 1934713408
    %v4712 = vunpack.c.0.s8 %v4711
    %v4713 = vlaneseq
    %v4714 = vshrl.u32 %v4713, 7
    %v4715 = vsub.s32 %v4712, %v4714
    %v4716 = vrot.slane %v4708, %v4715
    %v4718 = vunpack.c.l.s4 1934713408
    %v4719 = vunpack.c.0.s8 %v4718
    %v4720 = vlaneseq
    %v4721 = vshrl.u32 %v4720, 7
    %v4722 = vsub.s32 %v4719, %v4721
    %v4723 = vrot.slane %v4709, %v4722
    %v4724 = vcombine.low %v4699, %v4707
    %v4725 = vcombine.high %v4699, %v4707
    %v4727 = vunpack.c.l.s4 1934713408
    %v4728 = vunpack.c.0.s8 %v4727
    %v4729 = vlaneseq
    %v4730 = vshrl.u32 %v4729, 7
    %v4731 = vsub.s32 %v4728, %v4730
    %v4732 = vrot.slane %v4724, %v4731
    %v4734 = vunpack.c.l.s4 1934713408
    %v4735 = vunpack.c.0.s8 %v4734
    %v4736 = vlaneseq
    %v4737 = vshrl.u32 %v4736, 7
    %v4738 = vsub.s32 %v4735, %v4737
    %v4739 = vrot.slane %v4725, %v4738
    %v4740 = vcombine.low %v4716, %v4732
    %v4741 = vcombine.high %v4716, %v4732
    %v4742 = vcombine.low %v4723, %v4739
    %v4743 = vcombine.high %v4723, %v4739
    %v4744 = vpack.c.bf16 %v4604, %v4536
    %v4745 = vpack.c.bf16 %v4740, %v4672
    %v4746 = vpack.c.bf16 %v4605, %v4537
    %v4747 = vpack.c.bf16 %v4741, %v4673
    %v4748 = vpack.c.bf16 %v4606, %v4538
    %v4749 = vpack.c.bf16 %v4742, %v4674
    %v4750 = vpack.c.bf16 %v4607, %v4539
    %v4751 = vpack.c.bf16 %v4743, %v4675
    %v4753 = vsel %vm1496, %v3552, 0
    %v4756 = vsel %vm1496, %v4144, 0
    %4758 = vmatprep.subr.bf16.mxu0 0
    %4759 = vmatpush1.bf16.xpose.msra.mxu0 %v4756
    %4760 = vmatprep.subr.bf16.mxu0 0
    %4761 = vmatpush1.bf16.xpose.msra.mxu0 0
    %4762 = vmatprep.subr.bf16.mxu0 0
    %4763 = vmatpush1.bf16.xpose.msra.mxu0 0
    %4764 = vmatprep.subr.bf16.mxu0 0
    %4765 = vmatpush1.bf16.xpose.msra.mxu0 0
    %4766 = vmatprep.subr.bf16.mxu0 0
    %4767 = vmatpush1.bf16.xpose.msra.mxu0 0
    %4768 = vmatprep.subr.bf16.mxu0 0
    %4769 = vmatpush1.bf16.xpose.msra.mxu0 0
    %4770 = vmatprep.subr.bf16.mxu0 0
    %4771 = vmatpush1.bf16.xpose.msra.mxu0 0
    %4772 = vmatprep.subr.bf16.mxu0 0
    %4773 = vmatpush1.bf16.xpose.msra.mxu0 0
    %4774 = vmatprep.subr.bf16.mxu0 0
    %4775 = vmatpush1.bf16.xpose.msra.mxu0 0
    %4776 = vmatprep.subr.bf16.mxu0 0
    %4777 = vmatpush1.bf16.xpose.msra.mxu0 0
    %4778 = vmatprep.subr.bf16.mxu0 0
    %4779 = vmatpush1.bf16.xpose.msra.mxu0 0
    %4780 = vmatprep.subr.bf16.mxu0 0
    %4781 = vmatpush1.bf16.xpose.msra.mxu0 0
    %4782 = vmatprep.subr.bf16.mxu0 0
    %4783 = vmatpush1.bf16.xpose.msra.mxu0 0
    %4784 = vmatprep.subr.bf16.mxu0 0
    %4785 = vmatpush1.bf16.xpose.msra.mxu0 0
    %4786 = vmatprep.subr.bf16.mxu0 0
    %4787 = vmatpush1.bf16.xpose.msra.mxu0 0
    %4788 = vmatprep.subr.bf16.mxu0 0
    %4789 = vmatpush1.bf16.xpose.msra.mxu0 0
    %4790 = vmatprep.mubr.bf16.mxu0 0
    %4791 = vmatmul.mubr.bf16.gmra.mrb[0].mxu0 %v4753
    %v4792 = vpop.f32.mrb[0].mxu0
    %v4793 = vadd.f32 0.0, %v4792
    %v4794 = vpop.f32.mrb[0].mxu0
    %v4795 = vpop.f32.mrb[0].mxu0
    %v4796 = vpop.f32.mrb[0].mxu0
    %4797 = vdwg.mxu0
    %v4799 = vsel %vm1496, %v3553, 0
    %v4802 = vsel %vm1496, %v4145, 0
    %4804 = vmatprep.subr.bf16.mxu0 0
    %4805 = vmatpush1.bf16.xpose.msra.mxu0 %v4802
    %4806 = vmatprep.subr.bf16.mxu0 0
    %4807 = vmatpush1.bf16.xpose.msra.mxu0 0
    %4808 = vmatprep.subr.bf16.mxu0 0
    %4809 = vmatpush1.bf16.xpose.msra.mxu0 0
    %4810 = vmatprep.subr.bf16.mxu0 0
    %4811 = vmatpush1.bf16.xpose.msra.mxu0 0
    %4812 = vmatprep.subr.bf16.mxu0 0
    %4813 = vmatpush1.bf16.xpose.msra.mxu0 0
    %4814 = vmatprep.subr.bf16.mxu0 0
    %4815 = vmatpush1.bf16.xpose.msra.mxu0 0
    %4816 = vmatprep.subr.bf16.mxu0 0
    %4817 = vmatpush1.bf16.xpose.msra.mxu0 0
    %4818 = vmatprep.subr.bf16.mxu0 0
    %4819 = vmatpush1.bf16.xpose.msra.mxu0 0
    %4820 = vmatprep.subr.bf16.mxu0 0
    %4821 = vmatpush1.bf16.xpose.msra.mxu0 0
    %4822 = vmatprep.subr.bf16.mxu0 0
    %4823 = vmatpush1.bf16.xpose.msra.mxu0 0
    %4824 = vmatprep.subr.bf16.mxu0 0
    %4825 = vmatpush1.bf16.xpose.msra.mxu0 0
    %4826 = vmatprep.subr.bf16.mxu0 0
    %4827 = vmatpush1.bf16.xpose.msra.mxu0 0
    %4828 = vmatprep.subr.bf16.mxu0 0
    %4829 = vmatpush1.bf16.xpose.msra.mxu0 0
    %4830 = vmatprep.subr.bf16.mxu0 0
    %4831 = vmatpush1.bf16.xpose.msra.mxu0 0
    %4832 = vmatprep.subr.bf16.mxu0 0
    %4833 = vmatpush1.bf16.xpose.msra.mxu0 0
    %4834 = vmatprep.subr.bf16.mxu0 0
    %4835 = vmatpush1.bf16.xpose.msra.mxu0 0
    %4836 = vmatprep.mubr.bf16.mxu0 0
    %4837 = vmatmul.mubr.bf16.gmra.mrb[0].mxu0 %v4799
    %v4838 = vpop.f32.mrb[0].mxu0
    %v4839 = vadd.f32 0.0, %v4838
    %v4840 = vpop.f32.mrb[0].mxu0
    %v4841 = vpop.f32.mrb[0].mxu0
    %v4842 = vpop.f32.mrb[0].mxu0
    %4843 = vdwg.mxu0
    %v4845 = vsel %vm1496, %v3554, 0
    %v4848 = vsel %vm1496, %v4146, 0
    %4850 = vmatprep.subr.bf16.mxu0 0
    %4851 = vmatpush1.bf16.xpose.msra.mxu0 %v4848
    %4852 = vmatprep.subr.bf16.mxu0 0
    %4853 = vmatpush1.bf16.xpose.msra.mxu0 0
    %4854 = vmatprep.subr.bf16.mxu0 0
    %4855 = vmatpush1.bf16.xpose.msra.mxu0 0
    %4856 = vmatprep.subr.bf16.mxu0 0
    %4857 = vmatpush1.bf16.xpose.msra.mxu0 0
    %4858 = vmatprep.subr.bf16.mxu0 0
    %4859 = vmatpush1.bf16.xpose.msra.mxu0 0
    %4860 = vmatprep.subr.bf16.mxu0 0
    %4861 = vmatpush1.bf16.xpose.msra.mxu0 0
    %4862 = vmatprep.subr.bf16.mxu0 0
    %4863 = vmatpush1.bf16.xpose.msra.mxu0 0
    %4864 = vmatprep.subr.bf16.mxu0 0
    %4865 = vmatpush1.bf16.xpose.msra.mxu0 0
    %4866 = vmatprep.subr.bf16.mxu0 0
    %4867 = vmatpush1.bf16.xpose.msra.mxu0 0
    %4868 = vmatprep.subr.bf16.mxu0 0
    %4869 = vmatpush1.bf16.xpose.msra.mxu0 0
    %4870 = vmatprep.subr.bf16.mxu0 0
    %4871 = vmatpush1.bf16.xpose.msra.mxu0 0
    %4872 = vmatprep.subr.bf16.mxu0 0
    %4873 = vmatpush1.bf16.xpose.msra.mxu0 0
    %4874 = vmatprep.subr.bf16.mxu0 0
    %4875 = vmatpush1.bf16.xpose.msra.mxu0 0
    %4876 = vmatprep.subr.bf16.mxu0 0
    %4877 = vmatpush1.bf16.xpose.msra.mxu0 0
    %4878 = vmatprep.subr.bf16.mxu0 0
    %4879 = vmatpush1.bf16.xpose.msra.mxu0 0
    %4880 = vmatprep.subr.bf16.mxu0 0
    %4881 = vmatpush1.bf16.xpose.msra.mxu0 0
    %4882 = vmatprep.mubr.bf16.mxu0 0
    %4883 = vmatmul.mubr.bf16.gmra.mrb[0].mxu0 %v4845
    %v4884 = vpop.f32.mrb[0].mxu0
    %v4885 = vadd.f32 0.0, %v4884
    %v4886 = vpop.f32.mrb[0].mxu0
    %v4887 = vpop.f32.mrb[0].mxu0
    %v4888 = vpop.f32.mrb[0].mxu0
    %4889 = vdwg.mxu0
    %v4891 = vsel %vm1496, %v3555, 0
    %v4894 = vsel %vm1496, %v4147, 0
    %4896 = vmatprep.subr.bf16.mxu0 0
    %4897 = vmatpush1.bf16.xpose.msra.mxu0 %v4894
    %4898 = vmatprep.subr.bf16.mxu0 0
    %4899 = vmatpush1.bf16.xpose.msra.mxu0 0
    %4900 = vmatprep.subr.bf16.mxu0 0
    %4901 = vmatpush1.bf16.xpose.msra.mxu0 0
    %4902 = vmatprep.subr.bf16.mxu0 0
    %4903 = vmatpush1.bf16.xpose.msra.mxu0 0
    %4904 = vmatprep.subr.bf16.mxu0 0
    %4905 = vmatpush1.bf16.xpose.msra.mxu0 0
    %4906 = vmatprep.subr.bf16.mxu0 0
    %4907 = vmatpush1.bf16.xpose.msra.mxu0 0
    %4908 = vmatprep.subr.bf16.mxu0 0
    %4909 = vmatpush1.bf16.xpose.msra.mxu0 0
    %4910 = vmatprep.subr.bf16.mxu0 0
    %4911 = vmatpush1.bf16.xpose.msra.mxu0 0
    %4912 = vmatprep.subr.bf16.mxu0 0
    %4913 = vmatpush1.bf16.xpose.msra.mxu0 0
    %4914 = vmatprep.subr.bf16.mxu0 0
    %4915 = vmatpush1.bf16.xpose.msra.mxu0 0
    %4916 = vmatprep.subr.bf16.mxu0 0
    %4917 = vmatpush1.bf16.xpose.msra.mxu0 0
    %4918 = vmatprep.subr.bf16.mxu0 0
    %4919 = vmatpush1.bf16.xpose.msra.mxu0 0
    %4920 = vmatprep.subr.bf16.mxu0 0
    %4921 = vmatpush1.bf16.xpose.msra.mxu0 0
    %4922 = vmatprep.subr.bf16.mxu0 0
    %4923 = vmatpush1.bf16.xpose.msra.mxu0 0
    %4924 = vmatprep.subr.bf16.mxu0 0
    %4925 = vmatpush1.bf16.xpose.msra.mxu0 0
    %4926 = vmatprep.subr.bf16.mxu0 0
    %4927 = vmatpush1.bf16.xpose.msra.mxu0 0
    %4928 = vmatprep.mubr.bf16.mxu0 0
    %4929 = vmatmul.mubr.bf16.gmra.mrb[0].mxu0 %v4891
    %v4930 = vpop.f32.mrb[0].mxu0
    %v4931 = vadd.f32 0.0, %v4930
    %v4932 = vpop.f32.mrb[0].mxu0
    %v4933 = vpop.f32.mrb[0].mxu0
    %v4934 = vpop.f32.mrb[0].mxu0
    %4935 = vdwg.mxu0
    %v4937 = vsel %vm1496, %v3556, 0
    %v4940 = vsel %vm1496, %v4148, 0
    %4942 = vmatprep.subr.bf16.mxu0 0
    %4943 = vmatpush1.bf16.xpose.msra.mxu0 %v4940
    %4944 = vmatprep.subr.bf16.mxu0 0
    %4945 = vmatpush1.bf16.xpose.msra.mxu0 0
    %4946 = vmatprep.subr.bf16.mxu0 0
    %4947 = vmatpush1.bf16.xpose.msra.mxu0 0
    %4948 = vmatprep.subr.bf16.mxu0 0
    %4949 = vmatpush1.bf16.xpose.msra.mxu0 0
    %4950 = vmatprep.subr.bf16.mxu0 0
    %4951 = vmatpush1.bf16.xpose.msra.mxu0 0
    %4952 = vmatprep.subr.bf16.mxu0 0
    %4953 = vmatpush1.bf16.xpose.msra.mxu0 0
    %4954 = vmatprep.subr.bf16.mxu0 0
    %4955 = vmatpush1.bf16.xpose.msra.mxu0 0
    %4956 = vmatprep.subr.bf16.mxu0 0
    %4957 = vmatpush1.bf16.xpose.msra.mxu0 0
    %4958 = vmatprep.subr.bf16.mxu0 0
    %4959 = vmatpush1.bf16.xpose.msra.mxu0 0
    %4960 = vmatprep.subr.bf16.mxu0 0
    %4961 = vmatpush1.bf16.xpose.msra.mxu0 0
    %4962 = vmatprep.subr.bf16.mxu0 0
    %4963 = vmatpush1.bf16.xpose.msra.mxu0 0
    %4964 = vmatprep.subr.bf16.mxu0 0
    %4965 = vmatpush1.bf16.xpose.msra.mxu0 0
    %4966 = vmatprep.subr.bf16.mxu0 0
    %4967 = vmatpush1.bf16.xpose.msra.mxu0 0
    %4968 = vmatprep.subr.bf16.mxu0 0
    %4969 = vmatpush1.bf16.xpose.msra.mxu0 0
    %4970 = vmatprep.subr.bf16.mxu0 0
    %4971 = vmatpush1.bf16.xpose.msra.mxu0 0
    %4972 = vmatprep.subr.bf16.mxu0 0
    %4973 = vmatpush1.bf16.xpose.msra.mxu0 0
    %4974 = vmatprep.mubr.bf16.mxu0 0
    %4975 = vmatmul.mubr.bf16.gmra.mrb[0].mxu0 %v4937
    %v4976 = vpop.f32.mrb[0].mxu0
    %v4977 = vadd.f32 0.0, %v4976
    %v4978 = vpop.f32.mrb[0].mxu0
    %v4979 = vpop.f32.mrb[0].mxu0
    %v4980 = vpop.f32.mrb[0].mxu0
    %4981 = vdwg.mxu0
    %v4983 = vsel %vm1496, %v3557, 0
    %v4986 = vsel %vm1496, %v4149, 0
    %4988 = vmatprep.subr.bf16.mxu0 0
    %4989 = vmatpush1.bf16.xpose.msra.mxu0 %v4986
    %4990 = vmatprep.subr.bf16.mxu0 0
    %4991 = vmatpush1.bf16.xpose.msra.mxu0 0
    %4992 = vmatprep.subr.bf16.mxu0 0
    %4993 = vmatpush1.bf16.xpose.msra.mxu0 0
    %4994 = vmatprep.subr.bf16.mxu0 0
    %4995 = vmatpush1.bf16.xpose.msra.mxu0 0
    %4996 = vmatprep.subr.bf16.mxu0 0
    %4997 = vmatpush1.bf16.xpose.msra.mxu0 0
    %4998 = vmatprep.subr.bf16.mxu0 0
    %4999 = vmatpush1.bf16.xpose.msra.mxu0 0
    %5000 = vmatprep.subr.bf16.mxu0 0
    %5001 = vmatpush1.bf16.xpose.msra.mxu0 0
    %5002 = vmatprep.subr.bf16.mxu0 0
    %5003 = vmatpush1.bf16.xpose.msra.mxu0 0
    %5004 = vmatprep.subr.bf16.mxu0 0
    %5005 = vmatpush1.bf16.xpose.msra.mxu0 0
    %5006 = vmatprep.subr.bf16.mxu0 0
    %5007 = vmatpush1.bf16.xpose.msra.mxu0 0
    %5008 = vmatprep.subr.bf16.mxu0 0
    %5009 = vmatpush1.bf16.xpose.msra.mxu0 0
    %5010 = vmatprep.subr.bf16.mxu0 0
    %5011 = vmatpush1.bf16.xpose.msra.mxu0 0
    %5012 = vmatprep.subr.bf16.mxu0 0
    %5013 = vmatpush1.bf16.xpose.msra.mxu0 0
    %5014 = vmatprep.subr.bf16.mxu0 0
    %5015 = vmatpush1.bf16.xpose.msra.mxu0 0
    %5016 = vmatprep.subr.bf16.mxu0 0
    %5017 = vmatpush1.bf16.xpose.msra.mxu0 0
    %5018 = vmatprep.subr.bf16.mxu0 0
    %5019 = vmatpush1.bf16.xpose.msra.mxu0 0
    %5020 = vmatprep.mubr.bf16.mxu0 0
    %5021 = vmatmul.mubr.bf16.gmra.mrb[0].mxu0 %v4983
    %v5022 = vpop.f32.mrb[0].mxu0
    %v5023 = vadd.f32 0.0, %v5022
    %v5024 = vpop.f32.mrb[0].mxu0
    %v5025 = vpop.f32.mrb[0].mxu0
    %v5026 = vpop.f32.mrb[0].mxu0
    %5027 = vdwg.mxu0
    %v5029 = vsel %vm1496, %v3558, 0
    %v5032 = vsel %vm1496, %v4150, 0
    %5034 = vmatprep.subr.bf16.mxu0 0
    %5035 = vmatpush1.bf16.xpose.msra.mxu0 %v5032
    %5036 = vmatprep.subr.bf16.mxu0 0
    %5037 = vmatpush1.bf16.xpose.msra.mxu0 0
    %5038 = vmatprep.subr.bf16.mxu0 0
    %5039 = vmatpush1.bf16.xpose.msra.mxu0 0
    %5040 = vmatprep.subr.bf16.mxu0 0
    %5041 = vmatpush1.bf16.xpose.msra.mxu0 0
    %5042 = vmatprep.subr.bf16.mxu0 0
    %5043 = vmatpush1.bf16.xpose.msra.mxu0 0
    %5044 = vmatprep.subr.bf16.mxu0 0
    %5045 = vmatpush1.bf16.xpose.msra.mxu0 0
    %5046 = vmatprep.subr.bf16.mxu0 0
    %5047 = vmatpush1.bf16.xpose.msra.mxu0 0
    %5048 = vmatprep.subr.bf16.mxu0 0
    %5049 = vmatpush1.bf16.xpose.msra.mxu0 0
    %5050 = vmatprep.subr.bf16.mxu0 0
    %5051 = vmatpush1.bf16.xpose.msra.mxu0 0
    %5052 = vmatprep.subr.bf16.mxu0 0
    %5053 = vmatpush1.bf16.xpose.msra.mxu0 0
    %5054 = vmatprep.subr.bf16.mxu0 0
    %5055 = vmatpush1.bf16.xpose.msra.mxu0 0
    %5056 = vmatprep.subr.bf16.mxu0 0
    %5057 = vmatpush1.bf16.xpose.msra.mxu0 0
    %5058 = vmatprep.subr.bf16.mxu0 0
    %5059 = vmatpush1.bf16.xpose.msra.mxu0 0
    %5060 = vmatprep.subr.bf16.mxu0 0
    %5061 = vmatpush1.bf16.xpose.msra.mxu0 0
    %5062 = vmatprep.subr.bf16.mxu0 0
    %5063 = vmatpush1.bf16.xpose.msra.mxu0 0
    %5064 = vmatprep.subr.bf16.mxu0 0
    %5065 = vmatpush1.bf16.xpose.msra.mxu0 0
    %5066 = vmatprep.mubr.bf16.mxu0 0
    %5067 = vmatmul.mubr.bf16.gmra.mrb[0].mxu0 %v5029
    %v5068 = vpop.f32.mrb[0].mxu0
    %v5069 = vadd.f32 0.0, %v5068
    %v5070 = vpop.f32.mrb[0].mxu0
    %v5071 = vpop.f32.mrb[0].mxu0
    %v5072 = vpop.f32.mrb[0].mxu0
    %5073 = vdwg.mxu0
    %v5075 = vsel %vm1496, %v3559, 0
    %v5078 = vsel %vm1496, %v4151, 0
    %5080 = vmatprep.subr.bf16.mxu0 0
    %5081 = vmatpush1.bf16.xpose.msra.mxu0 %v5078
    %5082 = vmatprep.subr.bf16.mxu0 0
    %5083 = vmatpush1.bf16.xpose.msra.mxu0 0
    %5084 = vmatprep.subr.bf16.mxu0 0
    %5085 = vmatpush1.bf16.xpose.msra.mxu0 0
    %5086 = vmatprep.subr.bf16.mxu0 0
    %5087 = vmatpush1.bf16.xpose.msra.mxu0 0
    %5088 = vmatprep.subr.bf16.mxu0 0
    %5089 = vmatpush1.bf16.xpose.msra.mxu0 0
    %5090 = vmatprep.subr.bf16.mxu0 0
    %5091 = vmatpush1.bf16.xpose.msra.mxu0 0
    %5092 = vmatprep.subr.bf16.mxu0 0
    %5093 = vmatpush1.bf16.xpose.msra.mxu0 0
    %5094 = vmatprep.subr.bf16.mxu0 0
    %5095 = vmatpush1.bf16.xpose.msra.mxu0 0
    %5096 = vmatprep.subr.bf16.mxu0 0
    %5097 = vmatpush1.bf16.xpose.msra.mxu0 0
    %5098 = vmatprep.subr.bf16.mxu0 0
    %5099 = vmatpush1.bf16.xpose.msra.mxu0 0
    %5100 = vmatprep.subr.bf16.mxu0 0
    %5101 = vmatpush1.bf16.xpose.msra.mxu0 0
    %5102 = vmatprep.subr.bf16.mxu0 0
    %5103 = vmatpush1.bf16.xpose.msra.mxu0 0
    %5104 = vmatprep.subr.bf16.mxu0 0
    %5105 = vmatpush1.bf16.xpose.msra.mxu0 0
    %5106 = vmatprep.subr.bf16.mxu0 0
    %5107 = vmatpush1.bf16.xpose.msra.mxu0 0
    %5108 = vmatprep.subr.bf16.mxu0 0
    %5109 = vmatpush1.bf16.xpose.msra.mxu0 0
    %5110 = vmatprep.subr.bf16.mxu0 0
    %5111 = vmatpush1.bf16.xpose.msra.mxu0 0
    %5112 = vmatprep.mubr.bf16.mxu0 0
    %5113 = vmatmul.mubr.bf16.gmra.mrb[0].mxu0 %v5075
    %v5114 = vpop.f32.mrb[0].mxu0
    %v5115 = vadd.f32 0.0, %v5114
    %v5116 = vpop.f32.mrb[0].mxu0
    %v5117 = vpop.f32.mrb[0].mxu0
    %v5118 = vpop.f32.mrb[0].mxu0
    %5119 = vdwg.mxu0
    %v5120 = vsel %vm3030, %v4793, -inf
    %5121 = vmax.xlane.f32.xlu0 %v5120
    %v5122 = vpop.xlane.xlu0 %5121
    %v5123 = vsel %vm3030, %v4839, -inf
    %5124 = vmax.xlane.f32.xlu0 %v5123
    %v5125 = vpop.xlane.xlu0 %5124
    %v5126 = vsel %vm3030, %v4885, -inf
    %5127 = vmax.xlane.f32.xlu0 %v5126
    %v5128 = vpop.xlane.xlu0 %5127
    %v5129 = vsel %vm3030, %v4931, -inf
    %5130 = vmax.xlane.f32.xlu0 %v5129
    %v5131 = vpop.xlane.xlu0 %5130
    %v5132 = vsel %vm3030, %v4977, -inf
    %5133 = vmax.xlane.f32.xlu0 %v5132
    %v5134 = vpop.xlane.xlu0 %5133
    %v5135 = vsel %vm3030, %v5023, -inf
    %5136 = vmax.xlane.f32.xlu0 %v5135
    %v5137 = vpop.xlane.xlu0 %5136
    %v5138 = vsel %vm3030, %v5069, -inf
    %5139 = vmax.xlane.f32.xlu0 %v5138
    %v5140 = vpop.xlane.xlu0 %5139
    %v5141 = vsel %vm3030, %v5115, -inf
    %5142 = vmax.xlane.f32.xlu0 %v5141
    %v5143 = vpop.xlane.xlu0 %5142
    %v5144 = vsub.f32 %v4793, %v5122
    %v5145 = vsub.f32 %v4839, %v5125
    %v5146 = vsub.f32 %v4885, %v5128
    %v5147 = vsub.f32 %v4931, %v5131
    %v5148 = vsub.f32 %v4977, %v5134
    %v5149 = vsub.f32 %v5023, %v5137
    %v5150 = vsub.f32 %v5069, %v5140
    %v5151 = vsub.f32 %v5115, %v5143
    %v5152 = vmul.f32 %v5144, 1.442695
    %v5153 = vpow.pop %v5152
    %v5154 = vmul.f32 %v5145, 1.442695
    %v5155 = vpow.pop %v5154
    %v5156 = vmul.f32 %v5146, 1.442695
    %v5157 = vpow.pop %v5156
    %v5158 = vmul.f32 %v5147, 1.442695
    %v5159 = vpow.pop %v5158
    %v5160 = vmul.f32 %v5148, 1.442695
    %v5161 = vpow.pop %v5160
    %v5162 = vmul.f32 %v5149, 1.442695
    %v5163 = vpow.pop %v5162
    %v5164 = vmul.f32 %v5150, 1.442695
    %v5165 = vpow.pop %v5164
    %v5166 = vmul.f32 %v5151, 1.442695
    %v5167 = vpow.pop %v5166
    %v5168 = vsel %vm3030, %v5153, 0.0
    %5169 = vadd.xlane.f32.xlu0 %v5168
    %v5170 = vpop.xlane.xlu0 %5169
    %v5171 = vsel %vm3030, %v5155, 0.0
    %5172 = vadd.xlane.f32.xlu0 %v5171
    %v5173 = vpop.xlane.xlu0 %5172
    %v5174 = vsel %vm3030, %v5157, 0.0
    %5175 = vadd.xlane.f32.xlu0 %v5174
    %v5176 = vpop.xlane.xlu0 %5175
    %v5177 = vsel %vm3030, %v5159, 0.0
    %5178 = vadd.xlane.f32.xlu0 %v5177
    %v5179 = vpop.xlane.xlu0 %5178
    %v5180 = vsel %vm3030, %v5161, 0.0
    %5181 = vadd.xlane.f32.xlu0 %v5180
    %v5182 = vpop.xlane.xlu0 %5181
    %v5183 = vsel %vm3030, %v5163, 0.0
    %5184 = vadd.xlane.f32.xlu0 %v5183
    %v5185 = vpop.xlane.xlu0 %5184
    %v5186 = vsel %vm3030, %v5165, 0.0
    %5187 = vadd.xlane.f32.xlu0 %v5186
    %v5188 = vpop.xlane.xlu0 %5187
    %v5189 = vsel %vm3030, %v5167, 0.0
    %5190 = vadd.xlane.f32.xlu0 %v5189
    %v5191 = vpop.xlane.xlu0 %5190
    %v5192 = vrcp.pop %v5170
    %v5193 = vrcp.pop %v5173
    %v5194 = vrcp.pop %v5176
    %v5195 = vrcp.pop %v5179
    %v5196 = vrcp.pop %v5182
    %v5197 = vrcp.pop %v5185
    %v5198 = vrcp.pop %v5188
    %v5199 = vrcp.pop %v5191
    %v5200 = vmul.f32 %v5153, %v5192
    %v5201 = vmul.f32 %v5155, %v5193
    %v5202 = vmul.f32 %v5157, %v5194
    %v5203 = vmul.f32 %v5159, %v5195
    %v5204 = vmul.f32 %v5161, %v5196
    %v5205 = vmul.f32 %v5163, %v5197
    %v5206 = vmul.f32 %v5165, %v5198
    %v5207 = vmul.f32 %v5167, %v5199
    %v5208 = vpack.c.bf16 %v5200, %v5200
    %v5209 = vpack.c.bf16 %v5201, %v5201
    %v5210 = vpack.c.bf16 %v5202, %v5202
    %v5211 = vpack.c.bf16 %v5203, %v5203
    %v5212 = vpack.c.bf16 %v5204, %v5204
    %v5213 = vpack.c.bf16 %v5205, %v5205
    %v5214 = vpack.c.bf16 %v5206, %v5206
    %v5215 = vpack.c.bf16 %v5207, %v5207
    %v5217 = vsel %vm3030, %v5208, 0
    %5219 = vmatprep.subr.bf16.mxu0 0
    %5220 = vmatpush1.bf16.msra.mxu0 %v4744
    %5221 = vmatprep.subr.bf16.mxu0 0
    %5222 = vmatpush1.bf16.msra.mxu0 0
    %5223 = vmatprep.subr.bf16.mxu0 0
    %5224 = vmatpush1.bf16.msra.mxu0 0
    %5225 = vmatprep.subr.bf16.mxu0 0
    %5226 = vmatpush1.bf16.msra.mxu0 0
    %5227 = vmatprep.subr.bf16.mxu0 0
    %5228 = vmatpush1.bf16.msra.mxu0 0
    %5229 = vmatprep.subr.bf16.mxu0 0
    %5230 = vmatpush1.bf16.msra.mxu0 0
    %5231 = vmatprep.subr.bf16.mxu0 0
    %5232 = vmatpush1.bf16.msra.mxu0 0
    %5233 = vmatprep.subr.bf16.mxu0 0
    %5234 = vmatpush1.bf16.msra.mxu0 0
    %5235 = vmatprep.subr.bf16.mxu0 0
    %5236 = vmatpush1.bf16.msra.mxu0 0
    %5237 = vmatprep.subr.bf16.mxu0 0
    %5238 = vmatpush1.bf16.msra.mxu0 0
    %5239 = vmatprep.subr.bf16.mxu0 0
    %5240 = vmatpush1.bf16.msra.mxu0 0
    %5241 = vmatprep.subr.bf16.mxu0 0
    %5242 = vmatpush1.bf16.msra.mxu0 0
    %5243 = vmatprep.subr.bf16.mxu0 0
    %5244 = vmatpush1.bf16.msra.mxu0 0
    %5245 = vmatprep.subr.bf16.mxu0 0
    %5246 = vmatpush1.bf16.msra.mxu0 0
    %5247 = vmatprep.subr.bf16.mxu0 0
    %5248 = vmatpush1.bf16.msra.mxu0 0
    %5249 = vmatprep.subr.bf16.mxu0 0
    %5250 = vmatpush1.bf16.msra.mxu0 0
    %5251 = vmatprep.mubr.bf16.mxu0 0
    %5252 = vmatmul.mubr.bf16.gmra.mrb[0].mxu0 %v5217
    %v5253 = vpop.f32.mrb[0].mxu0
    %v5254 = vadd.f32 0.0, %v5253
    %v5255 = vpop.f32.mrb[0].mxu0
    %v5256 = vpop.f32.mrb[0].mxu0
    %v5257 = vpop.f32.mrb[0].mxu0
    %5258 = vdwg.mxu0
    %v5260 = vsel %vm3030, %v5209, 0
    %5262 = vmatprep.subr.bf16.mxu0 0
    %5263 = vmatpush1.bf16.msra.mxu0 %v4745
    %5264 = vmatprep.subr.bf16.mxu0 0
    %5265 = vmatpush1.bf16.msra.mxu0 0
    %5266 = vmatprep.subr.bf16.mxu0 0
    %5267 = vmatpush1.bf16.msra.mxu0 0
    %5268 = vmatprep.subr.bf16.mxu0 0
    %5269 = vmatpush1.bf16.msra.mxu0 0
    %5270 = vmatprep.subr.bf16.mxu0 0
    %5271 = vmatpush1.bf16.msra.mxu0 0
    %5272 = vmatprep.subr.bf16.mxu0 0
    %5273 = vmatpush1.bf16.msra.mxu0 0
    %5274 = vmatprep.subr.bf16.mxu0 0
    %5275 = vmatpush1.bf16.msra.mxu0 0
    %5276 = vmatprep.subr.bf16.mxu0 0
    %5277 = vmatpush1.bf16.msra.mxu0 0
    %5278 = vmatprep.subr.bf16.mxu0 0
    %5279 = vmatpush1.bf16.msra.mxu0 0
    %5280 = vmatprep.subr.bf16.mxu0 0
    %5281 = vmatpush1.bf16.msra.mxu0 0
    %5282 = vmatprep.subr.bf16.mxu0 0
    %5283 = vmatpush1.bf16.msra.mxu0 0
    %5284 = vmatprep.subr.bf16.mxu0 0
    %5285 = vmatpush1.bf16.msra.mxu0 0
    %5286 = vmatprep.subr.bf16.mxu0 0
    %5287 = vmatpush1.bf16.msra.mxu0 0
    %5288 = vmatprep.subr.bf16.mxu0 0
    %5289 = vmatpush1.bf16.msra.mxu0 0
    %5290 = vmatprep.subr.bf16.mxu0 0
    %5291 = vmatpush1.bf16.msra.mxu0 0
    %5292 = vmatprep.subr.bf16.mxu0 0
    %5293 = vmatpush1.bf16.msra.mxu0 0
    %5294 = vmatprep.mubr.bf16.mxu0 0
    %5295 = vmatmul.mubr.bf16.gmra.mrb[0].mxu0 %v5260
    %v5296 = vpop.f32.mrb[0].mxu0
    %v5297 = vadd.f32 0.0, %v5296
    %v5298 = vpop.f32.mrb[0].mxu0
    %v5299 = vpop.f32.mrb[0].mxu0
    %v5300 = vpop.f32.mrb[0].mxu0
    %5301 = vdwg.mxu0
    %v5303 = vsel %vm3030, %v5210, 0
    %5305 = vmatprep.subr.bf16.mxu0 0
    %5306 = vmatpush1.bf16.msra.mxu0 %v4746
    %5307 = vmatprep.subr.bf16.mxu0 0
    %5308 = vmatpush1.bf16.msra.mxu0 0
    %5309 = vmatprep.subr.bf16.mxu0 0
    %5310 = vmatpush1.bf16.msra.mxu0 0
    %5311 = vmatprep.subr.bf16.mxu0 0
    %5312 = vmatpush1.bf16.msra.mxu0 0
    %5313 = vmatprep.subr.bf16.mxu0 0
    %5314 = vmatpush1.bf16.msra.mxu0 0
    %5315 = vmatprep.subr.bf16.mxu0 0
    %5316 = vmatpush1.bf16.msra.mxu0 0
    %5317 = vmatprep.subr.bf16.mxu0 0
    %5318 = vmatpush1.bf16.msra.mxu0 0
    %5319 = vmatprep.subr.bf16.mxu0 0
    %5320 = vmatpush1.bf16.msra.mxu0 0
    %5321 = vmatprep.subr.bf16.mxu0 0
    %5322 = vmatpush1.bf16.msra.mxu0 0
    %5323 = vmatprep.subr.bf16.mxu0 0
    %5324 = vmatpush1.bf16.msra.mxu0 0
    %5325 = vmatprep.subr.bf16.mxu0 0
    %5326 = vmatpush1.bf16.msra.mxu0 0
    %5327 = vmatprep.subr.bf16.mxu0 0
    %5328 = vmatpush1.bf16.msra.mxu0 0
    %5329 = vmatprep.subr.bf16.mxu0 0
    %5330 = vmatpush1.bf16.msra.mxu0 0
    %5331 = vmatprep.subr.bf16.mxu0 0
    %5332 = vmatpush1.bf16.msra.mxu0 0
    %5333 = vmatprep.subr.bf16.mxu0 0
    %5334 = vmatpush1.bf16.msra.mxu0 0
    %5335 = vmatprep.subr.bf16.mxu0 0
    %5336 = vmatpush1.bf16.msra.mxu0 0
    %5337 = vmatprep.mubr.bf16.mxu0 0
    %5338 = vmatmul.mubr.bf16.gmra.mrb[0].mxu0 %v5303
    %v5339 = vpop.f32.mrb[0].mxu0
    %v5340 = vadd.f32 0.0, %v5339
    %v5341 = vpop.f32.mrb[0].mxu0
    %v5342 = vpop.f32.mrb[0].mxu0
    %v5343 = vpop.f32.mrb[0].mxu0
    %5344 = vdwg.mxu0
    %v5346 = vsel %vm3030, %v5211, 0
    %5348 = vmatprep.subr.bf16.mxu0 0
    %5349 = vmatpush1.bf16.msra.mxu0 %v4747
    %5350 = vmatprep.subr.bf16.mxu0 0
    %5351 = vmatpush1.bf16.msra.mxu0 0
    %5352 = vmatprep.subr.bf16.mxu0 0
    %5353 = vmatpush1.bf16.msra.mxu0 0
    %5354 = vmatprep.subr.bf16.mxu0 0
    %5355 = vmatpush1.bf16.msra.mxu0 0
    %5356 = vmatprep.subr.bf16.mxu0 0
    %5357 = vmatpush1.bf16.msra.mxu0 0
    %5358 = vmatprep.subr.bf16.mxu0 0
    %5359 = vmatpush1.bf16.msra.mxu0 0
    %5360 = vmatprep.subr.bf16.mxu0 0
    %5361 = vmatpush1.bf16.msra.mxu0 0
    %5362 = vmatprep.subr.bf16.mxu0 0
    %5363 = vmatpush1.bf16.msra.mxu0 0
    %5364 = vmatprep.subr.bf16.mxu0 0
    %5365 = vmatpush1.bf16.msra.mxu0 0
    %5366 = vmatprep.subr.bf16.mxu0 0
    %5367 = vmatpush1.bf16.msra.mxu0 0
    %5368 = vmatprep.subr.bf16.mxu0 0
    %5369 = vmatpush1.bf16.msra.mxu0 0
    %5370 = vmatprep.subr.bf16.mxu0 0
    %5371 = vmatpush1.bf16.msra.mxu0 0
    %5372 = vmatprep.subr.bf16.mxu0 0
    %5373 = vmatpush1.bf16.msra.mxu0 0
    %5374 = vmatprep.subr.bf16.mxu0 0
    %5375 = vmatpush1.bf16.msra.mxu0 0
    %5376 = vmatprep.subr.bf16.mxu0 0
    %5377 = vmatpush1.bf16.msra.mxu0 0
    %5378 = vmatprep.subr.bf16.mxu0 0
    %5379 = vmatpush1.bf16.msra.mxu0 0
    %5380 = vmatprep.mubr.bf16.mxu0 0
    %5381 = vmatmul.mubr.bf16.gmra.mrb[0].mxu0 %v5346
    %v5382 = vpop.f32.mrb[0].mxu0
    %v5383 = vadd.f32 0.0, %v5382
    %v5384 = vpop.f32.mrb[0].mxu0
    %v5385 = vpop.f32.mrb[0].mxu0
    %v5386 = vpop.f32.mrb[0].mxu0
    %5387 = vdwg.mxu0
    %v5389 = vsel %vm3030, %v5212, 0
    %5391 = vmatprep.subr.bf16.mxu0 0
    %5392 = vmatpush1.bf16.msra.mxu0 %v4748
    %5393 = vmatprep.subr.bf16.mxu0 0
    %5394 = vmatpush1.bf16.msra.mxu0 0
    %5395 = vmatprep.subr.bf16.mxu0 0
    %5396 = vmatpush1.bf16.msra.mxu0 0
    %5397 = vmatprep.subr.bf16.mxu0 0
    %5398 = vmatpush1.bf16.msra.mxu0 0
    %5399 = vmatprep.subr.bf16.mxu0 0
    %5400 = vmatpush1.bf16.msra.mxu0 0
    %5401 = vmatprep.subr.bf16.mxu0 0
    %5402 = vmatpush1.bf16.msra.mxu0 0
    %5403 = vmatprep.subr.bf16.mxu0 0
    %5404 = vmatpush1.bf16.msra.mxu0 0
    %5405 = vmatprep.subr.bf16.mxu0 0
    %5406 = vmatpush1.bf16.msra.mxu0 0
    %5407 = vmatprep.subr.bf16.mxu0 0
    %5408 = vmatpush1.bf16.msra.mxu0 0
    %5409 = vmatprep.subr.bf16.mxu0 0
    %5410 = vmatpush1.bf16.msra.mxu0 0
    %5411 = vmatprep.subr.bf16.mxu0 0
    %5412 = vmatpush1.bf16.msra.mxu0 0
    %5413 = vmatprep.subr.bf16.mxu0 0
    %5414 = vmatpush1.bf16.msra.mxu0 0
    %5415 = vmatprep.subr.bf16.mxu0 0
    %5416 = vmatpush1.bf16.msra.mxu0 0
    %5417 = vmatprep.subr.bf16.mxu0 0
    %5418 = vmatpush1.bf16.msra.mxu0 0
    %5419 = vmatprep.subr.bf16.mxu0 0
    %5420 = vmatpush1.bf16.msra.mxu0 0
    %5421 = vmatprep.subr.bf16.mxu0 0
    %5422 = vmatpush1.bf16.msra.mxu0 0
    %5423 = vmatprep.mubr.bf16.mxu0 0
    %5424 = vmatmul.mubr.bf16.gmra.mrb[0].mxu0 %v5389
    %v5425 = vpop.f32.mrb[0].mxu0
    %v5426 = vadd.f32 0.0, %v5425
    %v5427 = vpop.f32.mrb[0].mxu0
    %v5428 = vpop.f32.mrb[0].mxu0
    %v5429 = vpop.f32.mrb[0].mxu0
    %5430 = vdwg.mxu0
    %v5432 = vsel %vm3030, %v5213, 0
    %5434 = vmatprep.subr.bf16.mxu0 0
    %5435 = vmatpush1.bf16.msra.mxu0 %v4749
    %5436 = vmatprep.subr.bf16.mxu0 0
    %5437 = vmatpush1.bf16.msra.mxu0 0
    %5438 = vmatprep.subr.bf16.mxu0 0
    %5439 = vmatpush1.bf16.msra.mxu0 0
    %5440 = vmatprep.subr.bf16.mxu0 0
    %5441 = vmatpush1.bf16.msra.mxu0 0
    %5442 = vmatprep.subr.bf16.mxu0 0
    %5443 = vmatpush1.bf16.msra.mxu0 0
    %5444 = vmatprep.subr.bf16.mxu0 0
    %5445 = vmatpush1.bf16.msra.mxu0 0
    %5446 = vmatprep.subr.bf16.mxu0 0
    %5447 = vmatpush1.bf16.msra.mxu0 0
    %5448 = vmatprep.subr.bf16.mxu0 0
    %5449 = vmatpush1.bf16.msra.mxu0 0
    %5450 = vmatprep.subr.bf16.mxu0 0
    %5451 = vmatpush1.bf16.msra.mxu0 0
    %5452 = vmatprep.subr.bf16.mxu0 0
    %5453 = vmatpush1.bf16.msra.mxu0 0
    %5454 = vmatprep.subr.bf16.mxu0 0
    %5455 = vmatpush1.bf16.msra.mxu0 0
    %5456 = vmatprep.subr.bf16.mxu0 0
    %5457 = vmatpush1.bf16.msra.mxu0 0
    %5458 = vmatprep.subr.bf16.mxu0 0
    %5459 = vmatpush1.bf16.msra.mxu0 0
    %5460 = vmatprep.subr.bf16.mxu0 0
    %5461 = vmatpush1.bf16.msra.mxu0 0
    %5462 = vmatprep.subr.bf16.mxu0 0
    %5463 = vmatpush1.bf16.msra.mxu0 0
    %5464 = vmatprep.subr.bf16.mxu0 0
    %5465 = vmatpush1.bf16.msra.mxu0 0
    %5466 = vmatprep.mubr.bf16.mxu0 0
    %5467 = vmatmul.mubr.bf16.gmra.mrb[0].mxu0 %v5432
    %v5468 = vpop.f32.mrb[0].mxu0
    %v5469 = vadd.f32 0.0, %v5468
    %v5470 = vpop.f32.mrb[0].mxu0
    %v5471 = vpop.f32.mrb[0].mxu0
    %v5472 = vpop.f32.mrb[0].mxu0
    %5473 = vdwg.mxu0
    %v5475 = vsel %vm3030, %v5214, 0
    %5477 = vmatprep.subr.bf16.mxu0 0
    %5478 = vmatpush1.bf16.msra.mxu0 %v4750
    %5479 = vmatprep.subr.bf16.mxu0 0
    %5480 = vmatpush1.bf16.msra.mxu0 0
    %5481 = vmatprep.subr.bf16.mxu0 0
    %5482 = vmatpush1.bf16.msra.mxu0 0
    %5483 = vmatprep.subr.bf16.mxu0 0
    %5484 = vmatpush1.bf16.msra.mxu0 0
    %5485 = vmatprep.subr.bf16.mxu0 0
    %5486 = vmatpush1.bf16.msra.mxu0 0
    %5487 = vmatprep.subr.bf16.mxu0 0
    %5488 = vmatpush1.bf16.msra.mxu0 0
    %5489 = vmatprep.subr.bf16.mxu0 0
    %5490 = vmatpush1.bf16.msra.mxu0 0
    %5491 = vmatprep.subr.bf16.mxu0 0
    %5492 = vmatpush1.bf16.msra.mxu0 0
    %5493 = vmatprep.subr.bf16.mxu0 0
    %5494 = vmatpush1.bf16.msra.mxu0 0
    %5495 = vmatprep.subr.bf16.mxu0 0
    %5496 = vmatpush1.bf16.msra.mxu0 0
    %5497 = vmatprep.subr.bf16.mxu0 0
    %5498 = vmatpush1.bf16.msra.mxu0 0
    %5499 = vmatprep.subr.bf16.mxu0 0
    %5500 = vmatpush1.bf16.msra.mxu0 0
    %5501 = vmatprep.subr.bf16.mxu0 0
    %5502 = vmatpush1.bf16.msra.mxu0 0
    %5503 = vmatprep.subr.bf16.mxu0 0
    %5504 = vmatpush1.bf16.msra.mxu0 0
    %5505 = vmatprep.subr.bf16.mxu0 0
    %5506 = vmatpush1.bf16.msra.mxu0 0
    %5507 = vmatprep.subr.bf16.mxu0 0
    %5508 = vmatpush1.bf16.msra.mxu0 0
    %5509 = vmatprep.mubr.bf16.mxu0 0
    %5510 = vmatmul.mubr.bf16.gmra.mrb[0].mxu0 %v5475
    %v5511 = vpop.f32.mrb[0].mxu0
    %v5512 = vadd.f32 0.0, %v5511
    %v5513 = vpop.f32.mrb[0].mxu0
    %v5514 = vpop.f32.mrb[0].mxu0
    %v5515 = vpop.f32.mrb[0].mxu0
    %5516 = vdwg.mxu0
    %v5518 = vsel %vm3030, %v5215, 0
    %5520 = vmatprep.subr.bf16.mxu0 0
    %5521 = vmatpush1.bf16.msra.mxu0 %v4751
    %5522 = vmatprep.subr.bf16.mxu0 0
    %5523 = vmatpush1.bf16.msra.mxu0 0
    %5524 = vmatprep.subr.bf16.mxu0 0
    %5525 = vmatpush1.bf16.msra.mxu0 0
    %5526 = vmatprep.subr.bf16.mxu0 0
    %5527 = vmatpush1.bf16.msra.mxu0 0
    %5528 = vmatprep.subr.bf16.mxu0 0
    %5529 = vmatpush1.bf16.msra.mxu0 0
    %5530 = vmatprep.subr.bf16.mxu0 0
    %5531 = vmatpush1.bf16.msra.mxu0 0
    %5532 = vmatprep.subr.bf16.mxu0 0
    %5533 = vmatpush1.bf16.msra.mxu0 0
    %5534 = vmatprep.subr.bf16.mxu0 0
    %5535 = vmatpush1.bf16.msra.mxu0 0
    %5536 = vmatprep.subr.bf16.mxu0 0
    %5537 = vmatpush1.bf16.msra.mxu0 0
    %5538 = vmatprep.subr.bf16.mxu0 0
    %5539 = vmatpush1.bf16.msra.mxu0 0
    %5540 = vmatprep.subr.bf16.mxu0 0
    %5541 = vmatpush1.bf16.msra.mxu0 0
    %5542 = vmatprep.subr.bf16.mxu0 0
    %5543 = vmatpush1.bf16.msra.mxu0 0
    %5544 = vmatprep.subr.bf16.mxu0 0
    %5545 = vmatpush1.bf16.msra.mxu0 0
    %5546 = vmatprep.subr.bf16.mxu0 0
    %5547 = vmatpush1.bf16.msra.mxu0 0
    %5548 = vmatprep.subr.bf16.mxu0 0
    %5549 = vmatpush1.bf16.msra.mxu0 0
    %5550 = vmatprep.subr.bf16.mxu0 0
    %5551 = vmatpush1.bf16.msra.mxu0 0
    %5552 = vmatprep.mubr.bf16.mxu0 0
    %5553 = vmatmul.mubr.bf16.gmra.mrb[0].mxu0 %v5518
    %v5554 = vpop.f32.mrb[0].mxu0
    %v5555 = vadd.f32 0.0, %v5554
    %v5556 = vpop.f32.mrb[0].mxu0
    %v5557 = vpop.f32.mrb[0].mxu0
    %v5558 = vpop.f32.mrb[0].mxu0
    %5559 = vdwg.mxu0
    %v5560 = vcombine.low %v5254, %v5426
    %v5561 = vcombine.high %v5254, %v5426
    %v5563 = vunpack.c.l.s4 1983009808
    %v5564 = vunpack.c.0.s8 %v5563
    %v5565 = vlaneseq
    %v5566 = vshrl.u32 %v5565, 7
    %v5567 = vsub.s32 %v5564, %v5566
    %v5568 = vrot.slane %v5560, %v5567
    %v5570 = vunpack.c.l.s4 1983009808
    %v5571 = vunpack.c.0.s8 %v5570
    %v5572 = vlaneseq
    %v5573 = vshrl.u32 %v5572, 7
    %v5574 = vsub.s32 %v5571, %v5573
    %v5575 = vrot.slane %v5561, %v5574
    %v5576 = vcombine.low %v5340, %v5512
    %v5577 = vcombine.high %v5340, %v5512
    %v5579 = vunpack.c.l.s4 1983009808
    %v5580 = vunpack.c.0.s8 %v5579
    %v5581 = vlaneseq
    %v5582 = vshrl.u32 %v5581, 7
    %v5583 = vsub.s32 %v5580, %v5582
    %v5584 = vrot.slane %v5576, %v5583
    %v5586 = vunpack.c.l.s4 1983009808
    %v5587 = vunpack.c.0.s8 %v5586
    %v5588 = vlaneseq
    %v5589 = vshrl.u32 %v5588, 7
    %v5590 = vsub.s32 %v5587, %v5589
    %v5591 = vrot.slane %v5577, %v5590
    %v5592 = vcombine.low %v5568, %v5584
    %v5593 = vcombine.high %v5568, %v5584
    %v5595 = vunpack.c.l.s4 1934713408
    %v5596 = vunpack.c.0.s8 %v5595
    %v5597 = vlaneseq
    %v5598 = vshrl.u32 %v5597, 7
    %v5599 = vsub.s32 %v5596, %v5598
    %v5600 = vrot.slane %v5592, %v5599
    %v5602 = vunpack.c.l.s4 1934713408
    %v5603 = vunpack.c.0.s8 %v5602
    %v5604 = vlaneseq
    %v5605 = vshrl.u32 %v5604, 7
    %v5606 = vsub.s32 %v5603, %v5605
    %v5607 = vrot.slane %v5593, %v5606
    %v5608 = vcombine.low %v5575, %v5591
    %v5609 = vcombine.high %v5575, %v5591
    %v5611 = vunpack.c.l.s4 1934713408
    %v5612 = vunpack.c.0.s8 %v5611
    %v5613 = vlaneseq
    %v5614 = vshrl.u32 %v5613, 7
    %v5615 = vsub.s32 %v5612, %v5614
    %v5616 = vrot.slane %v5608, %v5615
    %v5618 = vunpack.c.l.s4 1934713408
    %v5619 = vunpack.c.0.s8 %v5618
    %v5620 = vlaneseq
    %v5621 = vshrl.u32 %v5620, 7
    %v5622 = vsub.s32 %v5619, %v5621
    %v5623 = vrot.slane %v5609, %v5622
    %v5624 = vcombine.high %v5600, 0.0
    %v5625 = vcombine.high %v5607, 0.0
    %v5626 = vcombine.high %v5616, 0.0
    %v5627 = vcombine.high %v5623, 0.0
    %v5628 = vcombine.low %v5297, %v5469
    %v5629 = vcombine.high %v5297, %v5469
    %v5631 = vunpack.c.l.s4 1983009808
    %v5632 = vunpack.c.0.s8 %v5631
    %v5633 = vlaneseq
    %v5634 = vshrl.u32 %v5633, 7
    %v5635 = vsub.s32 %v5632, %v5634
    %v5636 = vrot.slane %v5628, %v5635
    %v5638 = vunpack.c.l.s4 1983009808
    %v5639 = vunpack.c.0.s8 %v5638
    %v5640 = vlaneseq
    %v5641 = vshrl.u32 %v5640, 7
    %v5642 = vsub.s32 %v5639, %v5641
    %v5643 = vrot.slane %v5629, %v5642
    %v5644 = vcombine.low %v5383, %v5555
    %v5645 = vcombine.high %v5383, %v5555
    %v5647 = vunpack.c.l.s4 1983009808
    %v5648 = vunpack.c.0.s8 %v5647
    %v5649 = vlaneseq
    %v5650 = vshrl.u32 %v5649, 7
    %v5651 = vsub.s32 %v5648, %v5650
    %v5652 = vrot.slane %v5644, %v5651
    %v5654 = vunpack.c.l.s4 1983009808
    %v5655 = vunpack.c.0.s8 %v5654
    %v5656 = vlaneseq
    %v5657 = vshrl.u32 %v5656, 7
    %v5658 = vsub.s32 %v5655, %v5657
    %v5659 = vrot.slane %v5645, %v5658
    %v5660 = vcombine.low %v5636, %v5652
    %v5661 = vcombine.high %v5636, %v5652
    %v5663 = vunpack.c.l.s4 1934713408
    %v5664 = vunpack.c.0.s8 %v5663
    %v5665 = vlaneseq
    %v5666 = vshrl.u32 %v5665, 7
    %v5667 = vsub.s32 %v5664, %v5666
    %v5668 = vrot.slane %v5660, %v5667
    %v5670 = vunpack.c.l.s4 1934713408
    %v5671 = vunpack.c.0.s8 %v5670
    %v5672 = vlaneseq
    %v5673 = vshrl.u32 %v5672, 7
    %v5674 = vsub.s32 %v5671, %v5673
    %v5675 = vrot.slane %v5661, %v5674
    %v5676 = vcombine.low %v5643, %v5659
    %v5677 = vcombine.high %v5643, %v5659
    %v5679 = vunpack.c.l.s4 1934713408
    %v5680 = vunpack.c.0.s8 %v5679
    %v5681 = vlaneseq
    %v5682 = vshrl.u32 %v5681, 7
    %v5683 = vsub.s32 %v5680, %v5682
    %v5684 = vrot.slane %v5676, %v5683
    %v5686 = vunpack.c.l.s4 1934713408
    %v5687 = vunpack.c.0.s8 %v5686
    %v5688 = vlaneseq
    %v5689 = vshrl.u32 %v5688, 7
    %v5690 = vsub.s32 %v5687, %v5689
    %v5691 = vrot.slane %v5677, %v5690
    %v5692 = vcombine.high %v5668, 0.0
    %v5693 = vcombine.high %v5675, 0.0
    %v5694 = vcombine.high %v5684, 0.0
    %v5695 = vcombine.high %v5691, 0.0
    %v5696 = vcombine.low %v5600, %v5607
    %v5698 = vunpack.c.l.s4 1983009808
    %v5699 = vunpack.c.0.s8 %v5698
    %v5700 = vlaneseq
    %v5701 = vshrl.u32 %v5700, 7
    %v5702 = vsub.s32 %v5699, %v5701
    %v5703 = vrot.slane %v5696, %v5702
    %v5704 = vcombine.low %v5624, %v5625
    %v5706 = vunpack.c.l.s4 1983009808
    %v5707 = vunpack.c.0.s8 %v5706
    %v5708 = vlaneseq
    %v5709 = vshrl.u32 %v5708, 7
    %v5710 = vsub.s32 %v5707, %v5709
    %v5711 = vrot.slane %v5704, %v5710
    %v5712 = vcombine.low %v5616, %v5623
    %v5714 = vunpack.c.l.s4 1983009808
    %v5715 = vunpack.c.0.s8 %v5714
    %v5716 = vlaneseq
    %v5717 = vshrl.u32 %v5716, 7
    %v5718 = vsub.s32 %v5715, %v5717
    %v5719 = vrot.slane %v5712, %v5718
    %v5720 = vcombine.low %v5626, %v5627
    %v5722 = vunpack.c.l.s4 1983009808
    %v5723 = vunpack.c.0.s8 %v5722
    %v5724 = vlaneseq
    %v5725 = vshrl.u32 %v5724, 7
    %v5726 = vsub.s32 %v5723, %v5725
    %v5727 = vrot.slane %v5720, %v5726
    %v5728 = vcombine.low %v5703, %v5711
    %v5729 = vcombine.high %v5703, %v5711
    %v5731 = vunpack.c.l.s4 1934713408
    %v5732 = vunpack.c.0.s8 %v5731
    %v5733 = vlaneseq
    %v5734 = vshrl.u32 %v5733, 7
    %v5735 = vsub.s32 %v5732, %v5734
    %v5736 = vrot.slane %v5728, %v5735
    %v5738 = vunpack.c.l.s4 1934713408
    %v5739 = vunpack.c.0.s8 %v5738
    %v5740 = vlaneseq
    %v5741 = vshrl.u32 %v5740, 7
    %v5742 = vsub.s32 %v5739, %v5741
    %v5743 = vrot.slane %v5729, %v5742
    %v5744 = vcombine.low %v5719, %v5727
    %v5745 = vcombine.high %v5719, %v5727
    %v5747 = vunpack.c.l.s4 1934713408
    %v5748 = vunpack.c.0.s8 %v5747
    %v5749 = vlaneseq
    %v5750 = vshrl.u32 %v5749, 7
    %v5751 = vsub.s32 %v5748, %v5750
    %v5752 = vrot.slane %v5744, %v5751
    %v5754 = vunpack.c.l.s4 1934713408
    %v5755 = vunpack.c.0.s8 %v5754
    %v5756 = vlaneseq
    %v5757 = vshrl.u32 %v5756, 7
    %v5758 = vsub.s32 %v5755, %v5757
    %v5759 = vrot.slane %v5745, %v5758
    %v5760 = vcombine.low %v5736, %v5752
    %v5761 = vcombine.high %v5736, %v5752
    %v5762 = vcombine.low %v5743, %v5759
    %v5763 = vcombine.high %v5743, %v5759
    %v5764 = vcombine.low %v5668, %v5675
    %v5766 = vunpack.c.l.s4 1983009808
    %v5767 = vunpack.c.0.s8 %v5766
    %v5768 = vlaneseq
    %v5769 = vshrl.u32 %v5768, 7
    %v5770 = vsub.s32 %v5767, %v5769
    %v5771 = vrot.slane %v5764, %v5770
    %v5772 = vcombine.low %v5692, %v5693
    %v5774 = vunpack.c.l.s4 1983009808
    %v5775 = vunpack.c.0.s8 %v5774
    %v5776 = vlaneseq
    %v5777 = vshrl.u32 %v5776, 7
    %v5778 = vsub.s32 %v5775, %v5777
    %v5779 = vrot.slane %v5772, %v5778
    %v5780 = vcombine.low %v5684, %v5691
    %v5782 = vunpack.c.l.s4 1983009808
    %v5783 = vunpack.c.0.s8 %v5782
    %v5784 = vlaneseq
    %v5785 = vshrl.u32 %v5784, 7
    %v5786 = vsub.s32 %v5783, %v5785
    %v5787 = vrot.slane %v5780, %v5786
    %v5788 = vcombine.low %v5694, %v5695
    %v5790 = vunpack.c.l.s4 1983009808
    %v5791 = vunpack.c.0.s8 %v5790
    %v5792 = vlaneseq
    %v5793 = vshrl.u32 %v5792, 7
    %v5794 = vsub.s32 %v5791, %v5793
    %v5795 = vrot.slane %v5788, %v5794
    %v5796 = vcombine.low %v5771, %v5779
    %v5797 = vcombine.high %v5771, %v5779
    %v5799 = vunpack.c.l.s4 1934713408
    %v5800 = vunpack.c.0.s8 %v5799
    %v5801 = vlaneseq
    %v5802 = vshrl.u32 %v5801, 7
    %v5803 = vsub.s32 %v5800, %v5802
    %v5804 = vrot.slane %v5796, %v5803
    %v5806 = vunpack.c.l.s4 1934713408
    %v5807 = vunpack.c.0.s8 %v5806
    %v5808 = vlaneseq
    %v5809 = vshrl.u32 %v5808, 7
    %v5810 = vsub.s32 %v5807, %v5809
    %v5811 = vrot.slane %v5797, %v5810
    %v5812 = vcombine.low %v5787, %v5795
    %v5813 = vcombine.high %v5787, %v5795
    %v5815 = vunpack.c.l.s4 1934713408
    %v5816 = vunpack.c.0.s8 %v5815
    %v5817 = vlaneseq
    %v5818 = vshrl.u32 %v5817, 7
    %v5819 = vsub.s32 %v5816, %v5818
    %v5820 = vrot.slane %v5812, %v5819
    %v5822 = vunpack.c.l.s4 1934713408
    %v5823 = vunpack.c.0.s8 %v5822
    %v5824 = vlaneseq
    %v5825 = vshrl.u32 %v5824, 7
    %v5826 = vsub.s32 %v5823, %v5825
    %v5827 = vrot.slane %v5813, %v5826
    %v5828 = vcombine.low %v5804, %v5820
    %v5829 = vcombine.high %v5804, %v5820
    %v5830 = vcombine.low %v5811, %v5827
    %v5831 = vcombine.high %v5811, %v5827
    %5834 = vrot.lane.b32.xlu0 %v5761, 8
    %v5835 = vpop.permute.xlu0 %5834
    %5836 = vrot.lane.b32.xlu0 %v5829, 8
    %v5837 = vpop.permute.xlu0 %5836
    %5842 = vrot.lane.b32.xlu0 %v5762, 16
    %v5843 = vpop.permute.xlu0 %5842
    %5844 = vrot.lane.b32.xlu0 %v5830, 16
    %v5845 = vpop.permute.xlu0 %5844
    %5850 = vrot.lane.b32.xlu0 %v5763, 24
    %v5851 = vpop.permute.xlu0 %5850
    %5852 = vrot.lane.b32.xlu0 %v5831, 24
    %v5853 = vpop.permute.xlu0 %5852
    %v5856 = vsel %vm1496, %v5760, %v5835
    %v5857 = vsel %vm1496, %v5828, %v5837
    %v5858 = vsel %vm3030, %v5856, %v5843
    %v5859 = vsel %vm3030, %v5857, %v5845
    %v5860 = vsel %vm3035, %v5858, %v5851
    %v5861 = vsel %vm3035, %v5859, %v5853
    %v5862 = vpack.c.bf16 %v5861, %v5860
    %v5863 = vld [vmem:[#allocation13] sm:$0xf]
    %v5864 = vld [vmem:[#allocation13 + $0x4] sm:$0xf]
    %v5865 = vld [vmem:[#allocation13 + $0x8] sm:$0xf]
    %v5866 = vld [vmem:[#allocation13 + $0xc] sm:$0xf]
    %v5867 = vld [vmem:[%s13] sm:$0x1]
    %v5869 = vlaneseq
    %v5870 = vshrl.u32 %v5869, 7
    %v5871 = vsub.s32 0, %v5870
    %v5872 = vrot.slane %v5867, %v5871
    %v5878 = vunpack.c.l.b16 %v5863
    %v5879 = vunpack.c.l.b16 %v5864
    %v5880 = vunpack.c.l.b16 %v5865
    %v5881 = vunpack.c.l.b16 %v5866
    %v5882 = vpack.c.b16 %v5879, %v5878
    %v5883 = vpack.c.b16 %v5881, %v5880
    %v5887 = vsel %vm177, %v5862, 0
    %5889 = vmatprep.subr.bf16.mxu0 0
    %5890 = vmatpush1.bf16.msra.mxu0 %v5882
    %5891 = vmatprep.subr.bf16.mxu0 0
    %5892 = vmatpush1.bf16.msra.mxu0 %v5883
    %5893 = vmatprep.subr.bf16.mxu0 0
    %5894 = vmatpush1.bf16.msra.mxu0 0
    %5895 = vmatprep.subr.bf16.mxu0 0
    %5896 = vmatpush1.bf16.msra.mxu0 0
    %5897 = vmatprep.subr.bf16.mxu0 0
    %5898 = vmatpush1.bf16.msra.mxu0 0
    %5899 = vmatprep.subr.bf16.mxu0 0
    %5900 = vmatpush1.bf16.msra.mxu0 0
    %5901 = vmatprep.subr.bf16.mxu0 0
    %5902 = vmatpush1.bf16.msra.mxu0 0
    %5903 = vmatprep.subr.bf16.mxu0 0
    %5904 = vmatpush1.bf16.msra.mxu0 0
    %5905 = vmatprep.subr.bf16.mxu0 0
    %5906 = vmatpush1.bf16.msra.mxu0 0
    %5907 = vmatprep.subr.bf16.mxu0 0
    %5908 = vmatpush1.bf16.msra.mxu0 0
    %5909 = vmatprep.subr.bf16.mxu0 0
    %5910 = vmatpush1.bf16.msra.mxu0 0
    %5911 = vmatprep.subr.bf16.mxu0 0
    %5912 = vmatpush1.bf16.msra.mxu0 0
    %5913 = vmatprep.subr.bf16.mxu0 0
    %5914 = vmatpush1.bf16.msra.mxu0 0
    %5915 = vmatprep.subr.bf16.mxu0 0
    %5916 = vmatpush1.bf16.msra.mxu0 0
    %5917 = vmatprep.subr.bf16.mxu0 0
    %5918 = vmatpush1.bf16.msra.mxu0 0
    %5919 = vmatprep.subr.bf16.mxu0 0
    %5920 = vmatpush1.bf16.msra.mxu0 0
    %5921 = vmatprep.mubr.bf16.mxu0 0
    %5922 = vmatmul.mubr.bf16.gmra.mrb[0].mxu0 %v5887
    %v5923 = vpop.f32.mrb[0].mxu0
    %v5924 = vadd.f32 %v5872, %v5923
    %v5925 = vpop.f32.mrb[0].mxu0
    %v5926 = vpop.f32.mrb[0].mxu0
    %v5927 = vadd.f32 %v5872, %v5926
    %v5928 = vpop.f32.mrb[0].mxu0
    %5929 = vdwg.mxu0
    %5930 = vst.msk [vmem:[#allocation15] sm:$0xff] %vm177, %v5924
    %5931 = vst.msk [vmem:[#allocation15 + $0x8] sm:$0xff] %vm177, %v5927
    // Predicated region
    $region86: #{duma_forward.1} parent=1 // pred_check
      _
    $region87: #{duma_forward.1} parent=1 // pred_check_branch
      %5933 = sbr.rel (0) target = $region89
    $region88: #{duma_forward.1} parent=1 // pred_region
      %s5935 = ssub.s32 512, 512
      %5936 = vsyncadd [#allocation4], %s5935
      %s5937 = sshll.u32 [#allocation14], 4
      %s5938 = int_to_ptr.vmem [resolvable:$true] %s5937
      %5943 = dma.vmem_to_hbm [thread:$0]  %s5938, 512, %s14, [#allocation4], 128, 128, 8
    $region89: #{duma_forward.1} parent=1 // pred_fallthru
      _
    // Predicated region
    $region90: #{duma_forward.1} parent=1 // pred_check
      _
    $region91: #{duma_forward.1} parent=1 // pred_check_branch
      %5945 = sbr.rel (0) target = $region93
    $region92: #{duma_forward.1} parent=1 // pred_region
      %s5947 = ssub.s32 256, 256
      %5948 = vsyncadd [#allocation16], %s5947
      %s5949 = sshll.u32 [#allocation15], 4
      %s5950 = int_to_ptr.vmem [resolvable:$true] %s5949
      %5955 = dma.vmem_to_hbm [thread:$0]  %s5950, 256, %s15, [#allocation16], 128, 128, 8
    $region93: #{duma_forward.1} parent=1 // pred_fallthru
      _
    // Predicated region
    $region94: #{duma_forward.1} parent=1 // pred_check
      _
    $region95: #{duma_forward.1} parent=1 // pred_check_branch
      %5957 = sbr.rel (0) target = $region97
    $region96: #{duma_forward.1} parent=1 // pred_region
      %5958 = dma.done [#allocation4], 512
    $region97: #{duma_forward.1} parent=1 // pred_fallthru
      _
    // Predicated region
    $region98: #{duma_forward.1} parent=1 // pred_check
      _
    $region99: #{duma_forward.1} parent=1 // pred_check_branch
      %5960 = sbr.rel (0) target = $region101
    $region100: #{duma_forward.1} parent=1 // pred_region
      %5961 = dma.done [#allocation16], 256
    $region101: #{duma_forward.1} parent=1 // pred_fallthru
      _
    %5962 = vsyncpa [#allocation3], 1
    %5963 = vsyncpa [#allocation6], 1
    %5964 = vsyncpa [#allocation9], 1
    %5965 = vsyncpa [#allocation12], 1
    %5966 = vsyncpa [#allocation4], 1
    %5967 = vsyncpa [#allocation16], 1

</llo_original>
